<compile_context>
chip_gen: v7x
topology: tpu7x:2x2x1
jax: 0.10.0
libtpu: 0.0.40
codegen_flags: <defaults>
</compile_context>

<pallas_src>
import functools

import jax
import jax.numpy as jnp
from jax.experimental import pallas as pl
from jax.experimental.pallas import tpu as pltpu

# ----------------------------- model hyperparams -----------------------------
B = 2            # batch
IMG = 16         # image spatial size
PATCH = 8        # patch size
NUM_PATCHES = (IMG // PATCH) ** 2          # 4
V_SEQ = NUM_PATCHES + 1                    # 5 (CLS + patches)
V_HIDDEN, V_HEADS, V_MLP = 32, 2, 64       # vision tower
T_HIDDEN, T_HEADS, T_MLP = 32, 2, 64       # text tower
VOCAB, SEQ_LEN = 64, 8
PROJ_DIM = 16                              # shared CLIP projection dim
N_LAYERS = 2

LAYER_KEYS = ("ln1_g", "ln1_b", "wqkv", "bqkv", "wo", "bo",
              "ln2_g", "ln2_b", "w1", "b1", "w2", "b2")
N_LAYER_ARRS = len(LAYER_KEYS)


# --------------------------- in-kernel building blocks ------------------------
def _layer_norm(x, g, b, eps=1e-5):
    mu = jnp.mean(x, axis=-1, keepdims=True)
    var = jnp.mean(jnp.square(x - mu), axis=-1, keepdims=True)
    return (x - mu) * jax.lax.rsqrt(var + eps) * g + b


def _mhsa(h, wqkv, bqkv, wo, bo, n_heads, head_dim, mask):
    """Multi-head self-attention over all (batch, head) pairs in one body.

    `mask` is an additive (B*S, B*S) mask; it carries the block-diagonal
    batch isolation (and causal+padding terms for the text tower).
    """
    hidden = n_heads * head_dim
    scale = head_dim ** -0.5
    # fused QKV matmul (lane-dense 3H output), bias folded in
    qkv = jnp.dot(h, wqkv, preferred_element_type=jnp.float32) + bqkv
    out = None
    for hh in range(n_heads):                      # static unroll (2 heads)
        c = hh * head_dim
        q = qkv[:, c:c + head_dim]
        k = qkv[:, hidden + c:hidden + c + head_dim]
        v = qkv[:, 2 * hidden + c:2 * hidden + c + head_dim]
        # q @ k^T without an explicit transpose
        s = jax.lax.dot_general(q, k, (((1,), (1,)), ((), ())),
                                preferred_element_type=jnp.float32)
        s = s * scale + mask
        s = s - jnp.max(s, axis=-1, keepdims=True)
        p = jnp.exp(s)
        p = p * pl.reciprocal(jnp.sum(p, axis=-1, keepdims=True), approx=True)
        oh = jnp.dot(p, v, preferred_element_type=jnp.float32)       # (BS, Dh)
        # fold the output projection per head (avoids in-kernel head concat)
        proj = jnp.dot(oh, wo[c:c + head_dim, :],
                       preferred_element_type=jnp.float32)
        out = proj if out is None else out + proj
    return out + bo


def _encoder_layer(x, lp, n_heads, head_dim, mask):
    (ln1_g, ln1_b, wqkv, bqkv, wo, bo,
     ln2_g, ln2_b, w1, b1, w2, b2) = lp
    h = _layer_norm(x, ln1_g, ln1_b)
    x = x + _mhsa(h, wqkv, bqkv, wo, bo, n_heads, head_dim, mask)     # residual
    h = _layer_norm(x, ln2_g, ln2_b)
    h = jnp.dot(h, w1, preferred_element_type=jnp.float32) + b1
    h = h * jax.nn.sigmoid(1.702 * h)                 # CLIP quick_gelu, fused
    h = jnp.dot(h, w2, preferred_element_type=jnp.float32) + b2
    return x + h                                                      # residual


def _vision_tower(x_aug, pos_v, vmask, aug_w, pre_g, pre_b, layers,
                  post_g, post_b, vproj, cls_sel):
    # one augmented matmul produces [CLS ; patch embeds]; positions folded in
    x = jnp.dot(x_aug, aug_w, preferred_element_type=jnp.float32) + pos_v
    x = _layer_norm(x, pre_g, pre_b)                  # CLIP pre-layernorm
    for lp in layers:
        x = _encoder_layer(x, lp, V_HEADS, V_HIDDEN // V_HEADS, vmask)
    pooled = jnp.dot(cls_sel, x, preferred_element_type=jnp.float32)  # CLS rows
    pooled = _layer_norm(pooled, post_g, post_b)
    return jnp.dot(pooled, vproj, preferred_element_type=jnp.float32)


def _text_tower(x_t, tmask, eos_sel, layers, fin_g, fin_b, tproj):
    x = x_t
    for lp in layers:
        x = _encoder_layer(x, lp, T_HEADS, T_HIDDEN // T_HEADS, tmask)
    x = _layer_norm(x, fin_g, fin_b)
    pooled = jnp.dot(eos_sel, x, preferred_element_type=jnp.float32)  # EOS rows
    return jnp.dot(pooled, tproj, preferred_element_type=jnp.float32)


# -------------------------------- kernel bodies --------------------------------
def _unpack_vision(it):
    x_aug = next(it)[...]
    pos_v = next(it)[...]
    vmask = next(it)[...]
    aug_w = next(it)[...]
    pre_g = next(it)[...]
    pre_b = next(it)[...]
    layer_refs = [next(it) for _ in range(N_LAYER_ARRS)]
    layers = [tuple(r[l] for r in layer_refs) for l in range(N_LAYERS)]
    post_g = next(it)[...]
    post_b = next(it)[...]
    vproj = next(it)[...]
    cls_sel = next(it)[...]
    return (x_aug, pos_v, vmask, aug_w, pre_g, pre_b, layers,
            post_g, post_b, vproj, cls_sel)


def _unpack_text(it):
    x_t = next(it)[...]
    tmask = next(it)[...]
    eos_sel = next(it)[...]
    layer_refs = [next(it) for _ in range(N_LAYER_ARRS)]
    layers = [tuple(r[l] for r in layer_refs) for l in range(N_LAYERS)]
    fin_g = next(it)[...]
    fin_b = next(it)[...]
    tproj = next(it)[...]
    return (x_t, tmask, eos_sel, layers, fin_g, fin_b, tproj)


def _clip_multimodal_kernel(strategy, *refs):
    o_ref = refs[-1]
    it = iter(refs[:-1])
    img = _vision_tower(*_unpack_vision(it))
    txt = _text_tower(*_unpack_text(it))
    if strategy == "add":
        o_ref[...] = img + txt
    elif strategy == "mul":
        o_ref[...] = img * txt
    else:                                  # 'avg' == mean over the stacked pair
        o_ref[...] = (img + txt) * 0.5


def _clip_image_kernel(*refs):
    o_ref = refs[-1]
    it = iter(refs[:-1])
    o_ref[...] = _vision_tower(*_unpack_vision(it))


# ---------------------------- host-side glue (layout) --------------------------
def _vision_inputs(params, x_image):
    bsz, chan, hh, ww = x_image.shape
    gh, gw = hh // PATCH, ww // PATCH
    npatch = gh * gw
    seq = npatch + 1
    cpp = chan * PATCH * PATCH

    # im2col (pure layout)
    patches = x_image.reshape(bsz, chan, gh, PATCH, gw, PATCH)
    patches = patches.transpose(0, 2, 4, 1, 3, 5).reshape(bsz, npatch, cpp)

    # Augment so [CLS ; patch_embeds] falls out of one in-kernel matmul:
    #   CLS row   = [0...0, 1],  patch row = [pixels, 0]
    #   aug_w     = [[patch_w^T], [class_emb]]
    cls_rows = jnp.zeros((bsz, 1, cpp + 1), jnp.float32).at[:, :, -1].set(1.0)
    patch_rows = jnp.concatenate(
        [patches, jnp.zeros((bsz, npatch, 1), jnp.float32)], axis=-1)
    x_aug = jnp.concatenate([cls_rows, patch_rows], axis=1).reshape(
        bsz * seq, cpp + 1)
    aug_w = jnp.concatenate(
        [params["patch_w"].reshape(V_HIDDEN, cpp).T,
         params["class_emb"][None, :]], axis=0)                     # (cpp+1, H)

    pos_v = jnp.tile(params["pos_emb_v"], (bsz, 1))                 # (B*S, H)

    # block-diagonal mask: tokens attend only within their own image
    bid = jnp.repeat(jnp.arange(bsz), seq)
    vmask = jnp.where(bid[:, None] == bid[None, :], 0.0, -1e9).astype(jnp.float32)

    # selector extracting each image's CLS row
    cls_sel = jax.nn.one_hot(jnp.arange(bsz) * seq, bsz * seq, dtype=jnp.float32)

    return ([x_aug, pos_v, vmask, aug_w,
             params["pre_ln_g"], params["pre_ln_b"]]
            + [params["v_layers"][k] for k in LAYER_KEYS]
            + [params["post_ln_g"], params["post_ln_b"],
               params["visual_proj"], cls_sel])


def _text_inputs(params, input_ids, attention_mask):
    bsz, seq = input_ids.shape
    # token-embedding gather + positional add (plain-JAX glue)
    x_t = (jnp.take(params["tok_emb"], input_ids, axis=0)
           + params["pos_emb_t"][None]).reshape(bsz * seq, T_HIDDEN)

    causal = jnp.where(jnp.tril(jnp.ones((seq, seq), bool)), 0.0, -1e9)
    pad = jnp.where(attention_mask[:, None, :] == 1, 0.0, -1e9)     # (B,1,S)
    per_batch = (causal[None] + pad).astype(jnp.float32)            # (B,S,S)

    bid = jnp.repeat(jnp.arange(bsz), seq)
    block = jnp.where(bid[:, None] == bid[None, :], 0.0, -1e9)      # (BS,BS)
    full = jnp.zeros((bsz * seq, bsz * seq), jnp.float32)
    for b in range(bsz):
        full = full.at[b * seq:(b + 1) * seq,
                       b * seq:(b + 1) * seq].set(per_batch[b])
    tmask = (full + block).astype(jnp.float32)                      # (BS,BS)

    eos_idx = jnp.sum(attention_mask, axis=-1).astype(jnp.int32) - 1
    eos_sel = jax.nn.one_hot(jnp.arange(bsz) * seq + eos_idx, bsz * seq,
                             dtype=jnp.float32)                     # (B, BS)

    return ([x_t, tmask, eos_sel]
            + [params["t_layers"][k] for k in LAYER_KEYS]
            + [params["final_ln_g"], params["final_ln_b"],
               params["text_proj"]])


def clip_encoder_forward(params, x_image, input_ids, attention_mask,
                         multimod=True, multimod_strategy="avg"):
    bsz = x_image.shape[0]
    v_in = _vision_inputs(params, x_image)
    cparams = pltpu.CompilerParams(vmem_limit_bytes=32 * 1024 * 1024)
    if not multimod:
        return pl.pallas_call(
            _clip_image_kernel,
            out_shape=jax.ShapeDtypeStruct((bsz, PROJ_DIM), jnp.float32),
            compiler_params=cparams,
        )(*v_in)
    t_in = _text_inputs(params, input_ids, attention_mask)
    return pl.pallas_call(
        functools.partial(_clip_multimodal_kernel, multimod_strategy),
        out_shape=jax.ShapeDtypeStruct((bsz, PROJ_DIM), jnp.float32),
        compiler_params=cparams,
    )(*(v_in + t_in))


# -------------------------------- param init ----------------------------------
def init_params(key):
    keys = iter(jax.random.split(key, 64))

    def nrm(shape, scale=0.02):
        return jax.random.normal(next(keys), shape, jnp.float32) * scale

    def layer_stack(hidden, mlp):
        return dict(
            ln1_g=jnp.ones((N_LAYERS, 1, hidden), jnp.float32),
            ln1_b=jnp.zeros((N_LAYERS, 1, hidden), jnp.float32),
            wqkv=nrm((N_LAYERS, hidden, 3 * hidden)),       # fused Q|K|V
            bqkv=jnp.zeros((N_LAYERS, 1, 3 * hidden), jnp.float32),
            wo=nrm((N_LAYERS, hidden, hidden)),
            bo=jnp.zeros((N_LAYERS, 1, hidden), jnp.float32),
            ln2_g=jnp.ones((N_LAYERS, 1, hidden), jnp.float32),
            ln2_b=jnp.zeros((N_LAYERS, 1, hidden), jnp.float32),
            w1=nrm((N_LAYERS, hidden, mlp)),
            b1=jnp.zeros((N_LAYERS, 1, mlp), jnp.float32),
            w2=nrm((N_LAYERS, mlp, hidden)),
            b2=jnp.zeros((N_LAYERS, 1, hidden), jnp.float32),
        )

    return dict(
        patch_w=nrm((V_HIDDEN, 3, PATCH, PATCH)),           # Conv2d weight, no bias
        class_emb=nrm((V_HIDDEN,)),
        pos_emb_v=nrm((V_SEQ, V_HIDDEN)),
        pre_ln_g=jnp.ones((1, V_HIDDEN), jnp.float32),
        pre_ln_b=jnp.zeros((1, V_HIDDEN), jnp.float32),
        v_layers=layer_stack(V_HIDDEN, V_MLP),
        post_ln_g=jnp.ones((1, V_HIDDEN), jnp.float32),
        post_ln_b=jnp.zeros((1, V_HIDDEN), jnp.float32),
        visual_proj=nrm((V_HIDDEN, PROJ_DIM)),
        tok_emb=nrm((VOCAB, T_HIDDEN)),
        pos_emb_t=nrm((SEQ_LEN, T_HIDDEN)),
        t_layers=layer_stack(T_HIDDEN, T_MLP),
        final_ln_g=jnp.ones((1, T_HIDDEN), jnp.float32),
        final_ln_b=jnp.zeros((1, T_HIDDEN), jnp.float32),
        text_proj=nrm((T_HIDDEN, PROJ_DIM)),
    )


# ----------------------------------- main --------------------------------------
if __name__ == "__main__":
    key = jax.random.PRNGKey(0)
    pkey, ikey, tkey = jax.random.split(key, 3)
    params = init_params(pkey)

    x_image = jax.random.normal(ikey, (B, 3, IMG, IMG), jnp.float32)
    input_ids = jax.random.randint(tkey, (B, SEQ_LEN), 1, VOCAB).astype(jnp.int32)
    attention_mask = jnp.array([[1, 1, 1, 1, 1, 1, 1, 1],
                                [1, 1, 1, 1, 1, 1, 0, 0]], jnp.int32)

    # multimodal path (vision + text towers + combine, one fused kernel)
    fwd = jax.jit(functools.partial(clip_encoder_forward,
                                    multimod=True, multimod_strategy="avg"))
    y = jax.block_until_ready(fwd(params, x_image, input_ids, attention_mask))
    assert y.shape == (B, PROJ_DIM) and y.dtype == jnp.float32

    # image-only path (multimod=False)
    fwd_img = jax.jit(functools.partial(clip_encoder_forward, multimod=False))
    y_img = jax.block_until_ready(
        fwd_img(params, x_image, input_ids, attention_mask))
    assert y_img.shape == (B, PROJ_DIM) and y_img.dtype == jnp.float32

    print("KERNEL_OK")
</pallas_src>

<mosaic_0001>
module attributes {stable_mosaic.version = 11 : i64} {
  func.func @_clip_multimodal_kernel(%arg0: memref<10x193xf32, #tpu.memory_space<vmem>>, %arg1: memref<10x32xf32, #tpu.memory_space<vmem>>, %arg2: memref<10x10xf32, #tpu.memory_space<vmem>>, %arg3: memref<193x32xf32, #tpu.memory_space<vmem>>, %arg4: memref<1x32xf32, #tpu.memory_space<vmem>>, %arg5: memref<1x32xf32, #tpu.memory_space<vmem>>, %arg6: memref<2x1x32xf32, #tpu.memory_space<vmem>>, %arg7: memref<2x1x32xf32, #tpu.memory_space<vmem>>, %arg8: memref<2x32x96xf32, #tpu.memory_space<vmem>>, %arg9: memref<2x1x96xf32, #tpu.memory_space<vmem>>, %arg10: memref<2x32x32xf32, #tpu.memory_space<vmem>>, %arg11: memref<2x1x32xf32, #tpu.memory_space<vmem>>, %arg12: memref<2x1x32xf32, #tpu.memory_space<vmem>>, %arg13: memref<2x1x32xf32, #tpu.memory_space<vmem>>, %arg14: memref<2x32x64xf32, #tpu.memory_space<vmem>>, %arg15: memref<2x1x64xf32, #tpu.memory_space<vmem>>, %arg16: memref<2x64x32xf32, #tpu.memory_space<vmem>>, %arg17: memref<2x1x32xf32, #tpu.memory_space<vmem>>, %arg18: memref<1x32xf32, #tpu.memory_space<vmem>>, %arg19: memref<1x32xf32, #tpu.memory_space<vmem>>, %arg20: memref<32x16xf32, #tpu.memory_space<vmem>>, %arg21: memref<2x10xf32, #tpu.memory_space<vmem>>, %arg22: memref<16x32xf32, #tpu.memory_space<vmem>>, %arg23: memref<16x16xf32, #tpu.memory_space<vmem>>, %arg24: memref<2x16xf32, #tpu.memory_space<vmem>>, %arg25: memref<2x1x32xf32, #tpu.memory_space<vmem>>, %arg26: memref<2x1x32xf32, #tpu.memory_space<vmem>>, %arg27: memref<2x32x96xf32, #tpu.memory_space<vmem>>, %arg28: memref<2x1x96xf32, #tpu.memory_space<vmem>>, %arg29: memref<2x32x32xf32, #tpu.memory_space<vmem>>, %arg30: memref<2x1x32xf32, #tpu.memory_space<vmem>>, %arg31: memref<2x1x32xf32, #tpu.memory_space<vmem>>, %arg32: memref<2x1x32xf32, #tpu.memory_space<vmem>>, %arg33: memref<2x32x64xf32, #tpu.memory_space<vmem>>, %arg34: memref<2x1x64xf32, #tpu.memory_space<vmem>>, %arg35: memref<2x64x32xf32, #tpu.memory_space<vmem>>, %arg36: memref<2x1x32xf32, #tpu.memory_space<vmem>>, %arg37: memref<1x32xf32, #tpu.memory_space<vmem>>, %arg38: memref<1x32xf32, #tpu.memory_space<vmem>>, %arg39: memref<32x16xf32, #tpu.memory_space<vmem>>, %arg40: memref<2x16xf32, #tpu.memory_space<vmem>>) attributes {dimension_semantics = [], scalar_prefetch = 0 : i64, scratch_operands = 0 : i64, tpu.core_type = #tpu.core_type<tc>} {
    %c0 = arith.constant 0 : index
    %c0_0 = arith.constant 0 : index
    %0 = vector.load %arg0[%c0, %c0_0] : memref<10x193xf32, #tpu.memory_space<vmem>>, vector<10x193xf32>
    %c0_1 = arith.constant 0 : index
    %c0_2 = arith.constant 0 : index
    %1 = vector.load %arg1[%c0_1, %c0_2] : memref<10x32xf32, #tpu.memory_space<vmem>>, vector<10x32xf32>
    %c0_3 = arith.constant 0 : index
    %c0_4 = arith.constant 0 : index
    %2 = vector.load %arg2[%c0_3, %c0_4] : memref<10x10xf32, #tpu.memory_space<vmem>>, vector<10x10xf32>
    %c0_5 = arith.constant 0 : index
    %c0_6 = arith.constant 0 : index
    %3 = vector.load %arg3[%c0_5, %c0_6] : memref<193x32xf32, #tpu.memory_space<vmem>>, vector<193x32xf32>
    %c0_7 = arith.constant 0 : index
    %c0_8 = arith.constant 0 : index
    %4 = vector.load %arg4[%c0_7, %c0_8] : memref<1x32xf32, #tpu.memory_space<vmem>>, vector<1x32xf32>
    %c0_9 = arith.constant 0 : index
    %c0_10 = arith.constant 0 : index
    %5 = vector.load %arg5[%c0_9, %c0_10] : memref<1x32xf32, #tpu.memory_space<vmem>>, vector<1x32xf32>
    %c0_11 = arith.constant 0 : index
    %c0_12 = arith.constant 0 : index
    %c0_13 = arith.constant 0 : index
    %6 = vector.load %arg6[%c0_11, %c0_12, %c0_13] : memref<2x1x32xf32, #tpu.memory_space<vmem>>, vector<1x1x32xf32>
    %7 = vector.shape_cast %6 : vector<1x1x32xf32> to vector<1x32xf32>
    %c0_14 = arith.constant 0 : index
    %c0_15 = arith.constant 0 : index
    %c0_16 = arith.constant 0 : index
    %8 = vector.load %arg7[%c0_14, %c0_15, %c0_16] : memref<2x1x32xf32, #tpu.memory_space<vmem>>, vector<1x1x32xf32>
    %9 = vector.shape_cast %8 : vector<1x1x32xf32> to vector<1x32xf32>
    %c0_17 = arith.constant 0 : index
    %c0_18 = arith.constant 0 : index
    %c0_19 = arith.constant 0 : index
    %10 = vector.load %arg8[%c0_17, %c0_18, %c0_19] : memref<2x32x96xf32, #tpu.memory_space<vmem>>, vector<1x32x96xf32>
    %11 = vector.shape_cast %10 : vector<1x32x96xf32> to vector<32x96xf32>
    %c0_20 = arith.constant 0 : index
    %c0_21 = arith.constant 0 : index
    %c0_22 = arith.constant 0 : index
    %12 = vector.load %arg9[%c0_20, %c0_21, %c0_22] : memref<2x1x96xf32, #tpu.memory_space<vmem>>, vector<1x1x96xf32>
    %13 = vector.shape_cast %12 : vector<1x1x96xf32> to vector<1x96xf32>
    %c0_23 = arith.constant 0 : index
    %c0_24 = arith.constant 0 : index
    %c0_25 = arith.constant 0 : index
    %14 = vector.load %arg10[%c0_23, %c0_24, %c0_25] : memref<2x32x32xf32, #tpu.memory_space<vmem>>, vector<1x32x32xf32>
    %15 = vector.shape_cast %14 : vector<1x32x32xf32> to vector<32x32xf32>
    %c0_26 = arith.constant 0 : index
    %c0_27 = arith.constant 0 : index
    %c0_28 = arith.constant 0 : index
    %16 = vector.load %arg11[%c0_26, %c0_27, %c0_28] : memref<2x1x32xf32, #tpu.memory_space<vmem>>, vector<1x1x32xf32>
    %17 = vector.shape_cast %16 : vector<1x1x32xf32> to vector<1x32xf32>
    %c0_29 = arith.constant 0 : index
    %c0_30 = arith.constant 0 : index
    %c0_31 = arith.constant 0 : index
    %18 = vector.load %arg12[%c0_29, %c0_30, %c0_31] : memref<2x1x32xf32, #tpu.memory_space<vmem>>, vector<1x1x32xf32>
    %19 = vector.shape_cast %18 : vector<1x1x32xf32> to vector<1x32xf32>
    %c0_32 = arith.constant 0 : index
    %c0_33 = arith.constant 0 : index
    %c0_34 = arith.constant 0 : index
    %20 = vector.load %arg13[%c0_32, %c0_33, %c0_34] : memref<2x1x32xf32, #tpu.memory_space<vmem>>, vector<1x1x32xf32>
    %21 = vector.shape_cast %20 : vector<1x1x32xf32> to vector<1x32xf32>
    %c0_35 = arith.constant 0 : index
    %c0_36 = arith.constant 0 : index
    %c0_37 = arith.constant 0 : index
    %22 = vector.load %arg14[%c0_35, %c0_36, %c0_37] : memref<2x32x64xf32, #tpu.memory_space<vmem>>, vector<1x32x64xf32>
    %23 = vector.shape_cast %22 : vector<1x32x64xf32> to vector<32x64xf32>
    %c0_38 = arith.constant 0 : index
    %c0_39 = arith.constant 0 : index
    %c0_40 = arith.constant 0 : index
    %24 = vector.load %arg15[%c0_38, %c0_39, %c0_40] : memref<2x1x64xf32, #tpu.memory_space<vmem>>, vector<1x1x64xf32>
    %25 = vector.shape_cast %24 : vector<1x1x64xf32> to vector<1x64xf32>
    %c0_41 = arith.constant 0 : index
    %c0_42 = arith.constant 0 : index
    %c0_43 = arith.constant 0 : index
    %26 = vector.load %arg16[%c0_41, %c0_42, %c0_43] : memref<2x64x32xf32, #tpu.memory_space<vmem>>, vector<1x64x32xf32>
    %27 = vector.shape_cast %26 : vector<1x64x32xf32> to vector<64x32xf32>
    %c0_44 = arith.constant 0 : index
    %c0_45 = arith.constant 0 : index
    %c0_46 = arith.constant 0 : index
    %28 = vector.load %arg17[%c0_44, %c0_45, %c0_46] : memref<2x1x32xf32, #tpu.memory_space<vmem>>, vector<1x1x32xf32>
    %29 = vector.shape_cast %28 : vector<1x1x32xf32> to vector<1x32xf32>
    %c1 = arith.constant 1 : index
    %c0_47 = arith.constant 0 : index
    %c0_48 = arith.constant 0 : index
    %30 = vector.load %arg6[%c1, %c0_47, %c0_48] : memref<2x1x32xf32, #tpu.memory_space<vmem>>, vector<1x1x32xf32>
    %31 = vector.shape_cast %30 : vector<1x1x32xf32> to vector<1x32xf32>
    %c1_49 = arith.constant 1 : index
    %c0_50 = arith.constant 0 : index
    %c0_51 = arith.constant 0 : index
    %32 = vector.load %arg7[%c1_49, %c0_50, %c0_51] : memref<2x1x32xf32, #tpu.memory_space<vmem>>, vector<1x1x32xf32>
    %33 = vector.shape_cast %32 : vector<1x1x32xf32> to vector<1x32xf32>
    %c1_52 = arith.constant 1 : index
    %c0_53 = arith.constant 0 : index
    %c0_54 = arith.constant 0 : index
    %34 = vector.load %arg8[%c1_52, %c0_53, %c0_54] : memref<2x32x96xf32, #tpu.memory_space<vmem>>, vector<1x32x96xf32>
    %35 = vector.shape_cast %34 : vector<1x32x96xf32> to vector<32x96xf32>
    %c1_55 = arith.constant 1 : index
    %c0_56 = arith.constant 0 : index
    %c0_57 = arith.constant 0 : index
    %36 = vector.load %arg9[%c1_55, %c0_56, %c0_57] : memref<2x1x96xf32, #tpu.memory_space<vmem>>, vector<1x1x96xf32>
    %37 = vector.shape_cast %36 : vector<1x1x96xf32> to vector<1x96xf32>
    %c1_58 = arith.constant 1 : index
    %c0_59 = arith.constant 0 : index
    %c0_60 = arith.constant 0 : index
    %38 = vector.load %arg10[%c1_58, %c0_59, %c0_60] : memref<2x32x32xf32, #tpu.memory_space<vmem>>, vector<1x32x32xf32>
    %39 = vector.shape_cast %38 : vector<1x32x32xf32> to vector<32x32xf32>
    %c1_61 = arith.constant 1 : index
    %c0_62 = arith.constant 0 : index
    %c0_63 = arith.constant 0 : index
    %40 = vector.load %arg11[%c1_61, %c0_62, %c0_63] : memref<2x1x32xf32, #tpu.memory_space<vmem>>, vector<1x1x32xf32>
    %41 = vector.shape_cast %40 : vector<1x1x32xf32> to vector<1x32xf32>
    %c1_64 = arith.constant 1 : index
    %c0_65 = arith.constant 0 : index
    %c0_66 = arith.constant 0 : index
    %42 = vector.load %arg12[%c1_64, %c0_65, %c0_66] : memref<2x1x32xf32, #tpu.memory_space<vmem>>, vector<1x1x32xf32>
    %43 = vector.shape_cast %42 : vector<1x1x32xf32> to vector<1x32xf32>
    %c1_67 = arith.constant 1 : index
    %c0_68 = arith.constant 0 : index
    %c0_69 = arith.constant 0 : index
    %44 = vector.load %arg13[%c1_67, %c0_68, %c0_69] : memref<2x1x32xf32, #tpu.memory_space<vmem>>, vector<1x1x32xf32>
    %45 = vector.shape_cast %44 : vector<1x1x32xf32> to vector<1x32xf32>
    %c1_70 = arith.constant 1 : index
    %c0_71 = arith.constant 0 : index
    %c0_72 = arith.constant 0 : index
    %46 = vector.load %arg14[%c1_70, %c0_71, %c0_72] : memref<2x32x64xf32, #tpu.memory_space<vmem>>, vector<1x32x64xf32>
    %47 = vector.shape_cast %46 : vector<1x32x64xf32> to vector<32x64xf32>
    %c1_73 = arith.constant 1 : index
    %c0_74 = arith.constant 0 : index
    %c0_75 = arith.constant 0 : index
    %48 = vector.load %arg15[%c1_73, %c0_74, %c0_75] : memref<2x1x64xf32, #tpu.memory_space<vmem>>, vector<1x1x64xf32>
    %49 = vector.shape_cast %48 : vector<1x1x64xf32> to vector<1x64xf32>
    %c1_76 = arith.constant 1 : index
    %c0_77 = arith.constant 0 : index
    %c0_78 = arith.constant 0 : index
    %50 = vector.load %arg16[%c1_76, %c0_77, %c0_78] : memref<2x64x32xf32, #tpu.memory_space<vmem>>, vector<1x64x32xf32>
    %51 = vector.shape_cast %50 : vector<1x64x32xf32> to vector<64x32xf32>
    %c1_79 = arith.constant 1 : index
    %c0_80 = arith.constant 0 : index
    %c0_81 = arith.constant 0 : index
    %52 = vector.load %arg17[%c1_79, %c0_80, %c0_81] : memref<2x1x32xf32, #tpu.memory_space<vmem>>, vector<1x1x32xf32>
    %53 = vector.shape_cast %52 : vector<1x1x32xf32> to vector<1x32xf32>
    %c0_82 = arith.constant 0 : index
    %c0_83 = arith.constant 0 : index
    %54 = vector.load %arg18[%c0_82, %c0_83] : memref<1x32xf32, #tpu.memory_space<vmem>>, vector<1x32xf32>
    %c0_84 = arith.constant 0 : index
    %c0_85 = arith.constant 0 : index
    %55 = vector.load %arg19[%c0_84, %c0_85] : memref<1x32xf32, #tpu.memory_space<vmem>>, vector<1x32xf32>
    %c0_86 = arith.constant 0 : index
    %c0_87 = arith.constant 0 : index
    %56 = vector.load %arg20[%c0_86, %c0_87] : memref<32x16xf32, #tpu.memory_space<vmem>>, vector<32x16xf32>
    %c0_88 = arith.constant 0 : index
    %c0_89 = arith.constant 0 : index
    %57 = vector.load %arg21[%c0_88, %c0_89] : memref<2x10xf32, #tpu.memory_space<vmem>>, vector<2x10xf32>
    %cst = arith.constant dense<0.000000e+00> : vector<10x32xf32>
    %58 = tpu.matmul %0, %3, %cst {dimension_numbers = #tpu.dot_dimension_numbers<[1], [0], [0], [1], [0, 0, 1, 1], [], []>} : vector<10x193xf32>, vector<193x32xf32>, vector<10x32xf32> -> vector<10x32xf32>
    %59 = arith.addf %58, %1 : vector<10x32xf32>
    %cst_90 = arith.constant dense<0.000000e+00> : vector<10xf32>
    %60 = vector.multi_reduction <add>, %59, %cst_90 [1] : vector<10x32xf32> to vector<10xf32>
    %61 = vector.shape_cast %60 : vector<10xf32> to vector<10x1xf32>
    %cst_91 = arith.constant 3.200000e+01 : f32
    %62 = vector.broadcast %cst_91 : f32 to vector<10x1xf32>
    %63 = arith.divf %61, %62 : vector<10x1xf32>
    %64 = vector.broadcast %63 : vector<10x1xf32> to vector<10x32xf32>
    %65 = arith.subf %59, %64 : vector<10x32xf32>
    %66 = arith.mulf %65, %65 : vector<10x32xf32>
    %cst_92 = arith.constant dense<0.000000e+00> : vector<10xf32>
    %67 = vector.multi_reduction <add>, %66, %cst_92 [1] : vector<10x32xf32> to vector<10xf32>
    %68 = vector.shape_cast %67 : vector<10xf32> to vector<10x1xf32>
    %cst_93 = arith.constant 3.200000e+01 : f32
    %69 = vector.broadcast %cst_93 : f32 to vector<10x1xf32>
    %70 = arith.divf %68, %69 : vector<10x1xf32>
    %71 = vector.broadcast %63 : vector<10x1xf32> to vector<10x32xf32>
    %72 = arith.subf %59, %71 : vector<10x32xf32>
    %cst_94 = arith.constant 9.99999974E-6 : f32
    %73 = vector.broadcast %cst_94 : f32 to vector<10x1xf32>
    %74 = arith.addf %70, %73 : vector<10x1xf32>
    %75 = math.rsqrt %74 : vector<10x1xf32>
    %76 = vector.broadcast %75 : vector<10x1xf32> to vector<10x32xf32>
    %77 = arith.mulf %72, %76 : vector<10x32xf32>
    %78 = vector.broadcast %4 : vector<1x32xf32> to vector<10x32xf32>
    %79 = arith.mulf %77, %78 : vector<10x32xf32>
    %80 = vector.broadcast %5 : vector<1x32xf32> to vector<10x32xf32>
    %81 = arith.addf %79, %80 : vector<10x32xf32>
    %cst_95 = arith.constant dense<0.000000e+00> : vector<10xf32>
    %82 = vector.multi_reduction <add>, %81, %cst_95 [1] : vector<10x32xf32> to vector<10xf32>
    %83 = vector.shape_cast %82 : vector<10xf32> to vector<10x1xf32>
    %cst_96 = arith.constant 3.200000e+01 : f32
    %84 = vector.broadcast %cst_96 : f32 to vector<10x1xf32>
    %85 = arith.divf %83, %84 : vector<10x1xf32>
    %86 = vector.broadcast %85 : vector<10x1xf32> to vector<10x32xf32>
    %87 = arith.subf %81, %86 : vector<10x32xf32>
    %88 = arith.mulf %87, %87 : vector<10x32xf32>
    %cst_97 = arith.constant dense<0.000000e+00> : vector<10xf32>
    %89 = vector.multi_reduction <add>, %88, %cst_97 [1] : vector<10x32xf32> to vector<10xf32>
    %90 = vector.shape_cast %89 : vector<10xf32> to vector<10x1xf32>
    %cst_98 = arith.constant 3.200000e+01 : f32
    %91 = vector.broadcast %cst_98 : f32 to vector<10x1xf32>
    %92 = arith.divf %90, %91 : vector<10x1xf32>
    %93 = vector.broadcast %85 : vector<10x1xf32> to vector<10x32xf32>
    %94 = arith.subf %81, %93 : vector<10x32xf32>
    %cst_99 = arith.constant 9.99999974E-6 : f32
    %95 = vector.broadcast %cst_99 : f32 to vector<10x1xf32>
    %96 = arith.addf %92, %95 : vector<10x1xf32>
    %97 = math.rsqrt %96 : vector<10x1xf32>
    %98 = vector.broadcast %97 : vector<10x1xf32> to vector<10x32xf32>
    %99 = arith.mulf %94, %98 : vector<10x32xf32>
    %100 = vector.broadcast %7 : vector<1x32xf32> to vector<10x32xf32>
    %101 = arith.mulf %99, %100 : vector<10x32xf32>
    %102 = vector.broadcast %9 : vector<1x32xf32> to vector<10x32xf32>
    %103 = arith.addf %101, %102 : vector<10x32xf32>
    %cst_100 = arith.constant dense<0.000000e+00> : vector<10x96xf32>
    %104 = tpu.matmul %103, %11, %cst_100 {dimension_numbers = #tpu.dot_dimension_numbers<[1], [0], [0], [1], [0, 0, 1, 1], [], []>} : vector<10x32xf32>, vector<32x96xf32>, vector<10x96xf32> -> vector<10x96xf32>
    %105 = vector.broadcast %13 : vector<1x96xf32> to vector<10x96xf32>
    %106 = arith.addf %104, %105 : vector<10x96xf32>
    %107 = vector.extract_strided_slice %106 {offsets = [0, 0], sizes = [10, 16], strides = [1, 1]} : vector<10x96xf32> to vector<10x16xf32>
    %108 = vector.extract_strided_slice %106 {offsets = [0, 32], sizes = [10, 16], strides = [1, 1]} : vector<10x96xf32> to vector<10x16xf32>
    %109 = vector.extract_strided_slice %106 {offsets = [0, 64], sizes = [10, 16], strides = [1, 1]} : vector<10x96xf32> to vector<10x16xf32>
    %cst_101 = arith.constant dense<0.000000e+00> : vector<10x10xf32>
    %110 = tpu.matmul %107, %108, %cst_101 {dimension_numbers = #tpu.dot_dimension_numbers<[1], [1], [0], [0], [0, 0, 1, 0], [], []>} : vector<10x16xf32>, vector<10x16xf32>, vector<10x10xf32> -> vector<10x10xf32>
    %cst_102 = arith.constant 2.500000e-01 : f32
    %111 = vector.broadcast %cst_102 : f32 to vector<10x10xf32>
    %112 = arith.mulf %110, %111 : vector<10x10xf32>
    %113 = arith.addf %112, %2 : vector<10x10xf32>
    %cst_103 = arith.constant dense<0xFF800000> : vector<10xf32>
    %114 = vector.multi_reduction <maximumf>, %113, %cst_103 [1] : vector<10x10xf32> to vector<10xf32>
    %115 = vector.shape_cast %114 : vector<10xf32> to vector<10x1xf32>
    %116 = vector.broadcast %115 : vector<10x1xf32> to vector<10x10xf32>
    %117 = arith.subf %113, %116 : vector<10x10xf32>
    %118 = math.exp %117 : vector<10x10xf32>
    %cst_104 = arith.constant dense<0.000000e+00> : vector<10xf32>
    %119 = vector.multi_reduction <add>, %118, %cst_104 [1] : vector<10x10xf32> to vector<10xf32>
    %120 = vector.shape_cast %119 : vector<10xf32> to vector<10x1xf32>
    %121 = tpu.reciprocal %120 {approx = true} : vector<10x1xf32> -> vector<10x1xf32>
    %122 = vector.broadcast %121 : vector<10x1xf32> to vector<10x10xf32>
    %123 = arith.mulf %118, %122 : vector<10x10xf32>
    %cst_105 = arith.constant dense<0.000000e+00> : vector<10x16xf32>
    %124 = tpu.matmul %123, %109, %cst_105 {dimension_numbers = #tpu.dot_dimension_numbers<[1], [0], [0], [1], [0, 0, 1, 1], [], []>} : vector<10x10xf32>, vector<10x16xf32>, vector<10x16xf32> -> vector<10x16xf32>
    %125 = vector.extract_strided_slice %15 {offsets = [0, 0], sizes = [16, 32], strides = [1, 1]} : vector<32x32xf32> to vector<16x32xf32>
    %cst_106 = arith.constant dense<0.000000e+00> : vector<10x32xf32>
    %126 = tpu.matmul %124, %125, %cst_106 {dimension_numbers = #tpu.dot_dimension_numbers<[1], [0], [0], [1], [0, 0, 1, 1], [], []>} : vector<10x16xf32>, vector<16x32xf32>, vector<10x32xf32> -> vector<10x32xf32>
    %127 = vector.extract_strided_slice %106 {offsets = [0, 16], sizes = [10, 16], strides = [1, 1]} : vector<10x96xf32> to vector<10x16xf32>
    %128 = vector.extract_strided_slice %106 {offsets = [0, 48], sizes = [10, 16], strides = [1, 1]} : vector<10x96xf32> to vector<10x16xf32>
    %129 = vector.extract_strided_slice %106 {offsets = [0, 80], sizes = [10, 16], strides = [1, 1]} : vector<10x96xf32> to vector<10x16xf32>
    %cst_107 = arith.constant dense<0.000000e+00> : vector<10x10xf32>
    %130 = tpu.matmul %127, %128, %cst_107 {dimension_numbers = #tpu.dot_dimension_numbers<[1], [1], [0], [0], [0, 0, 1, 0], [], []>} : vector<10x16xf32>, vector<10x16xf32>, vector<10x10xf32> -> vector<10x10xf32>
    %cst_108 = arith.constant 2.500000e-01 : f32
    %131 = vector.broadcast %cst_108 : f32 to vector<10x10xf32>
    %132 = arith.mulf %130, %131 : vector<10x10xf32>
    %133 = arith.addf %132, %2 : vector<10x10xf32>
    %cst_109 = arith.constant dense<0xFF800000> : vector<10xf32>
    %134 = vector.multi_reduction <maximumf>, %133, %cst_109 [1] : vector<10x10xf32> to vector<10xf32>
    %135 = vector.shape_cast %134 : vector<10xf32> to vector<10x1xf32>
    %136 = vector.broadcast %135 : vector<10x1xf32> to vector<10x10xf32>
    %137 = arith.subf %133, %136 : vector<10x10xf32>
    %138 = math.exp %137 : vector<10x10xf32>
    %cst_110 = arith.constant dense<0.000000e+00> : vector<10xf32>
    %139 = vector.multi_reduction <add>, %138, %cst_110 [1] : vector<10x10xf32> to vector<10xf32>
    %140 = vector.shape_cast %139 : vector<10xf32> to vector<10x1xf32>
    %141 = tpu.reciprocal %140 {approx = true} : vector<10x1xf32> -> vector<10x1xf32>
    %142 = vector.broadcast %141 : vector<10x1xf32> to vector<10x10xf32>
    %143 = arith.mulf %138, %142 : vector<10x10xf32>
    %cst_111 = arith.constant dense<0.000000e+00> : vector<10x16xf32>
    %144 = tpu.matmul %143, %129, %cst_111 {dimension_numbers = #tpu.dot_dimension_numbers<[1], [0], [0], [1], [0, 0, 1, 1], [], []>} : vector<10x10xf32>, vector<10x16xf32>, vector<10x16xf32> -> vector<10x16xf32>
    %145 = vector.extract_strided_slice %15 {offsets = [16, 0], sizes = [16, 32], strides = [1, 1]} : vector<32x32xf32> to vector<16x32xf32>
    %cst_112 = arith.constant dense<0.000000e+00> : vector<10x32xf32>
    %146 = tpu.matmul %144, %145, %cst_112 {dimension_numbers = #tpu.dot_dimension_numbers<[1], [0], [0], [1], [0, 0, 1, 1], [], []>} : vector<10x16xf32>, vector<16x32xf32>, vector<10x32xf32> -> vector<10x32xf32>
    %147 = arith.addf %126, %146 : vector<10x32xf32>
    %148 = vector.broadcast %17 : vector<1x32xf32> to vector<10x32xf32>
    %149 = arith.addf %147, %148 : vector<10x32xf32>
    %150 = arith.addf %81, %149 : vector<10x32xf32>
    %cst_113 = arith.constant dense<0.000000e+00> : vector<10xf32>
    %151 = vector.multi_reduction <add>, %150, %cst_113 [1] : vector<10x32xf32> to vector<10xf32>
    %152 = vector.shape_cast %151 : vector<10xf32> to vector<10x1xf32>
    %cst_114 = arith.constant 3.200000e+01 : f32
    %153 = vector.broadcast %cst_114 : f32 to vector<10x1xf32>
    %154 = arith.divf %152, %153 : vector<10x1xf32>
    %155 = vector.broadcast %154 : vector<10x1xf32> to vector<10x32xf32>
    %156 = arith.subf %150, %155 : vector<10x32xf32>
    %157 = arith.mulf %156, %156 : vector<10x32xf32>
    %cst_115 = arith.constant dense<0.000000e+00> : vector<10xf32>
    %158 = vector.multi_reduction <add>, %157, %cst_115 [1] : vector<10x32xf32> to vector<10xf32>
    %159 = vector.shape_cast %158 : vector<10xf32> to vector<10x1xf32>
    %cst_116 = arith.constant 3.200000e+01 : f32
    %160 = vector.broadcast %cst_116 : f32 to vector<10x1xf32>
    %161 = arith.divf %159, %160 : vector<10x1xf32>
    %162 = vector.broadcast %154 : vector<10x1xf32> to vector<10x32xf32>
    %163 = arith.subf %150, %162 : vector<10x32xf32>
    %cst_117 = arith.constant 9.99999974E-6 : f32
    %164 = vector.broadcast %cst_117 : f32 to vector<10x1xf32>
    %165 = arith.addf %161, %164 : vector<10x1xf32>
    %166 = math.rsqrt %165 : vector<10x1xf32>
    %167 = vector.broadcast %166 : vector<10x1xf32> to vector<10x32xf32>
    %168 = arith.mulf %163, %167 : vector<10x32xf32>
    %169 = vector.broadcast %19 : vector<1x32xf32> to vector<10x32xf32>
    %170 = arith.mulf %168, %169 : vector<10x32xf32>
    %171 = vector.broadcast %21 : vector<1x32xf32> to vector<10x32xf32>
    %172 = arith.addf %170, %171 : vector<10x32xf32>
    %cst_118 = arith.constant dense<0.000000e+00> : vector<10x64xf32>
    %173 = tpu.matmul %172, %23, %cst_118 {dimension_numbers = #tpu.dot_dimension_numbers<[1], [0], [0], [1], [0, 0, 1, 1], [], []>} : vector<10x32xf32>, vector<32x64xf32>, vector<10x64xf32> -> vector<10x64xf32>
    %174 = vector.broadcast %25 : vector<1x64xf32> to vector<10x64xf32>
    %175 = arith.addf %173, %174 : vector<10x64xf32>
    %cst_119 = arith.constant 1.702000e+00 : f32
    %176 = vector.broadcast %cst_119 : f32 to vector<10x64xf32>
    %177 = arith.mulf %176, %175 : vector<10x64xf32>
    %178 = arith.negf %177 : vector<10x64xf32>
    %179 = math.exp %178 : vector<10x64xf32>
    %cst_120 = arith.constant 1.000000e+00 : f32
    %180 = vector.broadcast %cst_120 : f32 to vector<10x64xf32>
    %181 = arith.addf %180, %179 : vector<10x64xf32>
    %182 = arith.divf %180, %181 : vector<10x64xf32>
    %183 = arith.mulf %175, %182 : vector<10x64xf32>
    %cst_121 = arith.constant dense<0.000000e+00> : vector<10x32xf32>
    %184 = tpu.matmul %183, %27, %cst_121 {dimension_numbers = #tpu.dot_dimension_numbers<[1], [0], [0], [1], [0, 0, 1, 1], [], []>} : vector<10x64xf32>, vector<64x32xf32>, vector<10x32xf32> -> vector<10x32xf32>
    %185 = vector.broadcast %29 : vector<1x32xf32> to vector<10x32xf32>
    %186 = arith.addf %184, %185 : vector<10x32xf32>
    %187 = arith.addf %150, %186 : vector<10x32xf32>
    %cst_122 = arith.constant dense<0.000000e+00> : vector<10xf32>
    %188 = vector.multi_reduction <add>, %187, %cst_122 [1] : vector<10x32xf32> to vector<10xf32>
    %189 = vector.shape_cast %188 : vector<10xf32> to vector<10x1xf32>
    %cst_123 = arith.constant 3.200000e+01 : f32
    %190 = vector.broadcast %cst_123 : f32 to vector<10x1xf32>
    %191 = arith.divf %189, %190 : vector<10x1xf32>
    %192 = vector.broadcast %191 : vector<10x1xf32> to vector<10x32xf32>
    %193 = arith.subf %187, %192 : vector<10x32xf32>
    %194 = arith.mulf %193, %193 : vector<10x32xf32>
    %cst_124 = arith.constant dense<0.000000e+00> : vector<10xf32>
    %195 = vector.multi_reduction <add>, %194, %cst_124 [1] : vector<10x32xf32> to vector<10xf32>
    %196 = vector.shape_cast %195 : vector<10xf32> to vector<10x1xf32>
    %cst_125 = arith.constant 3.200000e+01 : f32
    %197 = vector.broadcast %cst_125 : f32 to vector<10x1xf32>
    %198 = arith.divf %196, %197 : vector<10x1xf32>
    %199 = vector.broadcast %191 : vector<10x1xf32> to vector<10x32xf32>
    %200 = arith.subf %187, %199 : vector<10x32xf32>
    %cst_126 = arith.constant 9.99999974E-6 : f32
    %201 = vector.broadcast %cst_126 : f32 to vector<10x1xf32>
    %202 = arith.addf %198, %201 : vector<10x1xf32>
    %203 = math.rsqrt %202 : vector<10x1xf32>
    %204 = vector.broadcast %203 : vector<10x1xf32> to vector<10x32xf32>
    %205 = arith.mulf %200, %204 : vector<10x32xf32>
    %206 = vector.broadcast %31 : vector<1x32xf32> to vector<10x32xf32>
    %207 = arith.mulf %205, %206 : vector<10x32xf32>
    %208 = vector.broadcast %33 : vector<1x32xf32> to vector<10x32xf32>
    %209 = arith.addf %207, %208 : vector<10x32xf32>
    %cst_127 = arith.constant dense<0.000000e+00> : vector<10x96xf32>
    %210 = tpu.matmul %209, %35, %cst_127 {dimension_numbers = #tpu.dot_dimension_numbers<[1], [0], [0], [1], [0, 0, 1, 1], [], []>} : vector<10x32xf32>, vector<32x96xf32>, vector<10x96xf32> -> vector<10x96xf32>
    %211 = vector.broadcast %37 : vector<1x96xf32> to vector<10x96xf32>
    %212 = arith.addf %210, %211 : vector<10x96xf32>
    %213 = vector.extract_strided_slice %212 {offsets = [0, 0], sizes = [10, 16], strides = [1, 1]} : vector<10x96xf32> to vector<10x16xf32>
    %214 = vector.extract_strided_slice %212 {offsets = [0, 32], sizes = [10, 16], strides = [1, 1]} : vector<10x96xf32> to vector<10x16xf32>
    %215 = vector.extract_strided_slice %212 {offsets = [0, 64], sizes = [10, 16], strides = [1, 1]} : vector<10x96xf32> to vector<10x16xf32>
    %cst_128 = arith.constant dense<0.000000e+00> : vector<10x10xf32>
    %216 = tpu.matmul %213, %214, %cst_128 {dimension_numbers = #tpu.dot_dimension_numbers<[1], [1], [0], [0], [0, 0, 1, 0], [], []>} : vector<10x16xf32>, vector<10x16xf32>, vector<10x10xf32> -> vector<10x10xf32>
    %cst_129 = arith.constant 2.500000e-01 : f32
    %217 = vector.broadcast %cst_129 : f32 to vector<10x10xf32>
    %218 = arith.mulf %216, %217 : vector<10x10xf32>
    %219 = arith.addf %218, %2 : vector<10x10xf32>
    %cst_130 = arith.constant dense<0xFF800000> : vector<10xf32>
    %220 = vector.multi_reduction <maximumf>, %219, %cst_130 [1] : vector<10x10xf32> to vector<10xf32>
    %221 = vector.shape_cast %220 : vector<10xf32> to vector<10x1xf32>
    %222 = vector.broadcast %221 : vector<10x1xf32> to vector<10x10xf32>
    %223 = arith.subf %219, %222 : vector<10x10xf32>
    %224 = math.exp %223 : vector<10x10xf32>
    %cst_131 = arith.constant dense<0.000000e+00> : vector<10xf32>
    %225 = vector.multi_reduction <add>, %224, %cst_131 [1] : vector<10x10xf32> to vector<10xf32>
    %226 = vector.shape_cast %225 : vector<10xf32> to vector<10x1xf32>
    %227 = tpu.reciprocal %226 {approx = true} : vector<10x1xf32> -> vector<10x1xf32>
    %228 = vector.broadcast %227 : vector<10x1xf32> to vector<10x10xf32>
    %229 = arith.mulf %224, %228 : vector<10x10xf32>
    %cst_132 = arith.constant dense<0.000000e+00> : vector<10x16xf32>
    %230 = tpu.matmul %229, %215, %cst_132 {dimension_numbers = #tpu.dot_dimension_numbers<[1], [0], [0], [1], [0, 0, 1, 1], [], []>} : vector<10x10xf32>, vector<10x16xf32>, vector<10x16xf32> -> vector<10x16xf32>
    %231 = vector.extract_strided_slice %39 {offsets = [0, 0], sizes = [16, 32], strides = [1, 1]} : vector<32x32xf32> to vector<16x32xf32>
    %cst_133 = arith.constant dense<0.000000e+00> : vector<10x32xf32>
    %232 = tpu.matmul %230, %231, %cst_133 {dimension_numbers = #tpu.dot_dimension_numbers<[1], [0], [0], [1], [0, 0, 1, 1], [], []>} : vector<10x16xf32>, vector<16x32xf32>, vector<10x32xf32> -> vector<10x32xf32>
    %233 = vector.extract_strided_slice %212 {offsets = [0, 16], sizes = [10, 16], strides = [1, 1]} : vector<10x96xf32> to vector<10x16xf32>
    %234 = vector.extract_strided_slice %212 {offsets = [0, 48], sizes = [10, 16], strides = [1, 1]} : vector<10x96xf32> to vector<10x16xf32>
    %235 = vector.extract_strided_slice %212 {offsets = [0, 80], sizes = [10, 16], strides = [1, 1]} : vector<10x96xf32> to vector<10x16xf32>
    %cst_134 = arith.constant dense<0.000000e+00> : vector<10x10xf32>
    %236 = tpu.matmul %233, %234, %cst_134 {dimension_numbers = #tpu.dot_dimension_numbers<[1], [1], [0], [0], [0, 0, 1, 0], [], []>} : vector<10x16xf32>, vector<10x16xf32>, vector<10x10xf32> -> vector<10x10xf32>
    %cst_135 = arith.constant 2.500000e-01 : f32
    %237 = vector.broadcast %cst_135 : f32 to vector<10x10xf32>
    %238 = arith.mulf %236, %237 : vector<10x10xf32>
    %239 = arith.addf %238, %2 : vector<10x10xf32>
    %cst_136 = arith.constant dense<0xFF800000> : vector<10xf32>
    %240 = vector.multi_reduction <maximumf>, %239, %cst_136 [1] : vector<10x10xf32> to vector<10xf32>
    %241 = vector.shape_cast %240 : vector<10xf32> to vector<10x1xf32>
    %242 = vector.broadcast %241 : vector<10x1xf32> to vector<10x10xf32>
    %243 = arith.subf %239, %242 : vector<10x10xf32>
    %244 = math.exp %243 : vector<10x10xf32>
    %cst_137 = arith.constant dense<0.000000e+00> : vector<10xf32>
    %245 = vector.multi_reduction <add>, %244, %cst_137 [1] : vector<10x10xf32> to vector<10xf32>
    %246 = vector.shape_cast %245 : vector<10xf32> to vector<10x1xf32>
    %247 = tpu.reciprocal %246 {approx = true} : vector<10x1xf32> -> vector<10x1xf32>
    %248 = vector.broadcast %247 : vector<10x1xf32> to vector<10x10xf32>
    %249 = arith.mulf %244, %248 : vector<10x10xf32>
    %cst_138 = arith.constant dense<0.000000e+00> : vector<10x16xf32>
    %250 = tpu.matmul %249, %235, %cst_138 {dimension_numbers = #tpu.dot_dimension_numbers<[1], [0], [0], [1], [0, 0, 1, 1], [], []>} : vector<10x10xf32>, vector<10x16xf32>, vector<10x16xf32> -> vector<10x16xf32>
    %251 = vector.extract_strided_slice %39 {offsets = [16, 0], sizes = [16, 32], strides = [1, 1]} : vector<32x32xf32> to vector<16x32xf32>
    %cst_139 = arith.constant dense<0.000000e+00> : vector<10x32xf32>
    %252 = tpu.matmul %250, %251, %cst_139 {dimension_numbers = #tpu.dot_dimension_numbers<[1], [0], [0], [1], [0, 0, 1, 1], [], []>} : vector<10x16xf32>, vector<16x32xf32>, vector<10x32xf32> -> vector<10x32xf32>
    %253 = arith.addf %232, %252 : vector<10x32xf32>
    %254 = vector.broadcast %41 : vector<1x32xf32> to vector<10x32xf32>
    %255 = arith.addf %253, %254 : vector<10x32xf32>
    %256 = arith.addf %187, %255 : vector<10x32xf32>
    %cst_140 = arith.constant dense<0.000000e+00> : vector<10xf32>
    %257 = vector.multi_reduction <add>, %256, %cst_140 [1] : vector<10x32xf32> to vector<10xf32>
    %258 = vector.shape_cast %257 : vector<10xf32> to vector<10x1xf32>
    %cst_141 = arith.constant 3.200000e+01 : f32
    %259 = vector.broadcast %cst_141 : f32 to vector<10x1xf32>
    %260 = arith.divf %258, %259 : vector<10x1xf32>
    %261 = vector.broadcast %260 : vector<10x1xf32> to vector<10x32xf32>
    %262 = arith.subf %256, %261 : vector<10x32xf32>
    %263 = arith.mulf %262, %262 : vector<10x32xf32>
    %cst_142 = arith.constant dense<0.000000e+00> : vector<10xf32>
    %264 = vector.multi_reduction <add>, %263, %cst_142 [1] : vector<10x32xf32> to vector<10xf32>
    %265 = vector.shape_cast %264 : vector<10xf32> to vector<10x1xf32>
    %cst_143 = arith.constant 3.200000e+01 : f32
    %266 = vector.broadcast %cst_143 : f32 to vector<10x1xf32>
    %267 = arith.divf %265, %266 : vector<10x1xf32>
    %268 = vector.broadcast %260 : vector<10x1xf32> to vector<10x32xf32>
    %269 = arith.subf %256, %268 : vector<10x32xf32>
    %cst_144 = arith.constant 9.99999974E-6 : f32
    %270 = vector.broadcast %cst_144 : f32 to vector<10x1xf32>
    %271 = arith.addf %267, %270 : vector<10x1xf32>
    %272 = math.rsqrt %271 : vector<10x1xf32>
    %273 = vector.broadcast %272 : vector<10x1xf32> to vector<10x32xf32>
    %274 = arith.mulf %269, %273 : vector<10x32xf32>
    %275 = vector.broadcast %43 : vector<1x32xf32> to vector<10x32xf32>
    %276 = arith.mulf %274, %275 : vector<10x32xf32>
    %277 = vector.broadcast %45 : vector<1x32xf32> to vector<10x32xf32>
    %278 = arith.addf %276, %277 : vector<10x32xf32>
    %cst_145 = arith.constant dense<0.000000e+00> : vector<10x64xf32>
    %279 = tpu.matmul %278, %47, %cst_145 {dimension_numbers = #tpu.dot_dimension_numbers<[1], [0], [0], [1], [0, 0, 1, 1], [], []>} : vector<10x32xf32>, vector<32x64xf32>, vector<10x64xf32> -> vector<10x64xf32>
    %280 = vector.broadcast %49 : vector<1x64xf32> to vector<10x64xf32>
    %281 = arith.addf %279, %280 : vector<10x64xf32>
    %cst_146 = arith.constant 1.702000e+00 : f32
    %282 = vector.broadcast %cst_146 : f32 to vector<10x64xf32>
    %283 = arith.mulf %282, %281 : vector<10x64xf32>
    %284 = arith.negf %283 : vector<10x64xf32>
    %285 = math.exp %284 : vector<10x64xf32>
    %cst_147 = arith.constant 1.000000e+00 : f32
    %286 = vector.broadcast %cst_147 : f32 to vector<10x64xf32>
    %287 = arith.addf %286, %285 : vector<10x64xf32>
    %288 = arith.divf %286, %287 : vector<10x64xf32>
    %289 = arith.mulf %281, %288 : vector<10x64xf32>
    %cst_148 = arith.constant dense<0.000000e+00> : vector<10x32xf32>
    %290 = tpu.matmul %289, %51, %cst_148 {dimension_numbers = #tpu.dot_dimension_numbers<[1], [0], [0], [1], [0, 0, 1, 1], [], []>} : vector<10x64xf32>, vector<64x32xf32>, vector<10x32xf32> -> vector<10x32xf32>
    %291 = vector.broadcast %53 : vector<1x32xf32> to vector<10x32xf32>
    %292 = arith.addf %290, %291 : vector<10x32xf32>
    %293 = arith.addf %256, %292 : vector<10x32xf32>
    %cst_149 = arith.constant dense<0.000000e+00> : vector<2x32xf32>
    %294 = tpu.matmul %57, %293, %cst_149 {dimension_numbers = #tpu.dot_dimension_numbers<[1], [0], [0], [1], [0, 0, 1, 1], [], []>} : vector<2x10xf32>, vector<10x32xf32>, vector<2x32xf32> -> vector<2x32xf32>
    %cst_150 = arith.constant dense<0.000000e+00> : vector<2xf32>
    %295 = vector.multi_reduction <add>, %294, %cst_150 [1] : vector<2x32xf32> to vector<2xf32>
    %296 = vector.shape_cast %295 : vector<2xf32> to vector<2x1xf32>
    %cst_151 = arith.constant 3.200000e+01 : f32
    %297 = vector.broadcast %cst_151 : f32 to vector<2x1xf32>
    %298 = arith.divf %296, %297 : vector<2x1xf32>
    %299 = vector.broadcast %298 : vector<2x1xf32> to vector<2x32xf32>
    %300 = arith.subf %294, %299 : vector<2x32xf32>
    %301 = arith.mulf %300, %300 : vector<2x32xf32>
    %cst_152 = arith.constant dense<0.000000e+00> : vector<2xf32>
    %302 = vector.multi_reduction <add>, %301, %cst_152 [1] : vector<2x32xf32> to vector<2xf32>
    %303 = vector.shape_cast %302 : vector<2xf32> to vector<2x1xf32>
    %cst_153 = arith.constant 3.200000e+01 : f32
    %304 = vector.broadcast %cst_153 : f32 to vector<2x1xf32>
    %305 = arith.divf %303, %304 : vector<2x1xf32>
    %306 = vector.broadcast %298 : vector<2x1xf32> to vector<2x32xf32>
    %307 = arith.subf %294, %306 : vector<2x32xf32>
    %cst_154 = arith.constant 9.99999974E-6 : f32
    %308 = vector.broadcast %cst_154 : f32 to vector<2x1xf32>
    %309 = arith.addf %305, %308 : vector<2x1xf32>
    %310 = math.rsqrt %309 : vector<2x1xf32>
    %311 = vector.broadcast %310 : vector<2x1xf32> to vector<2x32xf32>
    %312 = arith.mulf %307, %311 : vector<2x32xf32>
    %313 = vector.broadcast %54 : vector<1x32xf32> to vector<2x32xf32>
    %314 = arith.mulf %312, %313 : vector<2x32xf32>
    %315 = vector.broadcast %55 : vector<1x32xf32> to vector<2x32xf32>
    %316 = arith.addf %314, %315 : vector<2x32xf32>
    %cst_155 = arith.constant dense<0.000000e+00> : vector<2x16xf32>
    %317 = tpu.matmul %316, %56, %cst_155 {dimension_numbers = #tpu.dot_dimension_numbers<[1], [0], [0], [1], [0, 0, 1, 1], [], []>} : vector<2x32xf32>, vector<32x16xf32>, vector<2x16xf32> -> vector<2x16xf32>
    %c0_156 = arith.constant 0 : index
    %c0_157 = arith.constant 0 : index
    %318 = vector.load %arg22[%c0_156, %c0_157] : memref<16x32xf32, #tpu.memory_space<vmem>>, vector<16x32xf32>
    %c0_158 = arith.constant 0 : index
    %c0_159 = arith.constant 0 : index
    %319 = vector.load %arg23[%c0_158, %c0_159] : memref<16x16xf32, #tpu.memory_space<vmem>>, vector<16x16xf32>
    %c0_160 = arith.constant 0 : index
    %c0_161 = arith.constant 0 : index
    %320 = vector.load %arg24[%c0_160, %c0_161] : memref<2x16xf32, #tpu.memory_space<vmem>>, vector<2x16xf32>
    %c0_162 = arith.constant 0 : index
    %c0_163 = arith.constant 0 : index
    %c0_164 = arith.constant 0 : index
    %321 = vector.load %arg25[%c0_162, %c0_163, %c0_164] : memref<2x1x32xf32, #tpu.memory_space<vmem>>, vector<1x1x32xf32>
    %322 = vector.shape_cast %321 : vector<1x1x32xf32> to vector<1x32xf32>
    %c0_165 = arith.constant 0 : index
    %c0_166 = arith.constant 0 : index
    %c0_167 = arith.constant 0 : index
    %323 = vector.load %arg26[%c0_165, %c0_166, %c0_167] : memref<2x1x32xf32, #tpu.memory_space<vmem>>, vector<1x1x32xf32>
    %324 = vector.shape_cast %323 : vector<1x1x32xf32> to vector<1x32xf32>
    %c0_168 = arith.constant 0 : index
    %c0_169 = arith.constant 0 : index
    %c0_170 = arith.constant 0 : index
    %325 = vector.load %arg27[%c0_168, %c0_169, %c0_170] : memref<2x32x96xf32, #tpu.memory_space<vmem>>, vector<1x32x96xf32>
    %326 = vector.shape_cast %325 : vector<1x32x96xf32> to vector<32x96xf32>
    %c0_171 = arith.constant 0 : index
    %c0_172 = arith.constant 0 : index
    %c0_173 = arith.constant 0 : index
    %327 = vector.load %arg28[%c0_171, %c0_172, %c0_173] : memref<2x1x96xf32, #tpu.memory_space<vmem>>, vector<1x1x96xf32>
    %328 = vector.shape_cast %327 : vector<1x1x96xf32> to vector<1x96xf32>
    %c0_174 = arith.constant 0 : index
    %c0_175 = arith.constant 0 : index
    %c0_176 = arith.constant 0 : index
    %329 = vector.load %arg29[%c0_174, %c0_175, %c0_176] : memref<2x32x32xf32, #tpu.memory_space<vmem>>, vector<1x32x32xf32>
    %330 = vector.shape_cast %329 : vector<1x32x32xf32> to vector<32x32xf32>
    %c0_177 = arith.constant 0 : index
    %c0_178 = arith.constant 0 : index
    %c0_179 = arith.constant 0 : index
    %331 = vector.load %arg30[%c0_177, %c0_178, %c0_179] : memref<2x1x32xf32, #tpu.memory_space<vmem>>, vector<1x1x32xf32>
    %332 = vector.shape_cast %331 : vector<1x1x32xf32> to vector<1x32xf32>
    %c0_180 = arith.constant 0 : index
    %c0_181 = arith.constant 0 : index
    %c0_182 = arith.constant 0 : index
    %333 = vector.load %arg31[%c0_180, %c0_181, %c0_182] : memref<2x1x32xf32, #tpu.memory_space<vmem>>, vector<1x1x32xf32>
    %334 = vector.shape_cast %333 : vector<1x1x32xf32> to vector<1x32xf32>
    %c0_183 = arith.constant 0 : index
    %c0_184 = arith.constant 0 : index
    %c0_185 = arith.constant 0 : index
    %335 = vector.load %arg32[%c0_183, %c0_184, %c0_185] : memref<2x1x32xf32, #tpu.memory_space<vmem>>, vector<1x1x32xf32>
    %336 = vector.shape_cast %335 : vector<1x1x32xf32> to vector<1x32xf32>
    %c0_186 = arith.constant 0 : index
    %c0_187 = arith.constant 0 : index
    %c0_188 = arith.constant 0 : index
    %337 = vector.load %arg33[%c0_186, %c0_187, %c0_188] : memref<2x32x64xf32, #tpu.memory_space<vmem>>, vector<1x32x64xf32>
    %338 = vector.shape_cast %337 : vector<1x32x64xf32> to vector<32x64xf32>
    %c0_189 = arith.constant 0 : index
    %c0_190 = arith.constant 0 : index
    %c0_191 = arith.constant 0 : index
    %339 = vector.load %arg34[%c0_189, %c0_190, %c0_191] : memref<2x1x64xf32, #tpu.memory_space<vmem>>, vector<1x1x64xf32>
    %340 = vector.shape_cast %339 : vector<1x1x64xf32> to vector<1x64xf32>
    %c0_192 = arith.constant 0 : index
    %c0_193 = arith.constant 0 : index
    %c0_194 = arith.constant 0 : index
    %341 = vector.load %arg35[%c0_192, %c0_193, %c0_194] : memref<2x64x32xf32, #tpu.memory_space<vmem>>, vector<1x64x32xf32>
    %342 = vector.shape_cast %341 : vector<1x64x32xf32> to vector<64x32xf32>
    %c0_195 = arith.constant 0 : index
    %c0_196 = arith.constant 0 : index
    %c0_197 = arith.constant 0 : index
    %343 = vector.load %arg36[%c0_195, %c0_196, %c0_197] : memref<2x1x32xf32, #tpu.memory_space<vmem>>, vector<1x1x32xf32>
    %344 = vector.shape_cast %343 : vector<1x1x32xf32> to vector<1x32xf32>
    %c1_198 = arith.constant 1 : index
    %c0_199 = arith.constant 0 : index
    %c0_200 = arith.constant 0 : index
    %345 = vector.load %arg25[%c1_198, %c0_199, %c0_200] : memref<2x1x32xf32, #tpu.memory_space<vmem>>, vector<1x1x32xf32>
    %346 = vector.shape_cast %345 : vector<1x1x32xf32> to vector<1x32xf32>
    %c1_201 = arith.constant 1 : index
    %c0_202 = arith.constant 0 : index
    %c0_203 = arith.constant 0 : index
    %347 = vector.load %arg26[%c1_201, %c0_202, %c0_203] : memref<2x1x32xf32, #tpu.memory_space<vmem>>, vector<1x1x32xf32>
    %348 = vector.shape_cast %347 : vector<1x1x32xf32> to vector<1x32xf32>
    %c1_204 = arith.constant 1 : index
    %c0_205 = arith.constant 0 : index
    %c0_206 = arith.constant 0 : index
    %349 = vector.load %arg27[%c1_204, %c0_205, %c0_206] : memref<2x32x96xf32, #tpu.memory_space<vmem>>, vector<1x32x96xf32>
    %350 = vector.shape_cast %349 : vector<1x32x96xf32> to vector<32x96xf32>
    %c1_207 = arith.constant 1 : index
    %c0_208 = arith.constant 0 : index
    %c0_209 = arith.constant 0 : index
    %351 = vector.load %arg28[%c1_207, %c0_208, %c0_209] : memref<2x1x96xf32, #tpu.memory_space<vmem>>, vector<1x1x96xf32>
    %352 = vector.shape_cast %351 : vector<1x1x96xf32> to vector<1x96xf32>
    %c1_210 = arith.constant 1 : index
    %c0_211 = arith.constant 0 : index
    %c0_212 = arith.constant 0 : index
    %353 = vector.load %arg29[%c1_210, %c0_211, %c0_212] : memref<2x32x32xf32, #tpu.memory_space<vmem>>, vector<1x32x32xf32>
    %354 = vector.shape_cast %353 : vector<1x32x32xf32> to vector<32x32xf32>
    %c1_213 = arith.constant 1 : index
    %c0_214 = arith.constant 0 : index
    %c0_215 = arith.constant 0 : index
    %355 = vector.load %arg30[%c1_213, %c0_214, %c0_215] : memref<2x1x32xf32, #tpu.memory_space<vmem>>, vector<1x1x32xf32>
    %356 = vector.shape_cast %355 : vector<1x1x32xf32> to vector<1x32xf32>
    %c1_216 = arith.constant 1 : index
    %c0_217 = arith.constant 0 : index
    %c0_218 = arith.constant 0 : index
    %357 = vector.load %arg31[%c1_216, %c0_217, %c0_218] : memref<2x1x32xf32, #tpu.memory_space<vmem>>, vector<1x1x32xf32>
    %358 = vector.shape_cast %357 : vector<1x1x32xf32> to vector<1x32xf32>
    %c1_219 = arith.constant 1 : index
    %c0_220 = arith.constant 0 : index
    %c0_221 = arith.constant 0 : index
    %359 = vector.load %arg32[%c1_219, %c0_220, %c0_221] : memref<2x1x32xf32, #tpu.memory_space<vmem>>, vector<1x1x32xf32>
    %360 = vector.shape_cast %359 : vector<1x1x32xf32> to vector<1x32xf32>
    %c1_222 = arith.constant 1 : index
    %c0_223 = arith.constant 0 : index
    %c0_224 = arith.constant 0 : index
    %361 = vector.load %arg33[%c1_222, %c0_223, %c0_224] : memref<2x32x64xf32, #tpu.memory_space<vmem>>, vector<1x32x64xf32>
    %362 = vector.shape_cast %361 : vector<1x32x64xf32> to vector<32x64xf32>
    %c1_225 = arith.constant 1 : index
    %c0_226 = arith.constant 0 : index
    %c0_227 = arith.constant 0 : index
    %363 = vector.load %arg34[%c1_225, %c0_226, %c0_227] : memref<2x1x64xf32, #tpu.memory_space<vmem>>, vector<1x1x64xf32>
    %364 = vector.shape_cast %363 : vector<1x1x64xf32> to vector<1x64xf32>
    %c1_228 = arith.constant 1 : index
    %c0_229 = arith.constant 0 : index
    %c0_230 = arith.constant 0 : index
    %365 = vector.load %arg35[%c1_228, %c0_229, %c0_230] : memref<2x64x32xf32, #tpu.memory_space<vmem>>, vector<1x64x32xf32>
    %366 = vector.shape_cast %365 : vector<1x64x32xf32> to vector<64x32xf32>
    %c1_231 = arith.constant 1 : index
    %c0_232 = arith.constant 0 : index
    %c0_233 = arith.constant 0 : index
    %367 = vector.load %arg36[%c1_231, %c0_232, %c0_233] : memref<2x1x32xf32, #tpu.memory_space<vmem>>, vector<1x1x32xf32>
    %368 = vector.shape_cast %367 : vector<1x1x32xf32> to vector<1x32xf32>
    %c0_234 = arith.constant 0 : index
    %c0_235 = arith.constant 0 : index
    %369 = vector.load %arg37[%c0_234, %c0_235] : memref<1x32xf32, #tpu.memory_space<vmem>>, vector<1x32xf32>
    %c0_236 = arith.constant 0 : index
    %c0_237 = arith.constant 0 : index
    %370 = vector.load %arg38[%c0_236, %c0_237] : memref<1x32xf32, #tpu.memory_space<vmem>>, vector<1x32xf32>
    %c0_238 = arith.constant 0 : index
    %c0_239 = arith.constant 0 : index
    %371 = vector.load %arg39[%c0_238, %c0_239] : memref<32x16xf32, #tpu.memory_space<vmem>>, vector<32x16xf32>
    %cst_240 = arith.constant dense<0.000000e+00> : vector<16xf32>
    %372 = vector.multi_reduction <add>, %318, %cst_240 [1] : vector<16x32xf32> to vector<16xf32>
    %373 = vector.shape_cast %372 : vector<16xf32> to vector<16x1xf32>
    %cst_241 = arith.constant 3.200000e+01 : f32
    %374 = vector.broadcast %cst_241 : f32 to vector<16x1xf32>
    %375 = arith.divf %373, %374 : vector<16x1xf32>
    %376 = vector.broadcast %375 : vector<16x1xf32> to vector<16x32xf32>
    %377 = arith.subf %318, %376 : vector<16x32xf32>
    %378 = arith.mulf %377, %377 : vector<16x32xf32>
    %cst_242 = arith.constant dense<0.000000e+00> : vector<16xf32>
    %379 = vector.multi_reduction <add>, %378, %cst_242 [1] : vector<16x32xf32> to vector<16xf32>
    %380 = vector.shape_cast %379 : vector<16xf32> to vector<16x1xf32>
    %cst_243 = arith.constant 3.200000e+01 : f32
    %381 = vector.broadcast %cst_243 : f32 to vector<16x1xf32>
    %382 = arith.divf %380, %381 : vector<16x1xf32>
    %383 = vector.broadcast %375 : vector<16x1xf32> to vector<16x32xf32>
    %384 = arith.subf %318, %383 : vector<16x32xf32>
    %cst_244 = arith.constant 9.99999974E-6 : f32
    %385 = vector.broadcast %cst_244 : f32 to vector<16x1xf32>
    %386 = arith.addf %382, %385 : vector<16x1xf32>
    %387 = math.rsqrt %386 : vector<16x1xf32>
    %388 = vector.broadcast %387 : vector<16x1xf32> to vector<16x32xf32>
    %389 = arith.mulf %384, %388 : vector<16x32xf32>
    %390 = vector.broadcast %322 : vector<1x32xf32> to vector<16x32xf32>
    %391 = arith.mulf %389, %390 : vector<16x32xf32>
    %392 = vector.broadcast %324 : vector<1x32xf32> to vector<16x32xf32>
    %393 = arith.addf %391, %392 : vector<16x32xf32>
    %cst_245 = arith.constant dense<0.000000e+00> : vector<16x96xf32>
    %394 = tpu.matmul %393, %326, %cst_245 {dimension_numbers = #tpu.dot_dimension_numbers<[1], [0], [0], [1], [0, 0, 1, 1], [], []>} : vector<16x32xf32>, vector<32x96xf32>, vector<16x96xf32> -> vector<16x96xf32>
    %395 = vector.broadcast %328 : vector<1x96xf32> to vector<16x96xf32>
    %396 = arith.addf %394, %395 : vector<16x96xf32>
    %397 = vector.extract_strided_slice %396 {offsets = [0, 0], sizes = [16, 16], strides = [1, 1]} : vector<16x96xf32> to vector<16x16xf32>
    %398 = vector.extract_strided_slice %396 {offsets = [0, 32], sizes = [16, 16], strides = [1, 1]} : vector<16x96xf32> to vector<16x16xf32>
    %399 = vector.extract_strided_slice %396 {offsets = [0, 64], sizes = [16, 16], strides = [1, 1]} : vector<16x96xf32> to vector<16x16xf32>
    %cst_246 = arith.constant dense<0.000000e+00> : vector<16x16xf32>
    %400 = tpu.matmul %397, %398, %cst_246 {dimension_numbers = #tpu.dot_dimension_numbers<[1], [1], [0], [0], [0, 0, 1, 0], [], []>} : vector<16x16xf32>, vector<16x16xf32>, vector<16x16xf32> -> vector<16x16xf32>
    %cst_247 = arith.constant 2.500000e-01 : f32
    %401 = vector.broadcast %cst_247 : f32 to vector<16x16xf32>
    %402 = arith.mulf %400, %401 : vector<16x16xf32>
    %403 = arith.addf %402, %319 : vector<16x16xf32>
    %cst_248 = arith.constant dense<0xFF800000> : vector<16xf32>
    %404 = vector.multi_reduction <maximumf>, %403, %cst_248 [1] : vector<16x16xf32> to vector<16xf32>
    %405 = vector.shape_cast %404 : vector<16xf32> to vector<16x1xf32>
    %406 = vector.broadcast %405 : vector<16x1xf32> to vector<16x16xf32>
    %407 = arith.subf %403, %406 : vector<16x16xf32>
    %408 = math.exp %407 : vector<16x16xf32>
    %cst_249 = arith.constant dense<0.000000e+00> : vector<16xf32>
    %409 = vector.multi_reduction <add>, %408, %cst_249 [1] : vector<16x16xf32> to vector<16xf32>
    %410 = vector.shape_cast %409 : vector<16xf32> to vector<16x1xf32>
    %411 = tpu.reciprocal %410 {approx = true} : vector<16x1xf32> -> vector<16x1xf32>
    %412 = vector.broadcast %411 : vector<16x1xf32> to vector<16x16xf32>
    %413 = arith.mulf %408, %412 : vector<16x16xf32>
    %cst_250 = arith.constant dense<0.000000e+00> : vector<16x16xf32>
    %414 = tpu.matmul %413, %399, %cst_250 {dimension_numbers = #tpu.dot_dimension_numbers<[1], [0], [0], [1], [0, 0, 1, 1], [], []>} : vector<16x16xf32>, vector<16x16xf32>, vector<16x16xf32> -> vector<16x16xf32>
    %415 = vector.extract_strided_slice %330 {offsets = [0, 0], sizes = [16, 32], strides = [1, 1]} : vector<32x32xf32> to vector<16x32xf32>
    %cst_251 = arith.constant dense<0.000000e+00> : vector<16x32xf32>
    %416 = tpu.matmul %414, %415, %cst_251 {dimension_numbers = #tpu.dot_dimension_numbers<[1], [0], [0], [1], [0, 0, 1, 1], [], []>} : vector<16x16xf32>, vector<16x32xf32>, vector<16x32xf32> -> vector<16x32xf32>
    %417 = vector.extract_strided_slice %396 {offsets = [0, 16], sizes = [16, 16], strides = [1, 1]} : vector<16x96xf32> to vector<16x16xf32>
    %418 = vector.extract_strided_slice %396 {offsets = [0, 48], sizes = [16, 16], strides = [1, 1]} : vector<16x96xf32> to vector<16x16xf32>
    %419 = vector.extract_strided_slice %396 {offsets = [0, 80], sizes = [16, 16], strides = [1, 1]} : vector<16x96xf32> to vector<16x16xf32>
    %cst_252 = arith.constant dense<0.000000e+00> : vector<16x16xf32>
    %420 = tpu.matmul %417, %418, %cst_252 {dimension_numbers = #tpu.dot_dimension_numbers<[1], [1], [0], [0], [0, 0, 1, 0], [], []>} : vector<16x16xf32>, vector<16x16xf32>, vector<16x16xf32> -> vector<16x16xf32>
    %cst_253 = arith.constant 2.500000e-01 : f32
    %421 = vector.broadcast %cst_253 : f32 to vector<16x16xf32>
    %422 = arith.mulf %420, %421 : vector<16x16xf32>
    %423 = arith.addf %422, %319 : vector<16x16xf32>
    %cst_254 = arith.constant dense<0xFF800000> : vector<16xf32>
    %424 = vector.multi_reduction <maximumf>, %423, %cst_254 [1] : vector<16x16xf32> to vector<16xf32>
    %425 = vector.shape_cast %424 : vector<16xf32> to vector<16x1xf32>
    %426 = vector.broadcast %425 : vector<16x1xf32> to vector<16x16xf32>
    %427 = arith.subf %423, %426 : vector<16x16xf32>
    %428 = math.exp %427 : vector<16x16xf32>
    %cst_255 = arith.constant dense<0.000000e+00> : vector<16xf32>
    %429 = vector.multi_reduction <add>, %428, %cst_255 [1] : vector<16x16xf32> to vector<16xf32>
    %430 = vector.shape_cast %429 : vector<16xf32> to vector<16x1xf32>
    %431 = tpu.reciprocal %430 {approx = true} : vector<16x1xf32> -> vector<16x1xf32>
    %432 = vector.broadcast %431 : vector<16x1xf32> to vector<16x16xf32>
    %433 = arith.mulf %428, %432 : vector<16x16xf32>
    %cst_256 = arith.constant dense<0.000000e+00> : vector<16x16xf32>
    %434 = tpu.matmul %433, %419, %cst_256 {dimension_numbers = #tpu.dot_dimension_numbers<[1], [0], [0], [1], [0, 0, 1, 1], [], []>} : vector<16x16xf32>, vector<16x16xf32>, vector<16x16xf32> -> vector<16x16xf32>
    %435 = vector.extract_strided_slice %330 {offsets = [16, 0], sizes = [16, 32], strides = [1, 1]} : vector<32x32xf32> to vector<16x32xf32>
    %cst_257 = arith.constant dense<0.000000e+00> : vector<16x32xf32>
    %436 = tpu.matmul %434, %435, %cst_257 {dimension_numbers = #tpu.dot_dimension_numbers<[1], [0], [0], [1], [0, 0, 1, 1], [], []>} : vector<16x16xf32>, vector<16x32xf32>, vector<16x32xf32> -> vector<16x32xf32>
    %437 = arith.addf %416, %436 : vector<16x32xf32>
    %438 = vector.broadcast %332 : vector<1x32xf32> to vector<16x32xf32>
    %439 = arith.addf %437, %438 : vector<16x32xf32>
    %440 = arith.addf %318, %439 : vector<16x32xf32>
    %cst_258 = arith.constant dense<0.000000e+00> : vector<16xf32>
    %441 = vector.multi_reduction <add>, %440, %cst_258 [1] : vector<16x32xf32> to vector<16xf32>
    %442 = vector.shape_cast %441 : vector<16xf32> to vector<16x1xf32>
    %cst_259 = arith.constant 3.200000e+01 : f32
    %443 = vector.broadcast %cst_259 : f32 to vector<16x1xf32>
    %444 = arith.divf %442, %443 : vector<16x1xf32>
    %445 = vector.broadcast %444 : vector<16x1xf32> to vector<16x32xf32>
    %446 = arith.subf %440, %445 : vector<16x32xf32>
    %447 = arith.mulf %446, %446 : vector<16x32xf32>
    %cst_260 = arith.constant dense<0.000000e+00> : vector<16xf32>
    %448 = vector.multi_reduction <add>, %447, %cst_260 [1] : vector<16x32xf32> to vector<16xf32>
    %449 = vector.shape_cast %448 : vector<16xf32> to vector<16x1xf32>
    %cst_261 = arith.constant 3.200000e+01 : f32
    %450 = vector.broadcast %cst_261 : f32 to vector<16x1xf32>
    %451 = arith.divf %449, %450 : vector<16x1xf32>
    %452 = vector.broadcast %444 : vector<16x1xf32> to vector<16x32xf32>
    %453 = arith.subf %440, %452 : vector<16x32xf32>
    %cst_262 = arith.constant 9.99999974E-6 : f32
    %454 = vector.broadcast %cst_262 : f32 to vector<16x1xf32>
    %455 = arith.addf %451, %454 : vector<16x1xf32>
    %456 = math.rsqrt %455 : vector<16x1xf32>
    %457 = vector.broadcast %456 : vector<16x1xf32> to vector<16x32xf32>
    %458 = arith.mulf %453, %457 : vector<16x32xf32>
    %459 = vector.broadcast %334 : vector<1x32xf32> to vector<16x32xf32>
    %460 = arith.mulf %458, %459 : vector<16x32xf32>
    %461 = vector.broadcast %336 : vector<1x32xf32> to vector<16x32xf32>
    %462 = arith.addf %460, %461 : vector<16x32xf32>
    %cst_263 = arith.constant dense<0.000000e+00> : vector<16x64xf32>
    %463 = tpu.matmul %462, %338, %cst_263 {dimension_numbers = #tpu.dot_dimension_numbers<[1], [0], [0], [1], [0, 0, 1, 1], [], []>} : vector<16x32xf32>, vector<32x64xf32>, vector<16x64xf32> -> vector<16x64xf32>
    %464 = vector.broadcast %340 : vector<1x64xf32> to vector<16x64xf32>
    %465 = arith.addf %463, %464 : vector<16x64xf32>
    %cst_264 = arith.constant 1.702000e+00 : f32
    %466 = vector.broadcast %cst_264 : f32 to vector<16x64xf32>
    %467 = arith.mulf %466, %465 : vector<16x64xf32>
    %468 = arith.negf %467 : vector<16x64xf32>
    %469 = math.exp %468 : vector<16x64xf32>
    %cst_265 = arith.constant 1.000000e+00 : f32
    %470 = vector.broadcast %cst_265 : f32 to vector<16x64xf32>
    %471 = arith.addf %470, %469 : vector<16x64xf32>
    %472 = arith.divf %470, %471 : vector<16x64xf32>
    %473 = arith.mulf %465, %472 : vector<16x64xf32>
    %cst_266 = arith.constant dense<0.000000e+00> : vector<16x32xf32>
    %474 = tpu.matmul %473, %342, %cst_266 {dimension_numbers = #tpu.dot_dimension_numbers<[1], [0], [0], [1], [0, 0, 1, 1], [], []>} : vector<16x64xf32>, vector<64x32xf32>, vector<16x32xf32> -> vector<16x32xf32>
    %475 = vector.broadcast %344 : vector<1x32xf32> to vector<16x32xf32>
    %476 = arith.addf %474, %475 : vector<16x32xf32>
    %477 = arith.addf %440, %476 : vector<16x32xf32>
    %cst_267 = arith.constant dense<0.000000e+00> : vector<16xf32>
    %478 = vector.multi_reduction <add>, %477, %cst_267 [1] : vector<16x32xf32> to vector<16xf32>
    %479 = vector.shape_cast %478 : vector<16xf32> to vector<16x1xf32>
    %cst_268 = arith.constant 3.200000e+01 : f32
    %480 = vector.broadcast %cst_268 : f32 to vector<16x1xf32>
    %481 = arith.divf %479, %480 : vector<16x1xf32>
    %482 = vector.broadcast %481 : vector<16x1xf32> to vector<16x32xf32>
    %483 = arith.subf %477, %482 : vector<16x32xf32>
    %484 = arith.mulf %483, %483 : vector<16x32xf32>
    %cst_269 = arith.constant dense<0.000000e+00> : vector<16xf32>
    %485 = vector.multi_reduction <add>, %484, %cst_269 [1] : vector<16x32xf32> to vector<16xf32>
    %486 = vector.shape_cast %485 : vector<16xf32> to vector<16x1xf32>
    %cst_270 = arith.constant 3.200000e+01 : f32
    %487 = vector.broadcast %cst_270 : f32 to vector<16x1xf32>
    %488 = arith.divf %486, %487 : vector<16x1xf32>
    %489 = vector.broadcast %481 : vector<16x1xf32> to vector<16x32xf32>
    %490 = arith.subf %477, %489 : vector<16x32xf32>
    %cst_271 = arith.constant 9.99999974E-6 : f32
    %491 = vector.broadcast %cst_271 : f32 to vector<16x1xf32>
    %492 = arith.addf %488, %491 : vector<16x1xf32>
    %493 = math.rsqrt %492 : vector<16x1xf32>
    %494 = vector.broadcast %493 : vector<16x1xf32> to vector<16x32xf32>
    %495 = arith.mulf %490, %494 : vector<16x32xf32>
    %496 = vector.broadcast %346 : vector<1x32xf32> to vector<16x32xf32>
    %497 = arith.mulf %495, %496 : vector<16x32xf32>
    %498 = vector.broadcast %348 : vector<1x32xf32> to vector<16x32xf32>
    %499 = arith.addf %497, %498 : vector<16x32xf32>
    %cst_272 = arith.constant dense<0.000000e+00> : vector<16x96xf32>
    %500 = tpu.matmul %499, %350, %cst_272 {dimension_numbers = #tpu.dot_dimension_numbers<[1], [0], [0], [1], [0, 0, 1, 1], [], []>} : vector<16x32xf32>, vector<32x96xf32>, vector<16x96xf32> -> vector<16x96xf32>
    %501 = vector.broadcast %352 : vector<1x96xf32> to vector<16x96xf32>
    %502 = arith.addf %500, %501 : vector<16x96xf32>
    %503 = vector.extract_strided_slice %502 {offsets = [0, 0], sizes = [16, 16], strides = [1, 1]} : vector<16x96xf32> to vector<16x16xf32>
    %504 = vector.extract_strided_slice %502 {offsets = [0, 32], sizes = [16, 16], strides = [1, 1]} : vector<16x96xf32> to vector<16x16xf32>
    %505 = vector.extract_strided_slice %502 {offsets = [0, 64], sizes = [16, 16], strides = [1, 1]} : vector<16x96xf32> to vector<16x16xf32>
    %cst_273 = arith.constant dense<0.000000e+00> : vector<16x16xf32>
    %506 = tpu.matmul %503, %504, %cst_273 {dimension_numbers = #tpu.dot_dimension_numbers<[1], [1], [0], [0], [0, 0, 1, 0], [], []>} : vector<16x16xf32>, vector<16x16xf32>, vector<16x16xf32> -> vector<16x16xf32>
    %cst_274 = arith.constant 2.500000e-01 : f32
    %507 = vector.broadcast %cst_274 : f32 to vector<16x16xf32>
    %508 = arith.mulf %506, %507 : vector<16x16xf32>
    %509 = arith.addf %508, %319 : vector<16x16xf32>
    %cst_275 = arith.constant dense<0xFF800000> : vector<16xf32>
    %510 = vector.multi_reduction <maximumf>, %509, %cst_275 [1] : vector<16x16xf32> to vector<16xf32>
    %511 = vector.shape_cast %510 : vector<16xf32> to vector<16x1xf32>
    %512 = vector.broadcast %511 : vector<16x1xf32> to vector<16x16xf32>
    %513 = arith.subf %509, %512 : vector<16x16xf32>
    %514 = math.exp %513 : vector<16x16xf32>
    %cst_276 = arith.constant dense<0.000000e+00> : vector<16xf32>
    %515 = vector.multi_reduction <add>, %514, %cst_276 [1] : vector<16x16xf32> to vector<16xf32>
    %516 = vector.shape_cast %515 : vector<16xf32> to vector<16x1xf32>
    %517 = tpu.reciprocal %516 {approx = true} : vector<16x1xf32> -> vector<16x1xf32>
    %518 = vector.broadcast %517 : vector<16x1xf32> to vector<16x16xf32>
    %519 = arith.mulf %514, %518 : vector<16x16xf32>
    %cst_277 = arith.constant dense<0.000000e+00> : vector<16x16xf32>
    %520 = tpu.matmul %519, %505, %cst_277 {dimension_numbers = #tpu.dot_dimension_numbers<[1], [0], [0], [1], [0, 0, 1, 1], [], []>} : vector<16x16xf32>, vector<16x16xf32>, vector<16x16xf32> -> vector<16x16xf32>
    %521 = vector.extract_strided_slice %354 {offsets = [0, 0], sizes = [16, 32], strides = [1, 1]} : vector<32x32xf32> to vector<16x32xf32>
    %cst_278 = arith.constant dense<0.000000e+00> : vector<16x32xf32>
    %522 = tpu.matmul %520, %521, %cst_278 {dimension_numbers = #tpu.dot_dimension_numbers<[1], [0], [0], [1], [0, 0, 1, 1], [], []>} : vector<16x16xf32>, vector<16x32xf32>, vector<16x32xf32> -> vector<16x32xf32>
    %523 = vector.extract_strided_slice %502 {offsets = [0, 16], sizes = [16, 16], strides = [1, 1]} : vector<16x96xf32> to vector<16x16xf32>
    %524 = vector.extract_strided_slice %502 {offsets = [0, 48], sizes = [16, 16], strides = [1, 1]} : vector<16x96xf32> to vector<16x16xf32>
    %525 = vector.extract_strided_slice %502 {offsets = [0, 80], sizes = [16, 16], strides = [1, 1]} : vector<16x96xf32> to vector<16x16xf32>
    %cst_279 = arith.constant dense<0.000000e+00> : vector<16x16xf32>
    %526 = tpu.matmul %523, %524, %cst_279 {dimension_numbers = #tpu.dot_dimension_numbers<[1], [1], [0], [0], [0, 0, 1, 0], [], []>} : vector<16x16xf32>, vector<16x16xf32>, vector<16x16xf32> -> vector<16x16xf32>
    %cst_280 = arith.constant 2.500000e-01 : f32
    %527 = vector.broadcast %cst_280 : f32 to vector<16x16xf32>
    %528 = arith.mulf %526, %527 : vector<16x16xf32>
    %529 = arith.addf %528, %319 : vector<16x16xf32>
    %cst_281 = arith.constant dense<0xFF800000> : vector<16xf32>
    %530 = vector.multi_reduction <maximumf>, %529, %cst_281 [1] : vector<16x16xf32> to vector<16xf32>
    %531 = vector.shape_cast %530 : vector<16xf32> to vector<16x1xf32>
    %532 = vector.broadcast %531 : vector<16x1xf32> to vector<16x16xf32>
    %533 = arith.subf %529, %532 : vector<16x16xf32>
    %534 = math.exp %533 : vector<16x16xf32>
    %cst_282 = arith.constant dense<0.000000e+00> : vector<16xf32>
    %535 = vector.multi_reduction <add>, %534, %cst_282 [1] : vector<16x16xf32> to vector<16xf32>
    %536 = vector.shape_cast %535 : vector<16xf32> to vector<16x1xf32>
    %537 = tpu.reciprocal %536 {approx = true} : vector<16x1xf32> -> vector<16x1xf32>
    %538 = vector.broadcast %537 : vector<16x1xf32> to vector<16x16xf32>
    %539 = arith.mulf %534, %538 : vector<16x16xf32>
    %cst_283 = arith.constant dense<0.000000e+00> : vector<16x16xf32>
    %540 = tpu.matmul %539, %525, %cst_283 {dimension_numbers = #tpu.dot_dimension_numbers<[1], [0], [0], [1], [0, 0, 1, 1], [], []>} : vector<16x16xf32>, vector<16x16xf32>, vector<16x16xf32> -> vector<16x16xf32>
    %541 = vector.extract_strided_slice %354 {offsets = [16, 0], sizes = [16, 32], strides = [1, 1]} : vector<32x32xf32> to vector<16x32xf32>
    %cst_284 = arith.constant dense<0.000000e+00> : vector<16x32xf32>
    %542 = tpu.matmul %540, %541, %cst_284 {dimension_numbers = #tpu.dot_dimension_numbers<[1], [0], [0], [1], [0, 0, 1, 1], [], []>} : vector<16x16xf32>, vector<16x32xf32>, vector<16x32xf32> -> vector<16x32xf32>
    %543 = arith.addf %522, %542 : vector<16x32xf32>
    %544 = vector.broadcast %356 : vector<1x32xf32> to vector<16x32xf32>
    %545 = arith.addf %543, %544 : vector<16x32xf32>
    %546 = arith.addf %477, %545 : vector<16x32xf32>
    %cst_285 = arith.constant dense<0.000000e+00> : vector<16xf32>
    %547 = vector.multi_reduction <add>, %546, %cst_285 [1] : vector<16x32xf32> to vector<16xf32>
    %548 = vector.shape_cast %547 : vector<16xf32> to vector<16x1xf32>
    %cst_286 = arith.constant 3.200000e+01 : f32
    %549 = vector.broadcast %cst_286 : f32 to vector<16x1xf32>
    %550 = arith.divf %548, %549 : vector<16x1xf32>
    %551 = vector.broadcast %550 : vector<16x1xf32> to vector<16x32xf32>
    %552 = arith.subf %546, %551 : vector<16x32xf32>
    %553 = arith.mulf %552, %552 : vector<16x32xf32>
    %cst_287 = arith.constant dense<0.000000e+00> : vector<16xf32>
    %554 = vector.multi_reduction <add>, %553, %cst_287 [1] : vector<16x32xf32> to vector<16xf32>
    %555 = vector.shape_cast %554 : vector<16xf32> to vector<16x1xf32>
    %cst_288 = arith.constant 3.200000e+01 : f32
    %556 = vector.broadcast %cst_288 : f32 to vector<16x1xf32>
    %557 = arith.divf %555, %556 : vector<16x1xf32>
    %558 = vector.broadcast %550 : vector<16x1xf32> to vector<16x32xf32>
    %559 = arith.subf %546, %558 : vector<16x32xf32>
    %cst_289 = arith.constant 9.99999974E-6 : f32
    %560 = vector.broadcast %cst_289 : f32 to vector<16x1xf32>
    %561 = arith.addf %557, %560 : vector<16x1xf32>
    %562 = math.rsqrt %561 : vector<16x1xf32>
    %563 = vector.broadcast %562 : vector<16x1xf32> to vector<16x32xf32>
    %564 = arith.mulf %559, %563 : vector<16x32xf32>
    %565 = vector.broadcast %358 : vector<1x32xf32> to vector<16x32xf32>
    %566 = arith.mulf %564, %565 : vector<16x32xf32>
    %567 = vector.broadcast %360 : vector<1x32xf32> to vector<16x32xf32>
    %568 = arith.addf %566, %567 : vector<16x32xf32>
    %cst_290 = arith.constant dense<0.000000e+00> : vector<16x64xf32>
    %569 = tpu.matmul %568, %362, %cst_290 {dimension_numbers = #tpu.dot_dimension_numbers<[1], [0], [0], [1], [0, 0, 1, 1], [], []>} : vector<16x32xf32>, vector<32x64xf32>, vector<16x64xf32> -> vector<16x64xf32>
    %570 = vector.broadcast %364 : vector<1x64xf32> to vector<16x64xf32>
    %571 = arith.addf %569, %570 : vector<16x64xf32>
    %cst_291 = arith.constant 1.702000e+00 : f32
    %572 = vector.broadcast %cst_291 : f32 to vector<16x64xf32>
    %573 = arith.mulf %572, %571 : vector<16x64xf32>
    %574 = arith.negf %573 : vector<16x64xf32>
    %575 = math.exp %574 : vector<16x64xf32>
    %cst_292 = arith.constant 1.000000e+00 : f32
    %576 = vector.broadcast %cst_292 : f32 to vector<16x64xf32>
    %577 = arith.addf %576, %575 : vector<16x64xf32>
    %578 = arith.divf %576, %577 : vector<16x64xf32>
    %579 = arith.mulf %571, %578 : vector<16x64xf32>
    %cst_293 = arith.constant dense<0.000000e+00> : vector<16x32xf32>
    %580 = tpu.matmul %579, %366, %cst_293 {dimension_numbers = #tpu.dot_dimension_numbers<[1], [0], [0], [1], [0, 0, 1, 1], [], []>} : vector<16x64xf32>, vector<64x32xf32>, vector<16x32xf32> -> vector<16x32xf32>
    %581 = vector.broadcast %368 : vector<1x32xf32> to vector<16x32xf32>
    %582 = arith.addf %580, %581 : vector<16x32xf32>
    %583 = arith.addf %546, %582 : vector<16x32xf32>
    %cst_294 = arith.constant dense<0.000000e+00> : vector<16xf32>
    %584 = vector.multi_reduction <add>, %583, %cst_294 [1] : vector<16x32xf32> to vector<16xf32>
    %585 = vector.shape_cast %584 : vector<16xf32> to vector<16x1xf32>
    %cst_295 = arith.constant 3.200000e+01 : f32
    %586 = vector.broadcast %cst_295 : f32 to vector<16x1xf32>
    %587 = arith.divf %585, %586 : vector<16x1xf32>
    %588 = vector.broadcast %587 : vector<16x1xf32> to vector<16x32xf32>
    %589 = arith.subf %583, %588 : vector<16x32xf32>
    %590 = arith.mulf %589, %589 : vector<16x32xf32>
    %cst_296 = arith.constant dense<0.000000e+00> : vector<16xf32>
    %591 = vector.multi_reduction <add>, %590, %cst_296 [1] : vector<16x32xf32> to vector<16xf32>
    %592 = vector.shape_cast %591 : vector<16xf32> to vector<16x1xf32>
    %cst_297 = arith.constant 3.200000e+01 : f32
    %593 = vector.broadcast %cst_297 : f32 to vector<16x1xf32>
    %594 = arith.divf %592, %593 : vector<16x1xf32>
    %595 = vector.broadcast %587 : vector<16x1xf32> to vector<16x32xf32>
    %596 = arith.subf %583, %595 : vector<16x32xf32>
    %cst_298 = arith.constant 9.99999974E-6 : f32
    %597 = vector.broadcast %cst_298 : f32 to vector<16x1xf32>
    %598 = arith.addf %594, %597 : vector<16x1xf32>
    %599 = math.rsqrt %598 : vector<16x1xf32>
    %600 = vector.broadcast %599 : vector<16x1xf32> to vector<16x32xf32>
    %601 = arith.mulf %596, %600 : vector<16x32xf32>
    %602 = vector.broadcast %369 : vector<1x32xf32> to vector<16x32xf32>
    %603 = arith.mulf %601, %602 : vector<16x32xf32>
    %604 = vector.broadcast %370 : vector<1x32xf32> to vector<16x32xf32>
    %605 = arith.addf %603, %604 : vector<16x32xf32>
    %cst_299 = arith.constant dense<0.000000e+00> : vector<2x32xf32>
    %606 = tpu.matmul %320, %605, %cst_299 {dimension_numbers = #tpu.dot_dimension_numbers<[1], [0], [0], [1], [0, 0, 1, 1], [], []>} : vector<2x16xf32>, vector<16x32xf32>, vector<2x32xf32> -> vector<2x32xf32>
    %cst_300 = arith.constant dense<0.000000e+00> : vector<2x16xf32>
    %607 = tpu.matmul %606, %371, %cst_300 {dimension_numbers = #tpu.dot_dimension_numbers<[1], [0], [0], [1], [0, 0, 1, 1], [], []>} : vector<2x32xf32>, vector<32x16xf32>, vector<2x16xf32> -> vector<2x16xf32>
    %608 = arith.addf %317, %607 : vector<2x16xf32>
    %cst_301 = arith.constant 5.000000e-01 : f32
    %609 = vector.broadcast %cst_301 : f32 to vector<2x16xf32>
    %610 = arith.mulf %608, %609 : vector<2x16xf32>
    %c0_302 = arith.constant 0 : index
    %c0_303 = arith.constant 0 : index
    %611 = vector.load %arg40[%c0_302, %c0_303] : memref<2x16xf32, #tpu.memory_space<vmem>>, vector<2x16xf32>
    tpu.vector_store %arg40[%c0_302, %c0_303], %610 {strides = array<i32>} : memref<2x16xf32, #tpu.memory_space<vmem>>, vector<2x16xf32>,
    return
  }
}

</mosaic_0001>

<llo_original>
// kernel: eq.52
$region0: #{eq.52}
  %s0 = inlined_call_operand.vmem [shape: s32[2,8], index: 0, kind: input, shape index: {}]
  %s1 = inlined_call_operand.vmem [shape: s32[16], index: 1, kind: output, shape index: {}]
  $region1: #{eq.52} parent=0
    #allocation0 [shape = 'u8[4096]{0}', space=vmem, size = 0x1000, scoped, tag = 'scoped mem for output reshape']
    #allocation1 [shape = 'u8[4096]{0}', space=vmem, size = 0x1000, scoped, tag = 'scoped mem for input reshape']
    %s3 = sshllo.u32 0, 2
    %v4 = vld [vmem:[%s0] sm:%s3]
    %5 = vst [vmem:[#allocation1] sm:%s3] %v4
    %v6 = vld [vmem:[#allocation1] sm:$0x1]
    %vm7 = vcmask 64512
    %8 = vst.msk [vmem:[#allocation0] sm:$0x1] %vm7, %v6
    %s9 = scalar_lea.vmem [#allocation1], 1
    %v10 = vld [vmem:[%s9] sm:$0x1]
    %11 = vrot.lane.b32.xlu0 %v10, 8
    %v12 = vpop.permute.xlu0 %11
    %vm13 = vcmask 130112
    %14 = vst.msk [vmem:[#allocation0] sm:$0x1] %vm13, %v12
    %s16 = sshllo.u32 0, 1
    %v18 = vld [vmem:[#allocation0] sm:%s16]
    %s19 = sshllo.u32 0, 1
    %20 = vst [vmem:[%s1] sm:%s19] %v18

// kernel: tile.9
$region0: #{tile.9}
  %s0 = inlined_call_operand.vmem [shape: f32[2,5,32], index: 0, kind: input, shape index: {}]
  %s1 = inlined_call_operand.vmem [shape: f32[10,32], index: 1, kind: output, shape index: {}]
  %v2 = vld [vmem:[%s0] sm:$0x1f]
  %vm3 = vcmask 261120
  %4 = vst.msk [vmem:[%s1] sm:$0x1f] %vm3, %v2
  %s5 = scalar_lea.vmem %s0, 8
  %v6 = vld [vmem:[%s5] sm:$0x1f]
  %vm7 = vcmask 261120
  %s8 = scalar_lea.vmem %s1, 5
  %9 = vst.msk [vmem:[%s8] sm:$0x1f] %vm7, %v6

// kernel: eq.44
$region0: #{eq.44}
  %s0 = inlined_call_operand.vmem [shape: s32[2,5], index: 0, kind: input, shape index: {}]
  %s1 = inlined_call_operand.vmem [shape: s32[10], index: 1, kind: output, shape index: {}]
  $region1: #{eq.44} parent=0
    #allocation0 [shape = 'u8[4096]{0}', space=vmem, size = 0x1000, scoped, tag = 'scoped mem for output reshape']
    #allocation1 [shape = 'u8[4096]{0}', space=vmem, size = 0x1000, scoped, tag = 'scoped mem for input reshape']
    %s3 = sshllo.u32 0, 2
    %v4 = vld [vmem:[%s0] sm:%s3]
    %5 = vst [vmem:[#allocation1] sm:%s3] %v4
    %v6 = vld [vmem:[#allocation1] sm:$0x1]
    %vm7 = vcmask 39936
    %8 = vst.msk [vmem:[#allocation0] sm:$0x1] %vm7, %v6
    %s9 = scalar_lea.vmem [#allocation1], 1
    %v10 = vld [vmem:[%s9] sm:$0x1]
    %11 = vrot.lane.b32.xlu0 %v10, 5
    %v12 = vpop.permute.xlu0 %11
    %vm13 = vcmask 80936
    %14 = vst.msk [vmem:[#allocation0] sm:$0x1] %vm13, %v12
    %s16 = sshllo.u32 0, 1
    %v18 = vld [vmem:[#allocation0] sm:%s16]
    %s19 = sshllo.u32 0, 1
    %20 = vst [vmem:[%s1] sm:%s19] %v18

// kernel: clip_encoder_forward.1
$region0: #{clip_encoder_forward.1}
  #allocation0 [shape = 'u32[]', space=smem, size = 0x4, offset = 0x4, fixed_abs, tag = 'smem constant byte address 0x4 - core index']
  #allocation1 [shape = 'u32[144,128]{1,0:T(1,128)}', space=vmem, size = 0x12000, scoped, tag = 'internal scratch']
  %s0 = inlined_call_operand.smem [shape: u32[41], index: -1, kind: input, shape index: {}]
  %s1 = sld [smem:[%s0]]
  %s2 = scalar_lea.smem %s0, 1
  %s3 = sld [smem:[%s2]]
  %s4 = scalar_lea.smem %s0, 2
  %s5 = sld [smem:[%s4]]
  %s6 = scalar_lea.smem %s0, 3
  %s7 = sld [smem:[%s6]]
  %s8 = scalar_lea.smem %s0, 4
  %s9 = sld [smem:[%s8]]
  %s10 = scalar_lea.smem %s0, 5
  %s11 = sld [smem:[%s10]]
  %s12 = scalar_lea.smem %s0, 6
  %s13 = sld [smem:[%s12]]
  %s14 = scalar_lea.smem %s0, 7
  %s15 = sld [smem:[%s14]]
  %s16 = scalar_lea.smem %s0, 8
  %s17 = sld [smem:[%s16]]
  %s18 = scalar_lea.smem %s0, 9
  %s19 = sld [smem:[%s18]]
  %s20 = scalar_lea.smem %s0, 10
  %s21 = sld [smem:[%s20]]
  %s22 = scalar_lea.smem %s0, 11
  %s23 = sld [smem:[%s22]]
  %s24 = scalar_lea.smem %s0, 12
  %s25 = sld [smem:[%s24]]
  %s26 = scalar_lea.smem %s0, 13
  %s27 = sld [smem:[%s26]]
  %s28 = scalar_lea.smem %s0, 14
  %s29 = sld [smem:[%s28]]
  %s30 = scalar_lea.smem %s0, 15
  %s31 = sld [smem:[%s30]]
  %s32 = scalar_lea.smem %s0, 16
  %s33 = sld [smem:[%s32]]
  %s34 = scalar_lea.smem %s0, 17
  %s35 = sld [smem:[%s34]]
  %s36 = scalar_lea.smem %s0, 18
  %s37 = sld [smem:[%s36]]
  %s38 = scalar_lea.smem %s0, 19
  %s39 = sld [smem:[%s38]]
  %s40 = scalar_lea.smem %s0, 20
  %s41 = sld [smem:[%s40]]
  %s42 = scalar_lea.smem %s0, 21
  %s43 = sld [smem:[%s42]]
  %s44 = scalar_lea.smem %s0, 22
  %s45 = sld [smem:[%s44]]
  %s46 = scalar_lea.smem %s0, 23
  %s47 = sld [smem:[%s46]]
  %s48 = scalar_lea.smem %s0, 24
  %s49 = sld [smem:[%s48]]
  %s50 = scalar_lea.smem %s0, 25
  %s51 = sld [smem:[%s50]]
  %s52 = scalar_lea.smem %s0, 26
  %s53 = sld [smem:[%s52]]
  %s54 = scalar_lea.smem %s0, 27
  %s55 = sld [smem:[%s54]]
  %s56 = scalar_lea.smem %s0, 28
  %s57 = sld [smem:[%s56]]
  %s58 = scalar_lea.smem %s0, 29
  %s59 = sld [smem:[%s58]]
  %s60 = scalar_lea.smem %s0, 30
  %s61 = sld [smem:[%s60]]
  %s62 = scalar_lea.smem %s0, 31
  %s63 = sld [smem:[%s62]]
  %s64 = scalar_lea.smem %s0, 32
  %s65 = sld [smem:[%s64]]
  %s66 = scalar_lea.smem %s0, 33
  %s67 = sld [smem:[%s66]]
  %s68 = scalar_lea.smem %s0, 34
  %s69 = sld [smem:[%s68]]
  %s70 = scalar_lea.smem %s0, 35
  %s71 = sld [smem:[%s70]]
  %s72 = scalar_lea.smem %s0, 36
  %s73 = sld [smem:[%s72]]
  %s74 = scalar_lea.smem %s0, 37
  %s75 = sld [smem:[%s74]]
  %s76 = scalar_lea.smem %s0, 38
  %s77 = sld [smem:[%s76]]
  %s78 = scalar_lea.smem %s0, 39
  %s79 = sld [smem:[%s78]]
  %s80 = scalar_lea.smem %s0, 40
  %s81 = sld [smem:[%s80]]
  %s82 = sld [smem:[#allocation0]]
  $region170: #{clip_encoder_forward.1} parent=0
    _
  %s84 = ssub.s32 1, %s82
  %s85 = scalar_select 0, %s84, %s82
  $region1: #{clip_encoder_forward.1} parent=0
    #allocation2 [shape = 'u8[1024]{0}', space=vmem, size = 0x400, scoped, tag = 'output window, operand 0, single buffered']
    #allocation3 [shape = 's32[1]{0}', space=sflag, size = 0x4, scoped, tag = 'scoped memory for clip_encoder_forward.1']
    %86 = vsyncpa [#allocation3], 0
    // Predicated region
    $region2: #{clip_encoder_forward.1} parent=1 // pred_check
      _
    $region3: #{clip_encoder_forward.1} parent=1 // pred_check_branch
      %88 = sbr.rel (0) target = $region5
    $region4: #{clip_encoder_forward.1} parent=1 // pred_region
      _
    $region5: #{clip_encoder_forward.1} parent=1 // pred_fallthru
      _
    // Predicated region
    $region6: #{clip_encoder_forward.1} parent=1 // pred_check
      _
    $region7: #{clip_encoder_forward.1} parent=1 // pred_check_branch
      %90 = sbr.rel (0) target = $region9
    $region8: #{clip_encoder_forward.1} parent=1 // pred_region
      _
    $region9: #{clip_encoder_forward.1} parent=1 // pred_fallthru
      _
    // Predicated region
    $region10: #{clip_encoder_forward.1} parent=1 // pred_check
      _
    $region11: #{clip_encoder_forward.1} parent=1 // pred_check_branch
      %92 = sbr.rel (0) target = $region13
    $region12: #{clip_encoder_forward.1} parent=1 // pred_region
      _
    $region13: #{clip_encoder_forward.1} parent=1 // pred_fallthru
      _
    // Predicated region
    $region14: #{clip_encoder_forward.1} parent=1 // pred_check
      _
    $region15: #{clip_encoder_forward.1} parent=1 // pred_check_branch
      %94 = sbr.rel (0) target = $region17
    $region16: #{clip_encoder_forward.1} parent=1 // pred_region
      _
    $region17: #{clip_encoder_forward.1} parent=1 // pred_fallthru
      _
    // Predicated region
    $region18: #{clip_encoder_forward.1} parent=1 // pred_check
      _
    $region19: #{clip_encoder_forward.1} parent=1 // pred_check_branch
      %96 = sbr.rel (0) target = $region21
    $region20: #{clip_encoder_forward.1} parent=1 // pred_region
      _
    $region21: #{clip_encoder_forward.1} parent=1 // pred_fallthru
      _
    // Predicated region
    $region22: #{clip_encoder_forward.1} parent=1 // pred_check
      _
    $region23: #{clip_encoder_forward.1} parent=1 // pred_check_branch
      %98 = sbr.rel (0) target = $region25
    $region24: #{clip_encoder_forward.1} parent=1 // pred_region
      _
    $region25: #{clip_encoder_forward.1} parent=1 // pred_fallthru
      _
    // Predicated region
    $region26: #{clip_encoder_forward.1} parent=1 // pred_check
      _
    $region27: #{clip_encoder_forward.1} parent=1 // pred_check_branch
      %100 = sbr.rel (0) target = $region29
    $region28: #{clip_encoder_forward.1} parent=1 // pred_region
      _
    $region29: #{clip_encoder_forward.1} parent=1 // pred_fallthru
      _
    // Predicated region
    $region30: #{clip_encoder_forward.1} parent=1 // pred_check
      _
    $region31: #{clip_encoder_forward.1} parent=1 // pred_check_branch
      %102 = sbr.rel (0) target = $region33
    $region32: #{clip_encoder_forward.1} parent=1 // pred_region
      _
    $region33: #{clip_encoder_forward.1} parent=1 // pred_fallthru
      _
    // Predicated region
    $region34: #{clip_encoder_forward.1} parent=1 // pred_check
      _
    $region35: #{clip_encoder_forward.1} parent=1 // pred_check_branch
      %104 = sbr.rel (0) target = $region37
    $region36: #{clip_encoder_forward.1} parent=1 // pred_region
      _
    $region37: #{clip_encoder_forward.1} parent=1 // pred_fallthru
      _
    // Predicated region
    $region38: #{clip_encoder_forward.1} parent=1 // pred_check
      _
    $region39: #{clip_encoder_forward.1} parent=1 // pred_check_branch
      %106 = sbr.rel (0) target = $region41
    $region40: #{clip_encoder_forward.1} parent=1 // pred_region
      _
    $region41: #{clip_encoder_forward.1} parent=1 // pred_fallthru
      _
    // Predicated region
    $region42: #{clip_encoder_forward.1} parent=1 // pred_check
      _
    $region43: #{clip_encoder_forward.1} parent=1 // pred_check_branch
      %108 = sbr.rel (0) target = $region45
    $region44: #{clip_encoder_forward.1} parent=1 // pred_region
      _
    $region45: #{clip_encoder_forward.1} parent=1 // pred_fallthru
      _
    // Predicated region
    $region46: #{clip_encoder_forward.1} parent=1 // pred_check
      _
    $region47: #{clip_encoder_forward.1} parent=1 // pred_check_branch
      %110 = sbr.rel (0) target = $region49
    $region48: #{clip_encoder_forward.1} parent=1 // pred_region
      _
    $region49: #{clip_encoder_forward.1} parent=1 // pred_fallthru
      _
    // Predicated region
    $region50: #{clip_encoder_forward.1} parent=1 // pred_check
      _
    $region51: #{clip_encoder_forward.1} parent=1 // pred_check_branch
      %112 = sbr.rel (0) target = $region53
    $region52: #{clip_encoder_forward.1} parent=1 // pred_region
      _
    $region53: #{clip_encoder_forward.1} parent=1 // pred_fallthru
      _
    // Predicated region
    $region54: #{clip_encoder_forward.1} parent=1 // pred_check
      _
    $region55: #{clip_encoder_forward.1} parent=1 // pred_check_branch
      %114 = sbr.rel (0) target = $region57
    $region56: #{clip_encoder_forward.1} parent=1 // pred_region
      _
    $region57: #{clip_encoder_forward.1} parent=1 // pred_fallthru
      _
    // Predicated region
    $region58: #{clip_encoder_forward.1} parent=1 // pred_check
      _
    $region59: #{clip_encoder_forward.1} parent=1 // pred_check_branch
      %116 = sbr.rel (0) target = $region61
    $region60: #{clip_encoder_forward.1} parent=1 // pred_region
      _
    $region61: #{clip_encoder_forward.1} parent=1 // pred_fallthru
      _
    // Predicated region
    $region62: #{clip_encoder_forward.1} parent=1 // pred_check
      _
    $region63: #{clip_encoder_forward.1} parent=1 // pred_check_branch
      %118 = sbr.rel (0) target = $region65
    $region64: #{clip_encoder_forward.1} parent=1 // pred_region
      _
    $region65: #{clip_encoder_forward.1} parent=1 // pred_fallthru
      _
    // Predicated region
    $region66: #{clip_encoder_forward.1} parent=1 // pred_check
      _
    $region67: #{clip_encoder_forward.1} parent=1 // pred_check_branch
      %120 = sbr.rel (0) target = $region69
    $region68: #{clip_encoder_forward.1} parent=1 // pred_region
      _
    $region69: #{clip_encoder_forward.1} parent=1 // pred_fallthru
      _
    // Predicated region
    $region70: #{clip_encoder_forward.1} parent=1 // pred_check
      _
    $region71: #{clip_encoder_forward.1} parent=1 // pred_check_branch
      %122 = sbr.rel (0) target = $region73
    $region72: #{clip_encoder_forward.1} parent=1 // pred_region
      _
    $region73: #{clip_encoder_forward.1} parent=1 // pred_fallthru
      _
    // Predicated region
    $region74: #{clip_encoder_forward.1} parent=1 // pred_check
      _
    $region75: #{clip_encoder_forward.1} parent=1 // pred_check_branch
      %124 = sbr.rel (0) target = $region77
    $region76: #{clip_encoder_forward.1} parent=1 // pred_region
      _
    $region77: #{clip_encoder_forward.1} parent=1 // pred_fallthru
      _
    // Predicated region
    $region78: #{clip_encoder_forward.1} parent=1 // pred_check
      _
    $region79: #{clip_encoder_forward.1} parent=1 // pred_check_branch
      %126 = sbr.rel (0) target = $region81
    $region80: #{clip_encoder_forward.1} parent=1 // pred_region
      _
    $region81: #{clip_encoder_forward.1} parent=1 // pred_fallthru
      _
    // Predicated region
    $region82: #{clip_encoder_forward.1} parent=1 // pred_check
      _
    $region83: #{clip_encoder_forward.1} parent=1 // pred_check_branch
      %128 = sbr.rel (0) target = $region85
    $region84: #{clip_encoder_forward.1} parent=1 // pred_region
      _
    $region85: #{clip_encoder_forward.1} parent=1 // pred_fallthru
      _
    // Predicated region
    $region86: #{clip_encoder_forward.1} parent=1 // pred_check
      _
    $region87: #{clip_encoder_forward.1} parent=1 // pred_check_branch
      %130 = sbr.rel (0) target = $region89
    $region88: #{clip_encoder_forward.1} parent=1 // pred_region
      _
    $region89: #{clip_encoder_forward.1} parent=1 // pred_fallthru
      _
    // Predicated region
    $region90: #{clip_encoder_forward.1} parent=1 // pred_check
      _
    $region91: #{clip_encoder_forward.1} parent=1 // pred_check_branch
      %132 = sbr.rel (0) target = $region93
    $region92: #{clip_encoder_forward.1} parent=1 // pred_region
      _
    $region93: #{clip_encoder_forward.1} parent=1 // pred_fallthru
      _
    // Predicated region
    $region94: #{clip_encoder_forward.1} parent=1 // pred_check
      _
    $region95: #{clip_encoder_forward.1} parent=1 // pred_check_branch
      %134 = sbr.rel (0) target = $region97
    $region96: #{clip_encoder_forward.1} parent=1 // pred_region
      _
    $region97: #{clip_encoder_forward.1} parent=1 // pred_fallthru
      _
    // Predicated region
    $region98: #{clip_encoder_forward.1} parent=1 // pred_check
      _
    $region99: #{clip_encoder_forward.1} parent=1 // pred_check_branch
      %136 = sbr.rel (0) target = $region101
    $region100: #{clip_encoder_forward.1} parent=1 // pred_region
      _
    $region101: #{clip_encoder_forward.1} parent=1 // pred_fallthru
      _
    // Predicated region
    $region102: #{clip_encoder_forward.1} parent=1 // pred_check
      _
    $region103: #{clip_encoder_forward.1} parent=1 // pred_check_branch
      %138 = sbr.rel (0) target = $region105
    $region104: #{clip_encoder_forward.1} parent=1 // pred_region
      _
    $region105: #{clip_encoder_forward.1} parent=1 // pred_fallthru
      _
    // Predicated region
    $region106: #{clip_encoder_forward.1} parent=1 // pred_check
      _
    $region107: #{clip_encoder_forward.1} parent=1 // pred_check_branch
      %140 = sbr.rel (0) target = $region109
    $region108: #{clip_encoder_forward.1} parent=1 // pred_region
      _
    $region109: #{clip_encoder_forward.1} parent=1 // pred_fallthru
      _
    // Predicated region
    $region110: #{clip_encoder_forward.1} parent=1 // pred_check
      _
    $region111: #{clip_encoder_forward.1} parent=1 // pred_check_branch
      %142 = sbr.rel (0) target = $region113
    $region112: #{clip_encoder_forward.1} parent=1 // pred_region
      _
    $region113: #{clip_encoder_forward.1} parent=1 // pred_fallthru
      _
    // Predicated region
    $region114: #{clip_encoder_forward.1} parent=1 // pred_check
      _
    $region115: #{clip_encoder_forward.1} parent=1 // pred_check_branch
      %144 = sbr.rel (0) target = $region117
    $region116: #{clip_encoder_forward.1} parent=1 // pred_region
      _
    $region117: #{clip_encoder_forward.1} parent=1 // pred_fallthru
      _
    // Predicated region
    $region118: #{clip_encoder_forward.1} parent=1 // pred_check
      _
    $region119: #{clip_encoder_forward.1} parent=1 // pred_check_branch
      %146 = sbr.rel (0) target = $region121
    $region120: #{clip_encoder_forward.1} parent=1 // pred_region
      _
    $region121: #{clip_encoder_forward.1} parent=1 // pred_fallthru
      _
    // Predicated region
    $region122: #{clip_encoder_forward.1} parent=1 // pred_check
      _
    $region123: #{clip_encoder_forward.1} parent=1 // pred_check_branch
      %148 = sbr.rel (0) target = $region125
    $region124: #{clip_encoder_forward.1} parent=1 // pred_region
      _
    $region125: #{clip_encoder_forward.1} parent=1 // pred_fallthru
      _
    // Predicated region
    $region126: #{clip_encoder_forward.1} parent=1 // pred_check
      _
    $region127: #{clip_encoder_forward.1} parent=1 // pred_check_branch
      %150 = sbr.rel (0) target = $region129
    $region128: #{clip_encoder_forward.1} parent=1 // pred_region
      _
    $region129: #{clip_encoder_forward.1} parent=1 // pred_fallthru
      _
    // Predicated region
    $region130: #{clip_encoder_forward.1} parent=1 // pred_check
      _
    $region131: #{clip_encoder_forward.1} parent=1 // pred_check_branch
      %152 = sbr.rel (0) target = $region133
    $region132: #{clip_encoder_forward.1} parent=1 // pred_region
      _
    $region133: #{clip_encoder_forward.1} parent=1 // pred_fallthru
      _
    // Predicated region
    $region134: #{clip_encoder_forward.1} parent=1 // pred_check
      _
    $region135: #{clip_encoder_forward.1} parent=1 // pred_check_branch
      %154 = sbr.rel (0) target = $region137
    $region136: #{clip_encoder_forward.1} parent=1 // pred_region
      _
    $region137: #{clip_encoder_forward.1} parent=1 // pred_fallthru
      _
    // Predicated region
    $region138: #{clip_encoder_forward.1} parent=1 // pred_check
      _
    $region139: #{clip_encoder_forward.1} parent=1 // pred_check_branch
      %156 = sbr.rel (0) target = $region141
    $region140: #{clip_encoder_forward.1} parent=1 // pred_region
      _
    $region141: #{clip_encoder_forward.1} parent=1 // pred_fallthru
      _
    // Predicated region
    $region142: #{clip_encoder_forward.1} parent=1 // pred_check
      _
    $region143: #{clip_encoder_forward.1} parent=1 // pred_check_branch
      %158 = sbr.rel (0) target = $region145
    $region144: #{clip_encoder_forward.1} parent=1 // pred_region
      _
    $region145: #{clip_encoder_forward.1} parent=1 // pred_fallthru
      _
    // Predicated region
    $region146: #{clip_encoder_forward.1} parent=1 // pred_check
      _
    $region147: #{clip_encoder_forward.1} parent=1 // pred_check_branch
      %160 = sbr.rel (0) target = $region149
    $region148: #{clip_encoder_forward.1} parent=1 // pred_region
      _
    $region149: #{clip_encoder_forward.1} parent=1 // pred_fallthru
      _
    // Predicated region
    $region150: #{clip_encoder_forward.1} parent=1 // pred_check
      _
    $region151: #{clip_encoder_forward.1} parent=1 // pred_check_branch
      %162 = sbr.rel (0) target = $region153
    $region152: #{clip_encoder_forward.1} parent=1 // pred_region
      _
    $region153: #{clip_encoder_forward.1} parent=1 // pred_fallthru
      _
    // Predicated region
    $region154: #{clip_encoder_forward.1} parent=1 // pred_check
      _
    $region155: #{clip_encoder_forward.1} parent=1 // pred_check_branch
      %164 = sbr.rel (0) target = $region157
    $region156: #{clip_encoder_forward.1} parent=1 // pred_region
      _
    $region157: #{clip_encoder_forward.1} parent=1 // pred_fallthru
      _
    // Predicated region
    $region158: #{clip_encoder_forward.1} parent=1 // pred_check
      _
    $region159: #{clip_encoder_forward.1} parent=1 // pred_check_branch
      %166 = sbr.rel (0) target = $region161
    $region160: #{clip_encoder_forward.1} parent=1 // pred_region
      _
    $region161: #{clip_encoder_forward.1} parent=1 // pred_fallthru
      _
    %v167 = vld [vmem:[%s1] sm:$0xff]
    %v168 = vld [vmem:[%s1 + $0x8] sm:$0xff]
    %v169 = vld [vmem:[%s1 + $0x10] sm:$0x3]
    %v170 = vld [vmem:[%s1 + $0x18] sm:$0x3]
    %v171 = vld [vmem:[%s3] sm:$0xff]
    %v172 = vld [vmem:[%s3 + $0x8] sm:$0x3]
    %v173 = vld [vmem:[%s5] sm:$0xff]
    %v174 = vld [vmem:[%s5 + $0x8] sm:$0x3]
    %v175 = vld [vmem:[%s7] sm:$0xff]
    %v176 = vld [vmem:[%s7 + $0x8] sm:$0xff]
    %v177 = vld [vmem:[%s7 + $0x10] sm:$0xff]
    %v178 = vld [vmem:[%s7 + $0x18] sm:$0xff]
    %v179 = vld [vmem:[%s7 + $0x20] sm:$0xff]
    %v180 = vld [vmem:[%s7 + $0x28] sm:$0xff]
    %v181 = vld [vmem:[%s7 + $0x30] sm:$0xff]
    %v182 = vld [vmem:[%s7 + $0x38] sm:$0xff]
    %v183 = vld [vmem:[%s7 + $0x40] sm:$0xff]
    %v184 = vld [vmem:[%s7 + $0x48] sm:$0xff]
    %v185 = vld [vmem:[%s7 + $0x50] sm:$0xff]
    %v186 = vld [vmem:[%s7 + $0x58] sm:$0xff]
    %v187 = vld [vmem:[%s7 + $0x60] sm:$0xff]
    %v188 = vld [vmem:[%s7 + $0x68] sm:$0xff]
    %v189 = vld [vmem:[%s7 + $0x70] sm:$0xff]
    %v190 = vld [vmem:[%s7 + $0x78] sm:$0xff]
    %v191 = vld [vmem:[%s7 + $0x80] sm:$0xff]
    %v192 = vld [vmem:[%s7 + $0x88] sm:$0xff]
    %v193 = vld [vmem:[%s7 + $0x90] sm:$0xff]
    %v194 = vld [vmem:[%s7 + $0x98] sm:$0xff]
    %v195 = vld [vmem:[%s7 + $0xa0] sm:$0xff]
    %v196 = vld [vmem:[%s7 + $0xa8] sm:$0xff]
    %v197 = vld [vmem:[%s7 + $0xb0] sm:$0xff]
    %v198 = vld [vmem:[%s7 + $0xb8] sm:$0xff]
    %v199 = vld [vmem:[%s7 + $0xc0] sm:$0x1]
    %v200 = vld [vmem:[%s9] sm:$0x1]
    %v201 = vld [vmem:[%s11] sm:$0x1]
    %v202 = vld [vmem:[%s13] sm:$0x1]
    %v203 = vld [vmem:[%s15] sm:$0x1]
    %v204 = vld [vmem:[%s17] sm:$0xff]
    %v205 = vld [vmem:[%s17 + $0x8] sm:$0xff]
    %v206 = vld [vmem:[%s17 + $0x10] sm:$0xff]
    %v207 = vld [vmem:[%s17 + $0x18] sm:$0xff]
    %v208 = vld [vmem:[%s19] sm:$0x1]
    %v209 = vld [vmem:[%s21] sm:$0xff]
    %v210 = vld [vmem:[%s21 + $0x8] sm:$0xff]
    %v211 = vld [vmem:[%s21 + $0x10] sm:$0xff]
    %v212 = vld [vmem:[%s21 + $0x18] sm:$0xff]
    %v213 = vld [vmem:[%s23] sm:$0x1]
    %v214 = vld [vmem:[%s25] sm:$0x1]
    %v215 = vld [vmem:[%s27] sm:$0x1]
    %v216 = vld [vmem:[%s29] sm:$0xff]
    %v217 = vld [vmem:[%s29 + $0x8] sm:$0xff]
    %v218 = vld [vmem:[%s29 + $0x10] sm:$0xff]
    %v219 = vld [vmem:[%s29 + $0x18] sm:$0xff]
    %v220 = vld [vmem:[%s31] sm:$0x1]
    %v221 = vld [vmem:[%s33] sm:$0xff]
    %v222 = vld [vmem:[%s33 + $0x8] sm:$0xff]
    %v223 = vld [vmem:[%s33 + $0x10] sm:$0xff]
    %v224 = vld [vmem:[%s33 + $0x18] sm:$0xff]
    %v225 = vld [vmem:[%s33 + $0x20] sm:$0xff]
    %v226 = vld [vmem:[%s33 + $0x28] sm:$0xff]
    %v227 = vld [vmem:[%s33 + $0x30] sm:$0xff]
    %v228 = vld [vmem:[%s33 + $0x38] sm:$0xff]
    %v229 = vld [vmem:[%s35] sm:$0x1]
    %s230 = scalar_lea.vmem %s13, 1
    %v231 = vld [vmem:[%s230] sm:$0x1]
    %s232 = scalar_lea.vmem %s15, 1
    %v233 = vld [vmem:[%s232] sm:$0x1]
    %s234 = scalar_lea.vmem %s17, 32
    %v235 = vld [vmem:[%s234] sm:$0xff]
    %v236 = vld [vmem:[%s234 + $0x8] sm:$0xff]
    %v237 = vld [vmem:[%s234 + $0x10] sm:$0xff]
    %v238 = vld [vmem:[%s234 + $0x18] sm:$0xff]
    %s239 = scalar_lea.vmem %s19, 1
    %v240 = vld [vmem:[%s239] sm:$0x1]
    %s241 = scalar_lea.vmem %s21, 32
    %v242 = vld [vmem:[%s241] sm:$0xff]
    %v243 = vld [vmem:[%s241 + $0x8] sm:$0xff]
    %v244 = vld [vmem:[%s241 + $0x10] sm:$0xff]
    %v245 = vld [vmem:[%s241 + $0x18] sm:$0xff]
    %s246 = scalar_lea.vmem %s23, 1
    %v247 = vld [vmem:[%s246] sm:$0x1]
    %s248 = scalar_lea.vmem %s25, 1
    %v249 = vld [vmem:[%s248] sm:$0x1]
    %s250 = scalar_lea.vmem %s27, 1
    %v251 = vld [vmem:[%s250] sm:$0x1]
    %s252 = scalar_lea.vmem %s29, 32
    %v253 = vld [vmem:[%s252] sm:$0xff]
    %v254 = vld [vmem:[%s252 + $0x8] sm:$0xff]
    %v255 = vld [vmem:[%s252 + $0x10] sm:$0xff]
    %v256 = vld [vmem:[%s252 + $0x18] sm:$0xff]
    %s257 = scalar_lea.vmem %s31, 1
    %v258 = vld [vmem:[%s257] sm:$0x1]
    %s259 = scalar_lea.vmem %s33, 64
    %v260 = vld [vmem:[%s259] sm:$0xff]
    %v261 = vld [vmem:[%s259 + $0x8] sm:$0xff]
    %v262 = vld [vmem:[%s259 + $0x10] sm:$0xff]
    %v263 = vld [vmem:[%s259 + $0x18] sm:$0xff]
    %v264 = vld [vmem:[%s259 + $0x20] sm:$0xff]
    %v265 = vld [vmem:[%s259 + $0x28] sm:$0xff]
    %v266 = vld [vmem:[%s259 + $0x30] sm:$0xff]
    %v267 = vld [vmem:[%s259 + $0x38] sm:$0xff]
    %s268 = scalar_lea.vmem %s35, 1
    %v269 = vld [vmem:[%s268] sm:$0x1]
    %v270 = vld [vmem:[%s37] sm:$0x1]
    %v271 = vld [vmem:[%s39] sm:$0x1]
    %v272 = vld [vmem:[%s41] sm:$0xff]
    %v273 = vld [vmem:[%s41 + $0x8] sm:$0xff]
    %v274 = vld [vmem:[%s41 + $0x10] sm:$0xff]
    %v275 = vld [vmem:[%s41 + $0x18] sm:$0xff]
    %v276 = vld [vmem:[%s43] sm:$0x3]
    %vm277 = vcmask 531456
    %v279 = vsel %vm277, %v168, 0
    %v282 = vsel %vm277, %v170, 0
    %vm284 = vcmask 1040384
    %v286 = vsel %vm284, %v199, 0
    %288 = vmatprep.subr.mxu0 0.0
    %289 = vmatpush1.msra.mxu0 %v175
    %290 = vmatprep.subr.mxu0 0.0
    %291 = vmatpush1.msra.mxu0 %v176
    %292 = vmatprep.subr.mxu0 0.0
    %293 = vmatpush1.msra.mxu0 %v177
    %294 = vmatprep.subr.mxu0 0.0
    %295 = vmatpush1.msra.mxu0 %v178
    %296 = vmatprep.subr.mxu0 0.0
    %297 = vmatpush1.msra.mxu0 %v179
    %298 = vmatprep.subr.mxu0 0.0
    %299 = vmatpush1.msra.mxu0 %v180
    %300 = vmatprep.subr.mxu0 0.0
    %301 = vmatpush1.msra.mxu0 %v181
    %302 = vmatprep.subr.mxu0 0.0
    %303 = vmatpush1.msra.mxu0 %v182
    %304 = vmatprep.subr.mxu0 0.0
    %305 = vmatpush1.msra.mxu0 %v183
    %306 = vmatprep.subr.mxu0 0.0
    %307 = vmatpush1.msra.mxu0 %v184
    %308 = vmatprep.subr.mxu0 0.0
    %309 = vmatpush1.msra.mxu0 %v185
    %310 = vmatprep.subr.mxu0 0.0
    %311 = vmatpush1.msra.mxu0 %v186
    %312 = vmatprep.subr.mxu0 0.0
    %313 = vmatpush1.msra.mxu0 %v187
    %314 = vmatprep.subr.mxu0 0.0
    %315 = vmatpush1.msra.mxu0 %v188
    %316 = vmatprep.subr.mxu0 0.0
    %317 = vmatpush1.msra.mxu0 %v189
    %318 = vmatprep.subr.mxu0 0.0
    %319 = vmatpush1.msra.mxu0 %v190
    %320 = vmatprep.subr.mxu0 0.0
    %321 = vmatpush1.msra.mxu0 %v191
    %322 = vmatprep.subr.mxu0 0.0
    %323 = vmatpush1.msra.mxu0 %v192
    %324 = vmatprep.subr.mxu0 0.0
    %325 = vmatpush1.msra.mxu0 %v193
    %326 = vmatprep.subr.mxu0 0.0
    %327 = vmatpush1.msra.mxu0 %v194
    %328 = vmatprep.subr.mxu0 0.0
    %329 = vmatpush1.msra.mxu0 %v195
    %330 = vmatprep.subr.mxu0 0.0
    %331 = vmatpush1.msra.mxu0 %v196
    %332 = vmatprep.subr.mxu0 0.0
    %333 = vmatpush1.msra.mxu0 %v197
    %334 = vmatprep.subr.mxu0 0.0
    %335 = vmatpush1.msra.mxu0 %v198
    %336 = vmatprep.subr.mxu0 0.0
    %337 = vmatpush1.msra.mxu0 %v286
    %338 = vmatprep.subr.mxu0 0.0
    %339 = vmatpush1.msra.mxu0 0.0
    %340 = vmatprep.subr.mxu0 0.0
    %341 = vmatpush1.msra.mxu0 0.0
    %342 = vmatprep.subr.mxu0 0.0
    %343 = vmatpush1.msra.mxu0 0.0
    %344 = vmatprep.subr.mxu0 0.0
    %345 = vmatpush1.msra.mxu0 0.0
    %346 = vmatprep.subr.mxu0 0.0
    %347 = vmatpush1.msra.mxu0 0.0
    %348 = vmatprep.subr.mxu0 0.0
    %349 = vmatpush1.msra.mxu0 0.0
    %350 = vmatprep.subr.mxu0 0.0
    %351 = vmatpush1.msra.mxu0 0.0
    %352 = vmatprep.mubr.f32.mxu0 %v279
    %353 = vmatmul.mubr.f32.gmra.mrb[0].mxu0 %v167
    %v354 = vpop.f32.mrb[0].mxu0
    %v355 = vadd.f32 %v171, %v354
    %v356 = vpop.f32.mrb[0].mxu0
    %357 = vmatprep.mubr.f32.mxu0 %v282
    %358 = vmatmul.mubr.f32.gmra.mrb[0].mxu0 %v169
    %v359 = vpop.f32.mrb[0].mxu0
    %v360 = vadd.f32 %v172, %v359
    %v361 = vpop.f32.mrb[0].mxu0
    %362 = vdwg.mxu0
    %vm363 = vcmask 261120
    %v364 = vsel %vm363, %v355, 0.0
    %365 = vadd.xlane.f32.xlu0 %v364
    %v366 = vpop.xlane.xlu0 %365
    %vm367 = vcmask 254976
    %v368 = vsel %vm367, %v360, 0.0
    %369 = vadd.xlane.f32.xlu0 %v368
    %v370 = vpop.xlane.xlu0 %369
    %v371 = vrcp.pop 32.0
    %v372 = vmul.f32 %v366, %v371
    %v373 = vmul.f32 %v370, %v371
    %v374 = vsub.f32 %v355, %v372
    %v375 = vsub.f32 %v360, %v373
    %v376 = vmul.f32 %v374, %v374
    %v377 = vmul.f32 %v375, %v375
    %v378 = vsel %vm363, %v376, 0.0
    %379 = vadd.xlane.f32.xlu0 %v378
    %v380 = vpop.xlane.xlu0 %379
    %v381 = vsel %vm367, %v377, 0.0
    %382 = vadd.xlane.f32.xlu0 %v381
    %v383 = vpop.xlane.xlu0 %382
    %v384 = vmul.f32 %v380, %v371
    %v385 = vmul.f32 %v383, %v371
    %v386 = vadd.f32 %v384, 1e-05
    %v387 = vadd.f32 %v385, 1e-05
    %v388 = vrsqrt.pop %v386
    %v389 = vrsqrt.pop %v387
    %v390 = vmul.f32 %v374, %v388
    %v391 = vmul.f32 %v375, %v389
    %v393 = vlaneseq
    %v394 = vshrl.u32 %v393, 7
    %v395 = vsub.s32 0, %v394
    %v396 = vrot.slane %v200, %v395
    %v398 = vmul.f32 %v390, %v396
    %v399 = vmul.f32 %v391, %v396
    %v401 = vlaneseq
    %v402 = vshrl.u32 %v401, 7
    %v403 = vsub.s32 0, %v402
    %v404 = vrot.slane %v201, %v403
    %v406 = vadd.f32 %v398, %v404
    %v407 = vadd.f32 %v399, %v404
    %v408 = vsel %vm363, %v406, 0.0
    %409 = vadd.xlane.f32.xlu0 %v408
    %v410 = vpop.xlane.xlu0 %409
    %v411 = vsel %vm367, %v407, 0.0
    %412 = vadd.xlane.f32.xlu0 %v411
    %v413 = vpop.xlane.xlu0 %412
    %v414 = vmul.f32 %v410, %v371
    %v415 = vmul.f32 %v413, %v371
    %v416 = vsub.f32 %v406, %v414
    %v417 = vsub.f32 %v407, %v415
    %v418 = vmul.f32 %v416, %v416
    %v419 = vmul.f32 %v417, %v417
    %v420 = vsel %vm363, %v418, 0.0
    %421 = vadd.xlane.f32.xlu0 %v420
    %v422 = vpop.xlane.xlu0 %421
    %v423 = vsel %vm367, %v419, 0.0
    %424 = vadd.xlane.f32.xlu0 %v423
    %v425 = vpop.xlane.xlu0 %424
    %v426 = vmul.f32 %v422, %v371
    %v427 = vmul.f32 %v425, %v371
    %v428 = vadd.f32 %v426, 1e-05
    %v429 = vadd.f32 %v427, 1e-05
    %v430 = vrsqrt.pop %v428
    %v431 = vrsqrt.pop %v429
    %v432 = vmul.f32 %v416, %v430
    %v433 = vmul.f32 %v417, %v431
    %v435 = vlaneseq
    %v436 = vshrl.u32 %v435, 7
    %v437 = vsub.s32 0, %v436
    %v438 = vrot.slane %v202, %v437
    %v440 = vmul.f32 %v432, %v438
    %v441 = vmul.f32 %v433, %v438
    %v443 = vlaneseq
    %v444 = vshrl.u32 %v443, 7
    %v445 = vsub.s32 0, %v444
    %v446 = vrot.slane %v203, %v445
    %v448 = vadd.f32 %v440, %v446
    %v449 = vadd.f32 %v441, %v446
    %v451 = vlaneseq
    %v452 = vshrl.u32 %v451, 7
    %v453 = vsub.s32 0, %v452
    %v454 = vrot.slane %v208, %v453
    %v457 = vsel %vm363, %v448, 0
    %v460 = vsel %vm363, %v449, 0
    %462 = vmatprep.subr.mxu0 0.0
    %463 = vmatpush1.msra.mxu0 %v204
    %464 = vmatprep.subr.mxu0 0.0
    %465 = vmatpush1.msra.mxu0 %v205
    %466 = vmatprep.subr.mxu0 0.0
    %467 = vmatpush1.msra.mxu0 %v206
    %468 = vmatprep.subr.mxu0 0.0
    %469 = vmatpush1.msra.mxu0 %v207
    %470 = vmatprep.subr.mxu0 0.0
    %471 = vmatpush1.msra.mxu0 0.0
    %472 = vmatprep.subr.mxu0 0.0
    %473 = vmatpush1.msra.mxu0 0.0
    %474 = vmatprep.subr.mxu0 0.0
    %475 = vmatpush1.msra.mxu0 0.0
    %476 = vmatprep.subr.mxu0 0.0
    %477 = vmatpush1.msra.mxu0 0.0
    %478 = vmatprep.subr.mxu0 0.0
    %479 = vmatpush1.msra.mxu0 0.0
    %480 = vmatprep.subr.mxu0 0.0
    %481 = vmatpush1.msra.mxu0 0.0
    %482 = vmatprep.subr.mxu0 0.0
    %483 = vmatpush1.msra.mxu0 0.0
    %484 = vmatprep.subr.mxu0 0.0
    %485 = vmatpush1.msra.mxu0 0.0
    %486 = vmatprep.subr.mxu0 0.0
    %487 = vmatpush1.msra.mxu0 0.0
    %488 = vmatprep.subr.mxu0 0.0
    %489 = vmatpush1.msra.mxu0 0.0
    %490 = vmatprep.subr.mxu0 0.0
    %491 = vmatpush1.msra.mxu0 0.0
    %492 = vmatprep.subr.mxu0 0.0
    %493 = vmatpush1.msra.mxu0 0.0
    %494 = vmatprep.subr.mxu0 0.0
    %495 = vmatpush1.msra.mxu0 0.0
    %496 = vmatprep.subr.mxu0 0.0
    %497 = vmatpush1.msra.mxu0 0.0
    %498 = vmatprep.subr.mxu0 0.0
    %499 = vmatpush1.msra.mxu0 0.0
    %500 = vmatprep.subr.mxu0 0.0
    %501 = vmatpush1.msra.mxu0 0.0
    %502 = vmatprep.subr.mxu0 0.0
    %503 = vmatpush1.msra.mxu0 0.0
    %504 = vmatprep.subr.mxu0 0.0
    %505 = vmatpush1.msra.mxu0 0.0
    %506 = vmatprep.subr.mxu0 0.0
    %507 = vmatpush1.msra.mxu0 0.0
    %508 = vmatprep.subr.mxu0 0.0
    %509 = vmatpush1.msra.mxu0 0.0
    %510 = vmatprep.subr.mxu0 0.0
    %511 = vmatpush1.msra.mxu0 0.0
    %512 = vmatprep.subr.mxu0 0.0
    %513 = vmatpush1.msra.mxu0 0.0
    %514 = vmatprep.subr.mxu0 0.0
    %515 = vmatpush1.msra.mxu0 0.0
    %516 = vmatprep.subr.mxu0 0.0
    %517 = vmatpush1.msra.mxu0 0.0
    %518 = vmatprep.subr.mxu0 0.0
    %519 = vmatpush1.msra.mxu0 0.0
    %520 = vmatprep.subr.mxu0 0.0
    %521 = vmatpush1.msra.mxu0 0.0
    %522 = vmatprep.subr.mxu0 0.0
    %523 = vmatpush1.msra.mxu0 0.0
    %524 = vmatprep.subr.mxu0 0.0
    %525 = vmatpush1.msra.mxu0 0.0
    %526 = vmatprep.mubr.f32.mxu0 0.0
    %527 = vmatmul.mubr.f32.gmra.mrb[0].mxu0 %v457
    %v528 = vpop.f32.mrb[0].mxu0
    %v529 = vadd.f32 %v454, %v528
    %v530 = vpop.f32.mrb[0].mxu0
    %531 = vmatprep.mubr.f32.mxu0 0.0
    %532 = vmatmul.mubr.f32.gmra.mrb[0].mxu0 %v460
    %v533 = vpop.f32.mrb[0].mxu0
    %v534 = vadd.f32 %v454, %v533
    %v535 = vpop.f32.mrb[0].mxu0
    %536 = vdwg.mxu0
    %539 = vrot.lane.b32.xlu0 %v529, 96
    %v540 = vpop.permute.xlu0 %539
    %541 = vrot.lane.b32.xlu0 %v534, 96
    %v542 = vpop.permute.xlu0 %541
    %vm543 = vcmask 130048
    %v544 = vsel %vm543, %v529, 0
    %v546 = vsel %vm543, %v534, 0
    %v548 = vsel %vm543, %v540, 0
    %v550 = vsel %vm543, %v542, 0
    %552 = vmatprep.subr.mxu0 0.0
    %553 = vmatpush1.xpose.msra.mxu0 %v548
    %554 = vmatprep.subr.mxu0 0.0
    %555 = vmatpush1.xpose.msra.mxu0 %v550
    %556 = vmatprep.subr.mxu0 0.0
    %557 = vmatpush1.xpose.msra.mxu0 0.0
    %558 = vmatprep.subr.mxu0 0.0
    %559 = vmatpush1.xpose.msra.mxu0 0.0
    %560 = vmatprep.subr.mxu0 0.0
    %561 = vmatpush1.xpose.msra.mxu0 0.0
    %562 = vmatprep.subr.mxu0 0.0
    %563 = vmatpush1.xpose.msra.mxu0 0.0
    %564 = vmatprep.subr.mxu0 0.0
    %565 = vmatpush1.xpose.msra.mxu0 0.0
    %566 = vmatprep.subr.mxu0 0.0
    %567 = vmatpush1.xpose.msra.mxu0 0.0
    %568 = vmatprep.subr.mxu0 0.0
    %569 = vmatpush1.xpose.msra.mxu0 0.0
    %570 = vmatprep.subr.mxu0 0.0
    %571 = vmatpush1.xpose.msra.mxu0 0.0
    %572 = vmatprep.subr.mxu0 0.0
    %573 = vmatpush1.xpose.msra.mxu0 0.0
    %574 = vmatprep.subr.mxu0 0.0
    %575 = vmatpush1.xpose.msra.mxu0 0.0
    %576 = vmatprep.subr.mxu0 0.0
    %577 = vmatpush1.xpose.msra.mxu0 0.0
    %578 = vmatprep.subr.mxu0 0.0
    %579 = vmatpush1.xpose.msra.mxu0 0.0
    %580 = vmatprep.subr.mxu0 0.0
    %581 = vmatpush1.xpose.msra.mxu0 0.0
    %582 = vmatprep.subr.mxu0 0.0
    %583 = vmatpush1.xpose.msra.mxu0 0.0
    %584 = vmatprep.subr.mxu0 0.0
    %585 = vmatpush1.xpose.msra.mxu0 0.0
    %586 = vmatprep.subr.mxu0 0.0
    %587 = vmatpush1.xpose.msra.mxu0 0.0
    %588 = vmatprep.subr.mxu0 0.0
    %589 = vmatpush1.xpose.msra.mxu0 0.0
    %590 = vmatprep.subr.mxu0 0.0
    %591 = vmatpush1.xpose.msra.mxu0 0.0
    %592 = vmatprep.subr.mxu0 0.0
    %593 = vmatpush1.xpose.msra.mxu0 0.0
    %594 = vmatprep.subr.mxu0 0.0
    %595 = vmatpush1.xpose.msra.mxu0 0.0
    %596 = vmatprep.subr.mxu0 0.0
    %597 = vmatpush1.xpose.msra.mxu0 0.0
    %598 = vmatprep.subr.mxu0 0.0
    %599 = vmatpush1.xpose.msra.mxu0 0.0
    %600 = vmatprep.subr.mxu0 0.0
    %601 = vmatpush1.xpose.msra.mxu0 0.0
    %602 = vmatprep.subr.mxu0 0.0
    %603 = vmatpush1.xpose.msra.mxu0 0.0
    %604 = vmatprep.subr.mxu0 0.0
    %605 = vmatpush1.xpose.msra.mxu0 0.0
    %606 = vmatprep.subr.mxu0 0.0
    %607 = vmatpush1.xpose.msra.mxu0 0.0
    %608 = vmatprep.subr.mxu0 0.0
    %609 = vmatpush1.xpose.msra.mxu0 0.0
    %610 = vmatprep.subr.mxu0 0.0
    %611 = vmatpush1.xpose.msra.mxu0 0.0
    %612 = vmatprep.subr.mxu0 0.0
    %613 = vmatpush1.xpose.msra.mxu0 0.0
    %614 = vmatprep.subr.mxu0 0.0
    %615 = vmatpush1.xpose.msra.mxu0 0.0
    %616 = vmatprep.mubr.f32.mxu0 0.0
    %617 = vmatmul.mubr.f32.gmra.mrb[0].mxu0 %v544
    %v618 = vpop.f32.mrb[0].mxu0
    %v619 = vadd.f32 0.0, %v618
    %v620 = vpop.f32.mrb[0].mxu0
    %621 = vmatprep.mubr.f32.mxu0 0.0
    %622 = vmatmul.mubr.f32.gmra.mrb[0].mxu0 %v546
    %v623 = vpop.f32.mrb[0].mxu0
    %v624 = vadd.f32 0.0, %v623
    %v625 = vpop.f32.mrb[0].mxu0
    %626 = vdwg.mxu0
    %v627 = vmul.f32 %v619, 0.25
    %v628 = vmul.f32 %v624, 0.25
    %v629 = vadd.f32 %v627, %v173
    %v630 = vadd.f32 %v628, %v174
    %vm631 = vcmask 80896
    %v632 = vsel %vm631, %v629, -inf
    %633 = vmax.xlane.f32.xlu0 %v632
    %v634 = vpop.xlane.xlu0 %633
    %vm635 = vcmask 74752
    %v636 = vsel %vm635, %v630, -inf
    %637 = vmax.xlane.f32.xlu0 %v636
    %v638 = vpop.xlane.xlu0 %637
    %v639 = vsub.f32 %v629, %v634
    %v640 = vsub.f32 %v630, %v638
    %v641 = vmul.f32 %v639, 1.442695
    %v642 = vpow.pop %v641
    %v643 = vmul.f32 %v640, 1.442695
    %v644 = vpow.pop %v643
    %v645 = vsel %vm631, %v642, 0.0
    %646 = vadd.xlane.f32.xlu0 %v645
    %v647 = vpop.xlane.xlu0 %646
    %v648 = vsel %vm635, %v644, 0.0
    %649 = vadd.xlane.f32.xlu0 %v648
    %v650 = vpop.xlane.xlu0 %649
    %v651 = vrcp.pop %v647
    %v652 = vrcp.pop %v650
    %v653 = vmul.f32 %v642, %v651
    %v654 = vmul.f32 %v644, %v652
    %655 = vrot.lane.b32.xlu0 %v529, 64
    %v656 = vpop.permute.xlu0 %655
    %657 = vrot.lane.b32.xlu0 %v534, 64
    %v658 = vpop.permute.xlu0 %657
    %v661 = vsel %vm631, %v653, 0
    %v664 = vsel %vm631, %v654, 0
    %vm666 = vcmask 1041408
    %v667 = vsel %vm666, %v658, 0
    %669 = vmatprep.subr.mxu0 0.0
    %670 = vmatpush1.msra.mxu0 %v656
    %671 = vmatprep.subr.mxu0 0.0
    %672 = vmatpush1.msra.mxu0 %v667
    %673 = vmatprep.subr.mxu0 0.0
    %674 = vmatpush1.msra.mxu0 0.0
    %675 = vmatprep.subr.mxu0 0.0
    %676 = vmatpush1.msra.mxu0 0.0
    %677 = vmatprep.subr.mxu0 0.0
    %678 = vmatpush1.msra.mxu0 0.0
    %679 = vmatprep.subr.mxu0 0.0
    %680 = vmatpush1.msra.mxu0 0.0
    %681 = vmatprep.subr.mxu0 0.0
    %682 = vmatpush1.msra.mxu0 0.0
    %683 = vmatprep.subr.mxu0 0.0
    %684 = vmatpush1.msra.mxu0 0.0
    %685 = vmatprep.subr.mxu0 0.0
    %686 = vmatpush1.msra.mxu0 0.0
    %687 = vmatprep.subr.mxu0 0.0
    %688 = vmatpush1.msra.mxu0 0.0
    %689 = vmatprep.subr.mxu0 0.0
    %690 = vmatpush1.msra.mxu0 0.0
    %691 = vmatprep.subr.mxu0 0.0
    %692 = vmatpush1.msra.mxu0 0.0
    %693 = vmatprep.subr.mxu0 0.0
    %694 = vmatpush1.msra.mxu0 0.0
    %695 = vmatprep.subr.mxu0 0.0
    %696 = vmatpush1.msra.mxu0 0.0
    %697 = vmatprep.subr.mxu0 0.0
    %698 = vmatpush1.msra.mxu0 0.0
    %699 = vmatprep.subr.mxu0 0.0
    %700 = vmatpush1.msra.mxu0 0.0
    %701 = vmatprep.subr.mxu0 0.0
    %702 = vmatpush1.msra.mxu0 0.0
    %703 = vmatprep.subr.mxu0 0.0
    %704 = vmatpush1.msra.mxu0 0.0
    %705 = vmatprep.subr.mxu0 0.0
    %706 = vmatpush1.msra.mxu0 0.0
    %707 = vmatprep.subr.mxu0 0.0
    %708 = vmatpush1.msra.mxu0 0.0
    %709 = vmatprep.subr.mxu0 0.0
    %710 = vmatpush1.msra.mxu0 0.0
    %711 = vmatprep.subr.mxu0 0.0
    %712 = vmatpush1.msra.mxu0 0.0
    %713 = vmatprep.subr.mxu0 0.0
    %714 = vmatpush1.msra.mxu0 0.0
    %715 = vmatprep.subr.mxu0 0.0
    %716 = vmatpush1.msra.mxu0 0.0
    %717 = vmatprep.subr.mxu0 0.0
    %718 = vmatpush1.msra.mxu0 0.0
    %719 = vmatprep.subr.mxu0 0.0
    %720 = vmatpush1.msra.mxu0 0.0
    %721 = vmatprep.subr.mxu0 0.0
    %722 = vmatpush1.msra.mxu0 0.0
    %723 = vmatprep.subr.mxu0 0.0
    %724 = vmatpush1.msra.mxu0 0.0
    %725 = vmatprep.subr.mxu0 0.0
    %726 = vmatpush1.msra.mxu0 0.0
    %727 = vmatprep.subr.mxu0 0.0
    %728 = vmatpush1.msra.mxu0 0.0
    %729 = vmatprep.subr.mxu0 0.0
    %730 = vmatpush1.msra.mxu0 0.0
    %731 = vmatprep.subr.mxu0 0.0
    %732 = vmatpush1.msra.mxu0 0.0
    %733 = vmatprep.mubr.f32.mxu0 0.0
    %734 = vmatmul.mubr.f32.gmra.mrb[0].mxu0 %v661
    %v735 = vpop.f32.mrb[0].mxu0
    %v736 = vadd.f32 0.0, %v735
    %v737 = vpop.f32.mrb[0].mxu0
    %738 = vmatprep.mubr.f32.mxu0 0.0
    %739 = vmatmul.mubr.f32.gmra.mrb[0].mxu0 %v664
    %v740 = vpop.f32.mrb[0].mxu0
    %v741 = vadd.f32 0.0, %v740
    %v742 = vpop.f32.mrb[0].mxu0
    %743 = vdwg.mxu0
    %744 = vrot.lane.b32.xlu0 %v529, 112
    %v745 = vpop.permute.xlu0 %744
    %746 = vrot.lane.b32.xlu0 %v534, 112
    %v747 = vpop.permute.xlu0 %746
    %748 = vrot.lane.b32.xlu0 %v529, 80
    %v749 = vpop.permute.xlu0 %748
    %750 = vrot.lane.b32.xlu0 %v534, 80
    %v751 = vpop.permute.xlu0 %750
    %v752 = vsel %vm543, %v745, 0
    %v754 = vsel %vm543, %v747, 0
    %v756 = vsel %vm543, %v749, 0
    %v758 = vsel %vm543, %v751, 0
    %760 = vmatprep.subr.mxu0 0.0
    %761 = vmatpush1.xpose.msra.mxu0 %v756
    %762 = vmatprep.subr.mxu0 0.0
    %763 = vmatpush1.xpose.msra.mxu0 %v758
    %764 = vmatprep.subr.mxu0 0.0
    %765 = vmatpush1.xpose.msra.mxu0 0.0
    %766 = vmatprep.subr.mxu0 0.0
    %767 = vmatpush1.xpose.msra.mxu0 0.0
    %768 = vmatprep.subr.mxu0 0.0
    %769 = vmatpush1.xpose.msra.mxu0 0.0
    %770 = vmatprep.subr.mxu0 0.0
    %771 = vmatpush1.xpose.msra.mxu0 0.0
    %772 = vmatprep.subr.mxu0 0.0
    %773 = vmatpush1.xpose.msra.mxu0 0.0
    %774 = vmatprep.subr.mxu0 0.0
    %775 = vmatpush1.xpose.msra.mxu0 0.0
    %776 = vmatprep.subr.mxu0 0.0
    %777 = vmatpush1.xpose.msra.mxu0 0.0
    %778 = vmatprep.subr.mxu0 0.0
    %779 = vmatpush1.xpose.msra.mxu0 0.0
    %780 = vmatprep.subr.mxu0 0.0
    %781 = vmatpush1.xpose.msra.mxu0 0.0
    %782 = vmatprep.subr.mxu0 0.0
    %783 = vmatpush1.xpose.msra.mxu0 0.0
    %784 = vmatprep.subr.mxu0 0.0
    %785 = vmatpush1.xpose.msra.mxu0 0.0
    %786 = vmatprep.subr.mxu0 0.0
    %787 = vmatpush1.xpose.msra.mxu0 0.0
    %788 = vmatprep.subr.mxu0 0.0
    %789 = vmatpush1.xpose.msra.mxu0 0.0
    %790 = vmatprep.subr.mxu0 0.0
    %791 = vmatpush1.xpose.msra.mxu0 0.0
    %792 = vmatprep.subr.mxu0 0.0
    %793 = vmatpush1.xpose.msra.mxu0 0.0
    %794 = vmatprep.subr.mxu0 0.0
    %795 = vmatpush1.xpose.msra.mxu0 0.0
    %796 = vmatprep.subr.mxu0 0.0
    %797 = vmatpush1.xpose.msra.mxu0 0.0
    %798 = vmatprep.subr.mxu0 0.0
    %799 = vmatpush1.xpose.msra.mxu0 0.0
    %800 = vmatprep.subr.mxu0 0.0
    %801 = vmatpush1.xpose.msra.mxu0 0.0
    %802 = vmatprep.subr.mxu0 0.0
    %803 = vmatpush1.xpose.msra.mxu0 0.0
    %804 = vmatprep.subr.mxu0 0.0
    %805 = vmatpush1.xpose.msra.mxu0 0.0
    %806 = vmatprep.subr.mxu0 0.0
    %807 = vmatpush1.xpose.msra.mxu0 0.0
    %808 = vmatprep.subr.mxu0 0.0
    %809 = vmatpush1.xpose.msra.mxu0 0.0
    %810 = vmatprep.subr.mxu0 0.0
    %811 = vmatpush1.xpose.msra.mxu0 0.0
    %812 = vmatprep.subr.mxu0 0.0
    %813 = vmatpush1.xpose.msra.mxu0 0.0
    %814 = vmatprep.subr.mxu0 0.0
    %815 = vmatpush1.xpose.msra.mxu0 0.0
    %816 = vmatprep.subr.mxu0 0.0
    %817 = vmatpush1.xpose.msra.mxu0 0.0
    %818 = vmatprep.subr.mxu0 0.0
    %819 = vmatpush1.xpose.msra.mxu0 0.0
    %820 = vmatprep.subr.mxu0 0.0
    %821 = vmatpush1.xpose.msra.mxu0 0.0
    %822 = vmatprep.subr.mxu0 0.0
    %823 = vmatpush1.xpose.msra.mxu0 0.0
    %824 = vmatprep.mubr.f32.mxu0 0.0
    %825 = vmatmul.mubr.f32.gmra.mrb[0].mxu0 %v752
    %v826 = vpop.f32.mrb[0].mxu0
    %v827 = vadd.f32 0.0, %v826
    %v828 = vpop.f32.mrb[0].mxu0
    %829 = vmatprep.mubr.f32.mxu0 0.0
    %830 = vmatmul.mubr.f32.gmra.mrb[0].mxu0 %v754
    %v831 = vpop.f32.mrb[0].mxu0
    %v832 = vadd.f32 0.0, %v831
    %v833 = vpop.f32.mrb[0].mxu0
    %834 = vdwg.mxu0
    %v835 = vmul.f32 %v827, 0.25
    %v836 = vmul.f32 %v832, 0.25
    %v837 = vadd.f32 %v835, %v173
    %v838 = vadd.f32 %v836, %v174
    %v839 = vsel %vm631, %v837, -inf
    %840 = vmax.xlane.f32.xlu0 %v839
    %v841 = vpop.xlane.xlu0 %840
    %v842 = vsel %vm635, %v838, -inf
    %843 = vmax.xlane.f32.xlu0 %v842
    %v844 = vpop.xlane.xlu0 %843
    %v845 = vsub.f32 %v837, %v841
    %v846 = vsub.f32 %v838, %v844
    %v847 = vmul.f32 %v845, 1.442695
    %v848 = vpow.pop %v847
    %v849 = vmul.f32 %v846, 1.442695
    %v850 = vpow.pop %v849
    %v851 = vsel %vm631, %v848, 0.0
    %852 = vadd.xlane.f32.xlu0 %v851
    %v853 = vpop.xlane.xlu0 %852
    %v854 = vsel %vm635, %v850, 0.0
    %855 = vadd.xlane.f32.xlu0 %v854
    %v856 = vpop.xlane.xlu0 %855
    %v857 = vrcp.pop %v853
    %v858 = vrcp.pop %v856
    %v859 = vmul.f32 %v848, %v857
    %v860 = vmul.f32 %v850, %v858
    %861 = vrot.lane.b32.xlu0 %v529, 48
    %v862 = vpop.permute.xlu0 %861
    %863 = vrot.lane.b32.xlu0 %v534, 48
    %v864 = vpop.permute.xlu0 %863
    %v867 = vsel %vm631, %v859, 0
    %v870 = vsel %vm631, %v860, 0
    %v872 = vsel %vm666, %v864, 0
    %874 = vmatprep.subr.mxu0 0.0
    %875 = vmatpush1.msra.mxu0 %v862
    %876 = vmatprep.subr.mxu0 0.0
    %877 = vmatpush1.msra.mxu0 %v872
    %878 = vmatprep.subr.mxu0 0.0
    %879 = vmatpush1.msra.mxu0 0.0
    %880 = vmatprep.subr.mxu0 0.0
    %881 = vmatpush1.msra.mxu0 0.0
    %882 = vmatprep.subr.mxu0 0.0
    %883 = vmatpush1.msra.mxu0 0.0
    %884 = vmatprep.subr.mxu0 0.0
    %885 = vmatpush1.msra.mxu0 0.0
    %886 = vmatprep.subr.mxu0 0.0
    %887 = vmatpush1.msra.mxu0 0.0
    %888 = vmatprep.subr.mxu0 0.0
    %889 = vmatpush1.msra.mxu0 0.0
    %890 = vmatprep.subr.mxu0 0.0
    %891 = vmatpush1.msra.mxu0 0.0
    %892 = vmatprep.subr.mxu0 0.0
    %893 = vmatpush1.msra.mxu0 0.0
    %894 = vmatprep.subr.mxu0 0.0
    %895 = vmatpush1.msra.mxu0 0.0
    %896 = vmatprep.subr.mxu0 0.0
    %897 = vmatpush1.msra.mxu0 0.0
    %898 = vmatprep.subr.mxu0 0.0
    %899 = vmatpush1.msra.mxu0 0.0
    %900 = vmatprep.subr.mxu0 0.0
    %901 = vmatpush1.msra.mxu0 0.0
    %902 = vmatprep.subr.mxu0 0.0
    %903 = vmatpush1.msra.mxu0 0.0
    %904 = vmatprep.subr.mxu0 0.0
    %905 = vmatpush1.msra.mxu0 0.0
    %906 = vmatprep.subr.mxu0 0.0
    %907 = vmatpush1.msra.mxu0 0.0
    %908 = vmatprep.subr.mxu0 0.0
    %909 = vmatpush1.msra.mxu0 0.0
    %910 = vmatprep.subr.mxu0 0.0
    %911 = vmatpush1.msra.mxu0 0.0
    %912 = vmatprep.subr.mxu0 0.0
    %913 = vmatpush1.msra.mxu0 0.0
    %914 = vmatprep.subr.mxu0 0.0
    %915 = vmatpush1.msra.mxu0 0.0
    %916 = vmatprep.subr.mxu0 0.0
    %917 = vmatpush1.msra.mxu0 0.0
    %918 = vmatprep.subr.mxu0 0.0
    %919 = vmatpush1.msra.mxu0 0.0
    %920 = vmatprep.subr.mxu0 0.0
    %921 = vmatpush1.msra.mxu0 0.0
    %922 = vmatprep.subr.mxu0 0.0
    %923 = vmatpush1.msra.mxu0 0.0
    %924 = vmatprep.subr.mxu0 0.0
    %925 = vmatpush1.msra.mxu0 0.0
    %926 = vmatprep.subr.mxu0 0.0
    %927 = vmatpush1.msra.mxu0 0.0
    %928 = vmatprep.subr.mxu0 0.0
    %929 = vmatpush1.msra.mxu0 0.0
    %930 = vmatprep.subr.mxu0 0.0
    %931 = vmatpush1.msra.mxu0 0.0
    %932 = vmatprep.subr.mxu0 0.0
    %933 = vmatpush1.msra.mxu0 0.0
    %934 = vmatprep.subr.mxu0 0.0
    %935 = vmatpush1.msra.mxu0 0.0
    %936 = vmatprep.subr.mxu0 0.0
    %937 = vmatpush1.msra.mxu0 0.0
    %938 = vmatprep.mubr.f32.mxu0 0.0
    %939 = vmatmul.mubr.f32.gmra.mrb[0].mxu0 %v867
    %v940 = vpop.f32.mrb[0].mxu0
    %v941 = vadd.f32 0.0, %v940
    %v942 = vpop.f32.mrb[0].mxu0
    %943 = vmatprep.mubr.f32.mxu0 0.0
    %944 = vmatmul.mubr.f32.gmra.mrb[0].mxu0 %v870
    %v945 = vpop.f32.mrb[0].mxu0
    %v946 = vadd.f32 0.0, %v945
    %v947 = vpop.f32.mrb[0].mxu0
    %948 = vdwg.mxu0
    %v950 = vsel %vm543, %v941, 0
    %v953 = vsel %vm543, %v946, 0
    %955 = vmatprep.subr.mxu0 0.0
    %956 = vmatpush1.msra.mxu0 %v211
    %957 = vmatprep.subr.mxu0 0.0
    %958 = vmatpush1.msra.mxu0 %v212
    %959 = vmatprep.subr.mxu0 0.0
    %960 = vmatpush1.msra.mxu0 0.0
    %961 = vmatprep.subr.mxu0 0.0
    %962 = vmatpush1.msra.mxu0 0.0
    %963 = vmatprep.subr.mxu0 0.0
    %964 = vmatpush1.msra.mxu0 0.0
    %965 = vmatprep.subr.mxu0 0.0
    %966 = vmatpush1.msra.mxu0 0.0
    %967 = vmatprep.subr.mxu0 0.0
    %968 = vmatpush1.msra.mxu0 0.0
    %969 = vmatprep.subr.mxu0 0.0
    %970 = vmatpush1.msra.mxu0 0.0
    %971 = vmatprep.subr.mxu0 0.0
    %972 = vmatpush1.msra.mxu0 0.0
    %973 = vmatprep.subr.mxu0 0.0
    %974 = vmatpush1.msra.mxu0 0.0
    %975 = vmatprep.subr.mxu0 0.0
    %976 = vmatpush1.msra.mxu0 0.0
    %977 = vmatprep.subr.mxu0 0.0
    %978 = vmatpush1.msra.mxu0 0.0
    %979 = vmatprep.subr.mxu0 0.0
    %980 = vmatpush1.msra.mxu0 0.0
    %981 = vmatprep.subr.mxu0 0.0
    %982 = vmatpush1.msra.mxu0 0.0
    %983 = vmatprep.subr.mxu0 0.0
    %984 = vmatpush1.msra.mxu0 0.0
    %985 = vmatprep.subr.mxu0 0.0
    %986 = vmatpush1.msra.mxu0 0.0
    %987 = vmatprep.subr.mxu0 0.0
    %988 = vmatpush1.msra.mxu0 0.0
    %989 = vmatprep.subr.mxu0 0.0
    %990 = vmatpush1.msra.mxu0 0.0
    %991 = vmatprep.subr.mxu0 0.0
    %992 = vmatpush1.msra.mxu0 0.0
    %993 = vmatprep.subr.mxu0 0.0
    %994 = vmatpush1.msra.mxu0 0.0
    %995 = vmatprep.subr.mxu0 0.0
    %996 = vmatpush1.msra.mxu0 0.0
    %997 = vmatprep.subr.mxu0 0.0
    %998 = vmatpush1.msra.mxu0 0.0
    %999 = vmatprep.subr.mxu0 0.0
    %1000 = vmatpush1.msra.mxu0 0.0
    %1001 = vmatprep.subr.mxu0 0.0
    %1002 = vmatpush1.msra.mxu0 0.0
    %1003 = vmatprep.subr.mxu0 0.0
    %1004 = vmatpush1.msra.mxu0 0.0
    %1005 = vmatprep.subr.mxu0 0.0
    %1006 = vmatpush1.msra.mxu0 0.0
    %1007 = vmatprep.subr.mxu0 0.0
    %1008 = vmatpush1.msra.mxu0 0.0
    %1009 = vmatprep.subr.mxu0 0.0
    %1010 = vmatpush1.msra.mxu0 0.0
    %1011 = vmatprep.subr.mxu0 0.0
    %1012 = vmatpush1.msra.mxu0 0.0
    %1013 = vmatprep.subr.mxu0 0.0
    %1014 = vmatpush1.msra.mxu0 0.0
    %1015 = vmatprep.subr.mxu0 0.0
    %1016 = vmatpush1.msra.mxu0 0.0
    %1017 = vmatprep.subr.mxu0 0.0
    %1018 = vmatpush1.msra.mxu0 0.0
    %1019 = vmatprep.mubr.f32.mxu0 0.0
    %1020 = vmatmul.mubr.f32.gmra.mrb[0].mxu0 %v950
    %v1021 = vpop.f32.mrb[0].mxu0
    %v1022 = vadd.f32 0.0, %v1021
    %v1023 = vpop.f32.mrb[0].mxu0
    %1024 = vmatprep.mubr.f32.mxu0 0.0
    %1025 = vmatmul.mubr.f32.gmra.mrb[0].mxu0 %v953
    %v1026 = vpop.f32.mrb[0].mxu0
    %v1027 = vadd.f32 0.0, %v1026
    %v1028 = vpop.f32.mrb[0].mxu0
    %1029 = vdwg.mxu0
    %v1031 = vsel %vm543, %v736, 0
    %v1034 = vsel %vm543, %v741, 0
    %1036 = vmatprep.subr.mxu0 0.0
    %1037 = vmatpush1.msra.mxu0 %v209
    %1038 = vmatprep.subr.mxu0 0.0
    %1039 = vmatpush1.msra.mxu0 %v210
    %1040 = vmatprep.subr.mxu0 0.0
    %1041 = vmatpush1.msra.mxu0 0.0
    %1042 = vmatprep.subr.mxu0 0.0
    %1043 = vmatpush1.msra.mxu0 0.0
    %1044 = vmatprep.subr.mxu0 0.0
    %1045 = vmatpush1.msra.mxu0 0.0
    %1046 = vmatprep.subr.mxu0 0.0
    %1047 = vmatpush1.msra.mxu0 0.0
    %1048 = vmatprep.subr.mxu0 0.0
    %1049 = vmatpush1.msra.mxu0 0.0
    %1050 = vmatprep.subr.mxu0 0.0
    %1051 = vmatpush1.msra.mxu0 0.0
    %1052 = vmatprep.subr.mxu0 0.0
    %1053 = vmatpush1.msra.mxu0 0.0
    %1054 = vmatprep.subr.mxu0 0.0
    %1055 = vmatpush1.msra.mxu0 0.0
    %1056 = vmatprep.subr.mxu0 0.0
    %1057 = vmatpush1.msra.mxu0 0.0
    %1058 = vmatprep.subr.mxu0 0.0
    %1059 = vmatpush1.msra.mxu0 0.0
    %1060 = vmatprep.subr.mxu0 0.0
    %1061 = vmatpush1.msra.mxu0 0.0
    %1062 = vmatprep.subr.mxu0 0.0
    %1063 = vmatpush1.msra.mxu0 0.0
    %1064 = vmatprep.subr.mxu0 0.0
    %1065 = vmatpush1.msra.mxu0 0.0
    %1066 = vmatprep.subr.mxu0 0.0
    %1067 = vmatpush1.msra.mxu0 0.0
    %1068 = vmatprep.subr.mxu0 0.0
    %1069 = vmatpush1.msra.mxu0 0.0
    %1070 = vmatprep.subr.mxu0 0.0
    %1071 = vmatpush1.msra.mxu0 0.0
    %1072 = vmatprep.subr.mxu0 0.0
    %1073 = vmatpush1.msra.mxu0 0.0
    %1074 = vmatprep.subr.mxu0 0.0
    %1075 = vmatpush1.msra.mxu0 0.0
    %1076 = vmatprep.subr.mxu0 0.0
    %1077 = vmatpush1.msra.mxu0 0.0
    %1078 = vmatprep.subr.mxu0 0.0
    %1079 = vmatpush1.msra.mxu0 0.0
    %1080 = vmatprep.subr.mxu0 0.0
    %1081 = vmatpush1.msra.mxu0 0.0
    %1082 = vmatprep.subr.mxu0 0.0
    %1083 = vmatpush1.msra.mxu0 0.0
    %1084 = vmatprep.subr.mxu0 0.0
    %1085 = vmatpush1.msra.mxu0 0.0
    %1086 = vmatprep.subr.mxu0 0.0
    %1087 = vmatpush1.msra.mxu0 0.0
    %1088 = vmatprep.subr.mxu0 0.0
    %1089 = vmatpush1.msra.mxu0 0.0
    %1090 = vmatprep.subr.mxu0 0.0
    %1091 = vmatpush1.msra.mxu0 0.0
    %1092 = vmatprep.subr.mxu0 0.0
    %1093 = vmatpush1.msra.mxu0 0.0
    %1094 = vmatprep.subr.mxu0 0.0
    %1095 = vmatpush1.msra.mxu0 0.0
    %1096 = vmatprep.subr.mxu0 0.0
    %1097 = vmatpush1.msra.mxu0 0.0
    %1098 = vmatprep.subr.mxu0 0.0
    %1099 = vmatpush1.msra.mxu0 0.0
    %1100 = vmatprep.mubr.f32.mxu0 0.0
    %1101 = vmatmul.mubr.f32.gmra.mrb[0].mxu0 %v1031
    %v1102 = vpop.f32.mrb[0].mxu0
    %v1103 = vadd.f32 %v1022, %v1102
    %v1104 = vpop.f32.mrb[0].mxu0
    %1105 = vmatprep.mubr.f32.mxu0 0.0
    %1106 = vmatmul.mubr.f32.gmra.mrb[0].mxu0 %v1034
    %v1107 = vpop.f32.mrb[0].mxu0
    %v1108 = vadd.f32 %v1027, %v1107
    %v1109 = vpop.f32.mrb[0].mxu0
    %1110 = vdwg.mxu0
    %v1112 = vlaneseq
    %v1113 = vshrl.u32 %v1112, 7
    %v1114 = vsub.s32 0, %v1113
    %v1115 = vrot.slane %v213, %v1114
    %v1117 = vadd.f32 %v1103, %v1115
    %v1118 = vadd.f32 %v1108, %v1115
    %v1119 = vadd.f32 %v406, %v1117
    %v1120 = vadd.f32 %v407, %v1118
    %v1121 = vsel %vm363, %v1119, 0.0
    %1122 = vadd.xlane.f32.xlu0 %v1121
    %v1123 = vpop.xlane.xlu0 %1122
    %v1124 = vsel %vm367, %v1120, 0.0
    %1125 = vadd.xlane.f32.xlu0 %v1124
    %v1126 = vpop.xlane.xlu0 %1125
    %v1127 = vmul.f32 %v1123, %v371
    %v1128 = vmul.f32 %v1126, %v371
    %v1129 = vsub.f32 %v1119, %v1127
    %v1130 = vsub.f32 %v1120, %v1128
    %v1131 = vmul.f32 %v1129, %v1129
    %v1132 = vmul.f32 %v1130, %v1130
    %v1133 = vsel %vm363, %v1131, 0.0
    %1134 = vadd.xlane.f32.xlu0 %v1133
    %v1135 = vpop.xlane.xlu0 %1134
    %v1136 = vsel %vm367, %v1132, 0.0
    %1137 = vadd.xlane.f32.xlu0 %v1136
    %v1138 = vpop.xlane.xlu0 %1137
    %v1139 = vmul.f32 %v1135, %v371
    %v1140 = vmul.f32 %v1138, %v371
    %v1141 = vadd.f32 %v1139, 1e-05
    %v1142 = vadd.f32 %v1140, 1e-05
    %v1143 = vrsqrt.pop %v1141
    %v1144 = vrsqrt.pop %v1142
    %v1145 = vmul.f32 %v1129, %v1143
    %v1146 = vmul.f32 %v1130, %v1144
    %v1148 = vlaneseq
    %v1149 = vshrl.u32 %v1148, 7
    %v1150 = vsub.s32 0, %v1149
    %v1151 = vrot.slane %v214, %v1150
    %v1153 = vmul.f32 %v1145, %v1151
    %v1154 = vmul.f32 %v1146, %v1151
    %v1156 = vlaneseq
    %v1157 = vshrl.u32 %v1156, 7
    %v1158 = vsub.s32 0, %v1157
    %v1159 = vrot.slane %v215, %v1158
    %v1161 = vadd.f32 %v1153, %v1159
    %v1162 = vadd.f32 %v1154, %v1159
    %v1164 = vlaneseq
    %v1165 = vshrl.u32 %v1164, 7
    %v1166 = vsub.s32 0, %v1165
    %v1167 = vrot.slane %v220, %v1166
    %v1170 = vsel %vm363, %v1161, 0
    %v1173 = vsel %vm363, %v1162, 0
    %1175 = vmatprep.subr.mxu0 0.0
    %1176 = vmatpush1.msra.mxu0 %v216
    %1177 = vmatprep.subr.mxu0 0.0
    %1178 = vmatpush1.msra.mxu0 %v217
    %1179 = vmatprep.subr.mxu0 0.0
    %1180 = vmatpush1.msra.mxu0 %v218
    %1181 = vmatprep.subr.mxu0 0.0
    %1182 = vmatpush1.msra.mxu0 %v219
    %1183 = vmatprep.subr.mxu0 0.0
    %1184 = vmatpush1.msra.mxu0 0.0
    %1185 = vmatprep.subr.mxu0 0.0
    %1186 = vmatpush1.msra.mxu0 0.0
    %1187 = vmatprep.subr.mxu0 0.0
    %1188 = vmatpush1.msra.mxu0 0.0
    %1189 = vmatprep.subr.mxu0 0.0
    %1190 = vmatpush1.msra.mxu0 0.0
    %1191 = vmatprep.subr.mxu0 0.0
    %1192 = vmatpush1.msra.mxu0 0.0
    %1193 = vmatprep.subr.mxu0 0.0
    %1194 = vmatpush1.msra.mxu0 0.0
    %1195 = vmatprep.subr.mxu0 0.0
    %1196 = vmatpush1.msra.mxu0 0.0
    %1197 = vmatprep.subr.mxu0 0.0
    %1198 = vmatpush1.msra.mxu0 0.0
    %1199 = vmatprep.subr.mxu0 0.0
    %1200 = vmatpush1.msra.mxu0 0.0
    %1201 = vmatprep.subr.mxu0 0.0
    %1202 = vmatpush1.msra.mxu0 0.0
    %1203 = vmatprep.subr.mxu0 0.0
    %1204 = vmatpush1.msra.mxu0 0.0
    %1205 = vmatprep.subr.mxu0 0.0
    %1206 = vmatpush1.msra.mxu0 0.0
    %1207 = vmatprep.subr.mxu0 0.0
    %1208 = vmatpush1.msra.mxu0 0.0
    %1209 = vmatprep.subr.mxu0 0.0
    %1210 = vmatpush1.msra.mxu0 0.0
    %1211 = vmatprep.subr.mxu0 0.0
    %1212 = vmatpush1.msra.mxu0 0.0
    %1213 = vmatprep.subr.mxu0 0.0
    %1214 = vmatpush1.msra.mxu0 0.0
    %1215 = vmatprep.subr.mxu0 0.0
    %1216 = vmatpush1.msra.mxu0 0.0
    %1217 = vmatprep.subr.mxu0 0.0
    %1218 = vmatpush1.msra.mxu0 0.0
    %1219 = vmatprep.subr.mxu0 0.0
    %1220 = vmatpush1.msra.mxu0 0.0
    %1221 = vmatprep.subr.mxu0 0.0
    %1222 = vmatpush1.msra.mxu0 0.0
    %1223 = vmatprep.subr.mxu0 0.0
    %1224 = vmatpush1.msra.mxu0 0.0
    %1225 = vmatprep.subr.mxu0 0.0
    %1226 = vmatpush1.msra.mxu0 0.0
    %1227 = vmatprep.subr.mxu0 0.0
    %1228 = vmatpush1.msra.mxu0 0.0
    %1229 = vmatprep.subr.mxu0 0.0
    %1230 = vmatpush1.msra.mxu0 0.0
    %1231 = vmatprep.subr.mxu0 0.0
    %1232 = vmatpush1.msra.mxu0 0.0
    %1233 = vmatprep.subr.mxu0 0.0
    %1234 = vmatpush1.msra.mxu0 0.0
    %1235 = vmatprep.subr.mxu0 0.0
    %1236 = vmatpush1.msra.mxu0 0.0
    %1237 = vmatprep.subr.mxu0 0.0
    %1238 = vmatpush1.msra.mxu0 0.0
    %1239 = vmatprep.mubr.f32.mxu0 0.0
    %1240 = vmatmul.mubr.f32.gmra.mrb[0].mxu0 %v1170
    %v1241 = vpop.f32.mrb[0].mxu0
    %v1242 = vadd.f32 %v1167, %v1241
    %v1243 = vpop.f32.mrb[0].mxu0
    %1244 = vmatprep.mubr.f32.mxu0 0.0
    %1245 = vmatmul.mubr.f32.gmra.mrb[0].mxu0 %v1173
    %v1246 = vpop.f32.mrb[0].mxu0
    %v1247 = vadd.f32 %v1167, %v1246
    %v1248 = vpop.f32.mrb[0].mxu0
    %1249 = vdwg.mxu0
    %v1250 = vmul.f32 %v1242, 1.702
    %v1251 = vmul.f32 %v1247, 1.702
    %v1252 = vxor.u32 %v1250, 2147483648
    %v1253 = vxor.u32 %v1251, 2147483648
    %v1254 = vmul.f32 %v1252, 1.442695
    %v1255 = vpow.pop %v1254
    %v1256 = vmul.f32 %v1253, 1.442695
    %v1257 = vpow.pop %v1256
    %v1258 = vadd.f32 %v1255, 1.0
    %v1259 = vadd.f32 %v1257, 1.0
    %v1260 = vrcp.pop %v1258
    %v1261 = vmul.f32 1.0, %v1260
    %v1262 = vrcp.pop %v1259
    %v1263 = vmul.f32 1.0, %v1262
    %v1264 = vmul.f32 %v1242, %v1261
    %v1265 = vmul.f32 %v1247, %v1263
    %v1267 = vlaneseq
    %v1268 = vshrl.u32 %v1267, 7
    %v1269 = vsub.s32 0, %v1268
    %v1270 = vrot.slane %v229, %v1269
    %vm1272 = vcmask 523264
    %v1274 = vsel %vm1272, %v1264, 0
    %v1277 = vsel %vm1272, %v1265, 0
    %1279 = vmatprep.subr.mxu0 0.0
    %1280 = vmatpush1.msra.mxu0 %v221
    %1281 = vmatprep.subr.mxu0 0.0
    %1282 = vmatpush1.msra.mxu0 %v222
    %1283 = vmatprep.subr.mxu0 0.0
    %1284 = vmatpush1.msra.mxu0 %v223
    %1285 = vmatprep.subr.mxu0 0.0
    %1286 = vmatpush1.msra.mxu0 %v224
    %1287 = vmatprep.subr.mxu0 0.0
    %1288 = vmatpush1.msra.mxu0 %v225
    %1289 = vmatprep.subr.mxu0 0.0
    %1290 = vmatpush1.msra.mxu0 %v226
    %1291 = vmatprep.subr.mxu0 0.0
    %1292 = vmatpush1.msra.mxu0 %v227
    %1293 = vmatprep.subr.mxu0 0.0
    %1294 = vmatpush1.msra.mxu0 %v228
    %1295 = vmatprep.subr.mxu0 0.0
    %1296 = vmatpush1.msra.mxu0 0.0
    %1297 = vmatprep.subr.mxu0 0.0
    %1298 = vmatpush1.msra.mxu0 0.0
    %1299 = vmatprep.subr.mxu0 0.0
    %1300 = vmatpush1.msra.mxu0 0.0
    %1301 = vmatprep.subr.mxu0 0.0
    %1302 = vmatpush1.msra.mxu0 0.0
    %1303 = vmatprep.subr.mxu0 0.0
    %1304 = vmatpush1.msra.mxu0 0.0
    %1305 = vmatprep.subr.mxu0 0.0
    %1306 = vmatpush1.msra.mxu0 0.0
    %1307 = vmatprep.subr.mxu0 0.0
    %1308 = vmatpush1.msra.mxu0 0.0
    %1309 = vmatprep.subr.mxu0 0.0
    %1310 = vmatpush1.msra.mxu0 0.0
    %1311 = vmatprep.subr.mxu0 0.0
    %1312 = vmatpush1.msra.mxu0 0.0
    %1313 = vmatprep.subr.mxu0 0.0
    %1314 = vmatpush1.msra.mxu0 0.0
    %1315 = vmatprep.subr.mxu0 0.0
    %1316 = vmatpush1.msra.mxu0 0.0
    %1317 = vmatprep.subr.mxu0 0.0
    %1318 = vmatpush1.msra.mxu0 0.0
    %1319 = vmatprep.subr.mxu0 0.0
    %1320 = vmatpush1.msra.mxu0 0.0
    %1321 = vmatprep.subr.mxu0 0.0
    %1322 = vmatpush1.msra.mxu0 0.0
    %1323 = vmatprep.subr.mxu0 0.0
    %1324 = vmatpush1.msra.mxu0 0.0
    %1325 = vmatprep.subr.mxu0 0.0
    %1326 = vmatpush1.msra.mxu0 0.0
    %1327 = vmatprep.subr.mxu0 0.0
    %1328 = vmatpush1.msra.mxu0 0.0
    %1329 = vmatprep.subr.mxu0 0.0
    %1330 = vmatpush1.msra.mxu0 0.0
    %1331 = vmatprep.subr.mxu0 0.0
    %1332 = vmatpush1.msra.mxu0 0.0
    %1333 = vmatprep.subr.mxu0 0.0
    %1334 = vmatpush1.msra.mxu0 0.0
    %1335 = vmatprep.subr.mxu0 0.0
    %1336 = vmatpush1.msra.mxu0 0.0
    %1337 = vmatprep.subr.mxu0 0.0
    %1338 = vmatpush1.msra.mxu0 0.0
    %1339 = vmatprep.subr.mxu0 0.0
    %1340 = vmatpush1.msra.mxu0 0.0
    %1341 = vmatprep.subr.mxu0 0.0
    %1342 = vmatpush1.msra.mxu0 0.0
    %1343 = vmatprep.mubr.f32.mxu0 0.0
    %1344 = vmatmul.mubr.f32.gmra.mrb[0].mxu0 %v1274
    %v1345 = vpop.f32.mrb[0].mxu0
    %v1346 = vadd.f32 %v1270, %v1345
    %v1347 = vpop.f32.mrb[0].mxu0
    %1348 = vmatprep.mubr.f32.mxu0 0.0
    %1349 = vmatmul.mubr.f32.gmra.mrb[0].mxu0 %v1277
    %v1350 = vpop.f32.mrb[0].mxu0
    %v1351 = vadd.f32 %v1270, %v1350
    %v1352 = vpop.f32.mrb[0].mxu0
    %1353 = vdwg.mxu0
    %v1354 = vadd.f32 %v1119, %v1346
    %v1355 = vadd.f32 %v1120, %v1351
    %v1356 = vsel %vm363, %v1354, 0.0
    %1357 = vadd.xlane.f32.xlu0 %v1356
    %v1358 = vpop.xlane.xlu0 %1357
    %v1359 = vsel %vm367, %v1355, 0.0
    %1360 = vadd.xlane.f32.xlu0 %v1359
    %v1361 = vpop.xlane.xlu0 %1360
    %v1362 = vmul.f32 %v1358, %v371
    %v1363 = vmul.f32 %v1361, %v371
    %v1364 = vsub.f32 %v1354, %v1362
    %v1365 = vsub.f32 %v1355, %v1363
    %v1366 = vmul.f32 %v1364, %v1364
    %v1367 = vmul.f32 %v1365, %v1365
    %v1368 = vsel %vm363, %v1366, 0.0
    %1369 = vadd.xlane.f32.xlu0 %v1368
    %v1370 = vpop.xlane.xlu0 %1369
    %v1371 = vsel %vm367, %v1367, 0.0
    %1372 = vadd.xlane.f32.xlu0 %v1371
    %v1373 = vpop.xlane.xlu0 %1372
    %v1374 = vmul.f32 %v1370, %v371
    %v1375 = vmul.f32 %v1373, %v371
    %v1376 = vadd.f32 %v1374, 1e-05
    %v1377 = vadd.f32 %v1375, 1e-05
    %v1378 = vrsqrt.pop %v1376
    %v1379 = vrsqrt.pop %v1377
    %v1380 = vmul.f32 %v1364, %v1378
    %v1381 = vmul.f32 %v1365, %v1379
    %v1383 = vlaneseq
    %v1384 = vshrl.u32 %v1383, 7
    %v1385 = vsub.s32 0, %v1384
    %v1386 = vrot.slane %v231, %v1385
    %v1388 = vmul.f32 %v1380, %v1386
    %v1389 = vmul.f32 %v1381, %v1386
    %v1391 = vlaneseq
    %v1392 = vshrl.u32 %v1391, 7
    %v1393 = vsub.s32 0, %v1392
    %v1394 = vrot.slane %v233, %v1393
    %v1396 = vadd.f32 %v1388, %v1394
    %v1397 = vadd.f32 %v1389, %v1394
    %v1399 = vlaneseq
    %v1400 = vshrl.u32 %v1399, 7
    %v1401 = vsub.s32 0, %v1400
    %v1402 = vrot.slane %v240, %v1401
    %v1405 = vsel %vm363, %v1396, 0
    %v1408 = vsel %vm363, %v1397, 0
    %1410 = vmatprep.subr.mxu0 0.0
    %1411 = vmatpush1.msra.mxu0 %v235
    %1412 = vmatprep.subr.mxu0 0.0
    %1413 = vmatpush1.msra.mxu0 %v236
    %1414 = vmatprep.subr.mxu0 0.0
    %1415 = vmatpush1.msra.mxu0 %v237
    %1416 = vmatprep.subr.mxu0 0.0
    %1417 = vmatpush1.msra.mxu0 %v238
    %1418 = vmatprep.subr.mxu0 0.0
    %1419 = vmatpush1.msra.mxu0 0.0
    %1420 = vmatprep.subr.mxu0 0.0
    %1421 = vmatpush1.msra.mxu0 0.0
    %1422 = vmatprep.subr.mxu0 0.0
    %1423 = vmatpush1.msra.mxu0 0.0
    %1424 = vmatprep.subr.mxu0 0.0
    %1425 = vmatpush1.msra.mxu0 0.0
    %1426 = vmatprep.subr.mxu0 0.0
    %1427 = vmatpush1.msra.mxu0 0.0
    %1428 = vmatprep.subr.mxu0 0.0
    %1429 = vmatpush1.msra.mxu0 0.0
    %1430 = vmatprep.subr.mxu0 0.0
    %1431 = vmatpush1.msra.mxu0 0.0
    %1432 = vmatprep.subr.mxu0 0.0
    %1433 = vmatpush1.msra.mxu0 0.0
    %1434 = vmatprep.subr.mxu0 0.0
    %1435 = vmatpush1.msra.mxu0 0.0
    %1436 = vmatprep.subr.mxu0 0.0
    %1437 = vmatpush1.msra.mxu0 0.0
    %1438 = vmatprep.subr.mxu0 0.0
    %1439 = vmatpush1.msra.mxu0 0.0
    %1440 = vmatprep.subr.mxu0 0.0
    %1441 = vmatpush1.msra.mxu0 0.0
    %1442 = vmatprep.subr.mxu0 0.0
    %1443 = vmatpush1.msra.mxu0 0.0
    %1444 = vmatprep.subr.mxu0 0.0
    %1445 = vmatpush1.msra.mxu0 0.0
    %1446 = vmatprep.subr.mxu0 0.0
    %1447 = vmatpush1.msra.mxu0 0.0
    %1448 = vmatprep.subr.mxu0 0.0
    %1449 = vmatpush1.msra.mxu0 0.0
    %1450 = vmatprep.subr.mxu0 0.0
    %1451 = vmatpush1.msra.mxu0 0.0
    %1452 = vmatprep.subr.mxu0 0.0
    %1453 = vmatpush1.msra.mxu0 0.0
    %1454 = vmatprep.subr.mxu0 0.0
    %1455 = vmatpush1.msra.mxu0 0.0
    %1456 = vmatprep.subr.mxu0 0.0
    %1457 = vmatpush1.msra.mxu0 0.0
    %1458 = vmatprep.subr.mxu0 0.0
    %1459 = vmatpush1.msra.mxu0 0.0
    %1460 = vmatprep.subr.mxu0 0.0
    %1461 = vmatpush1.msra.mxu0 0.0
    %1462 = vmatprep.subr.mxu0 0.0
    %1463 = vmatpush1.msra.mxu0 0.0
    %1464 = vmatprep.subr.mxu0 0.0
    %1465 = vmatpush1.msra.mxu0 0.0
    %1466 = vmatprep.subr.mxu0 0.0
    %1467 = vmatpush1.msra.mxu0 0.0
    %1468 = vmatprep.subr.mxu0 0.0
    %1469 = vmatpush1.msra.mxu0 0.0
    %1470 = vmatprep.subr.mxu0 0.0
    %1471 = vmatpush1.msra.mxu0 0.0
    %1472 = vmatprep.subr.mxu0 0.0
    %1473 = vmatpush1.msra.mxu0 0.0
    %1474 = vmatprep.mubr.f32.mxu0 0.0
    %1475 = vmatmul.mubr.f32.gmra.mrb[0].mxu0 %v1405
    %v1476 = vpop.f32.mrb[0].mxu0
    %v1477 = vadd.f32 %v1402, %v1476
    %v1478 = vpop.f32.mrb[0].mxu0
    %1479 = vmatprep.mubr.f32.mxu0 0.0
    %1480 = vmatmul.mubr.f32.gmra.mrb[0].mxu0 %v1408
    %v1481 = vpop.f32.mrb[0].mxu0
    %v1482 = vadd.f32 %v1402, %v1481
    %v1483 = vpop.f32.mrb[0].mxu0
    %1484 = vdwg.mxu0
    %1487 = vrot.lane.b32.xlu0 %v1477, 96
    %v1488 = vpop.permute.xlu0 %1487
    %1489 = vrot.lane.b32.xlu0 %v1482, 96
    %v1490 = vpop.permute.xlu0 %1489
    %v1491 = vsel %vm543, %v1477, 0
    %v1493 = vsel %vm543, %v1482, 0
    %v1495 = vsel %vm543, %v1488, 0
    %v1497 = vsel %vm543, %v1490, 0
    %1499 = vmatprep.subr.mxu0 0.0
    %1500 = vmatpush1.xpose.msra.mxu0 %v1495
    %1501 = vmatprep.subr.mxu0 0.0
    %1502 = vmatpush1.xpose.msra.mxu0 %v1497
    %1503 = vmatprep.subr.mxu0 0.0
    %1504 = vmatpush1.xpose.msra.mxu0 0.0
    %1505 = vmatprep.subr.mxu0 0.0
    %1506 = vmatpush1.xpose.msra.mxu0 0.0
    %1507 = vmatprep.subr.mxu0 0.0
    %1508 = vmatpush1.xpose.msra.mxu0 0.0
    %1509 = vmatprep.subr.mxu0 0.0
    %1510 = vmatpush1.xpose.msra.mxu0 0.0
    %1511 = vmatprep.subr.mxu0 0.0
    %1512 = vmatpush1.xpose.msra.mxu0 0.0
    %1513 = vmatprep.subr.mxu0 0.0
    %1514 = vmatpush1.xpose.msra.mxu0 0.0
    %1515 = vmatprep.subr.mxu0 0.0
    %1516 = vmatpush1.xpose.msra.mxu0 0.0
    %1517 = vmatprep.subr.mxu0 0.0
    %1518 = vmatpush1.xpose.msra.mxu0 0.0
    %1519 = vmatprep.subr.mxu0 0.0
    %1520 = vmatpush1.xpose.msra.mxu0 0.0
    %1521 = vmatprep.subr.mxu0 0.0
    %1522 = vmatpush1.xpose.msra.mxu0 0.0
    %1523 = vmatprep.subr.mxu0 0.0
    %1524 = vmatpush1.xpose.msra.mxu0 0.0
    %1525 = vmatprep.subr.mxu0 0.0
    %1526 = vmatpush1.xpose.msra.mxu0 0.0
    %1527 = vmatprep.subr.mxu0 0.0
    %1528 = vmatpush1.xpose.msra.mxu0 0.0
    %1529 = vmatprep.subr.mxu0 0.0
    %1530 = vmatpush1.xpose.msra.mxu0 0.0
    %1531 = vmatprep.subr.mxu0 0.0
    %1532 = vmatpush1.xpose.msra.mxu0 0.0
    %1533 = vmatprep.subr.mxu0 0.0
    %1534 = vmatpush1.xpose.msra.mxu0 0.0
    %1535 = vmatprep.subr.mxu0 0.0
    %1536 = vmatpush1.xpose.msra.mxu0 0.0
    %1537 = vmatprep.subr.mxu0 0.0
    %1538 = vmatpush1.xpose.msra.mxu0 0.0
    %1539 = vmatprep.subr.mxu0 0.0
    %1540 = vmatpush1.xpose.msra.mxu0 0.0
    %1541 = vmatprep.subr.mxu0 0.0
    %1542 = vmatpush1.xpose.msra.mxu0 0.0
    %1543 = vmatprep.subr.mxu0 0.0
    %1544 = vmatpush1.xpose.msra.mxu0 0.0
    %1545 = vmatprep.subr.mxu0 0.0
    %1546 = vmatpush1.xpose.msra.mxu0 0.0
    %1547 = vmatprep.subr.mxu0 0.0
    %1548 = vmatpush1.xpose.msra.mxu0 0.0
    %1549 = vmatprep.subr.mxu0 0.0
    %1550 = vmatpush1.xpose.msra.mxu0 0.0
    %1551 = vmatprep.subr.mxu0 0.0
    %1552 = vmatpush1.xpose.msra.mxu0 0.0
    %1553 = vmatprep.subr.mxu0 0.0
    %1554 = vmatpush1.xpose.msra.mxu0 0.0
    %1555 = vmatprep.subr.mxu0 0.0
    %1556 = vmatpush1.xpose.msra.mxu0 0.0
    %1557 = vmatprep.subr.mxu0 0.0
    %1558 = vmatpush1.xpose.msra.mxu0 0.0
    %1559 = vmatprep.subr.mxu0 0.0
    %1560 = vmatpush1.xpose.msra.mxu0 0.0
    %1561 = vmatprep.subr.mxu0 0.0
    %1562 = vmatpush1.xpose.msra.mxu0 0.0
    %1563 = vmatprep.mubr.f32.mxu0 0.0
    %1564 = vmatmul.mubr.f32.gmra.mrb[0].mxu0 %v1491
    %v1565 = vpop.f32.mrb[0].mxu0
    %v1566 = vadd.f32 0.0, %v1565
    %v1567 = vpop.f32.mrb[0].mxu0
    %1568 = vmatprep.mubr.f32.mxu0 0.0
    %1569 = vmatmul.mubr.f32.gmra.mrb[0].mxu0 %v1493
    %v1570 = vpop.f32.mrb[0].mxu0
    %v1571 = vadd.f32 0.0, %v1570
    %v1572 = vpop.f32.mrb[0].mxu0
    %1573 = vdwg.mxu0
    %v1574 = vmul.f32 %v1566, 0.25
    %v1575 = vmul.f32 %v1571, 0.25
    %v1576 = vadd.f32 %v1574, %v173
    %v1577 = vadd.f32 %v1575, %v174
    %v1578 = vsel %vm631, %v1576, -inf
    %1579 = vmax.xlane.f32.xlu0 %v1578
    %v1580 = vpop.xlane.xlu0 %1579
    %v1581 = vsel %vm635, %v1577, -inf
    %1582 = vmax.xlane.f32.xlu0 %v1581
    %v1583 = vpop.xlane.xlu0 %1582
    %v1584 = vsub.f32 %v1576, %v1580
    %v1585 = vsub.f32 %v1577, %v1583
    %v1586 = vmul.f32 %v1584, 1.442695
    %v1587 = vpow.pop %v1586
    %v1588 = vmul.f32 %v1585, 1.442695
    %v1589 = vpow.pop %v1588
    %v1590 = vsel %vm631, %v1587, 0.0
    %1591 = vadd.xlane.f32.xlu0 %v1590
    %v1592 = vpop.xlane.xlu0 %1591
    %v1593 = vsel %vm635, %v1589, 0.0
    %1594 = vadd.xlane.f32.xlu0 %v1593
    %v1595 = vpop.xlane.xlu0 %1594
    %v1596 = vrcp.pop %v1592
    %v1597 = vrcp.pop %v1595
    %v1598 = vmul.f32 %v1587, %v1596
    %v1599 = vmul.f32 %v1589, %v1597
    %1600 = vrot.lane.b32.xlu0 %v1477, 64
    %v1601 = vpop.permute.xlu0 %1600
    %1602 = vrot.lane.b32.xlu0 %v1482, 64
    %v1603 = vpop.permute.xlu0 %1602
    %v1606 = vsel %vm631, %v1598, 0
    %v1609 = vsel %vm631, %v1599, 0
    %v1611 = vsel %vm666, %v1603, 0
    %1613 = vmatprep.subr.mxu0 0.0
    %1614 = vmatpush1.msra.mxu0 %v1601
    %1615 = vmatprep.subr.mxu0 0.0
    %1616 = vmatpush1.msra.mxu0 %v1611
    %1617 = vmatprep.subr.mxu0 0.0
    %1618 = vmatpush1.msra.mxu0 0.0
    %1619 = vmatprep.subr.mxu0 0.0
    %1620 = vmatpush1.msra.mxu0 0.0
    %1621 = vmatprep.subr.mxu0 0.0
    %1622 = vmatpush1.msra.mxu0 0.0
    %1623 = vmatprep.subr.mxu0 0.0
    %1624 = vmatpush1.msra.mxu0 0.0
    %1625 = vmatprep.subr.mxu0 0.0
    %1626 = vmatpush1.msra.mxu0 0.0
    %1627 = vmatprep.subr.mxu0 0.0
    %1628 = vmatpush1.msra.mxu0 0.0
    %1629 = vmatprep.subr.mxu0 0.0
    %1630 = vmatpush1.msra.mxu0 0.0
    %1631 = vmatprep.subr.mxu0 0.0
    %1632 = vmatpush1.msra.mxu0 0.0
    %1633 = vmatprep.subr.mxu0 0.0
    %1634 = vmatpush1.msra.mxu0 0.0
    %1635 = vmatprep.subr.mxu0 0.0
    %1636 = vmatpush1.msra.mxu0 0.0
    %1637 = vmatprep.subr.mxu0 0.0
    %1638 = vmatpush1.msra.mxu0 0.0
    %1639 = vmatprep.subr.mxu0 0.0
    %1640 = vmatpush1.msra.mxu0 0.0
    %1641 = vmatprep.subr.mxu0 0.0
    %1642 = vmatpush1.msra.mxu0 0.0
    %1643 = vmatprep.subr.mxu0 0.0
    %1644 = vmatpush1.msra.mxu0 0.0
    %1645 = vmatprep.subr.mxu0 0.0
    %1646 = vmatpush1.msra.mxu0 0.0
    %1647 = vmatprep.subr.mxu0 0.0
    %1648 = vmatpush1.msra.mxu0 0.0
    %1649 = vmatprep.subr.mxu0 0.0
    %1650 = vmatpush1.msra.mxu0 0.0
    %1651 = vmatprep.subr.mxu0 0.0
    %1652 = vmatpush1.msra.mxu0 0.0
    %1653 = vmatprep.subr.mxu0 0.0
    %1654 = vmatpush1.msra.mxu0 0.0
    %1655 = vmatprep.subr.mxu0 0.0
    %1656 = vmatpush1.msra.mxu0 0.0
    %1657 = vmatprep.subr.mxu0 0.0
    %1658 = vmatpush1.msra.mxu0 0.0
    %1659 = vmatprep.subr.mxu0 0.0
    %1660 = vmatpush1.msra.mxu0 0.0
    %1661 = vmatprep.subr.mxu0 0.0
    %1662 = vmatpush1.msra.mxu0 0.0
    %1663 = vmatprep.subr.mxu0 0.0
    %1664 = vmatpush1.msra.mxu0 0.0
    %1665 = vmatprep.subr.mxu0 0.0
    %1666 = vmatpush1.msra.mxu0 0.0
    %1667 = vmatprep.subr.mxu0 0.0
    %1668 = vmatpush1.msra.mxu0 0.0
    %1669 = vmatprep.subr.mxu0 0.0
    %1670 = vmatpush1.msra.mxu0 0.0
    %1671 = vmatprep.subr.mxu0 0.0
    %1672 = vmatpush1.msra.mxu0 0.0
    %1673 = vmatprep.subr.mxu0 0.0
    %1674 = vmatpush1.msra.mxu0 0.0
    %1675 = vmatprep.subr.mxu0 0.0
    %1676 = vmatpush1.msra.mxu0 0.0
    %1677 = vmatprep.mubr.f32.mxu0 0.0
    %1678 = vmatmul.mubr.f32.gmra.mrb[0].mxu0 %v1606
    %v1679 = vpop.f32.mrb[0].mxu0
    %v1680 = vadd.f32 0.0, %v1679
    %v1681 = vpop.f32.mrb[0].mxu0
    %1682 = vmatprep.mubr.f32.mxu0 0.0
    %1683 = vmatmul.mubr.f32.gmra.mrb[0].mxu0 %v1609
    %v1684 = vpop.f32.mrb[0].mxu0
    %v1685 = vadd.f32 0.0, %v1684
    %v1686 = vpop.f32.mrb[0].mxu0
    %1687 = vdwg.mxu0
    %1688 = vrot.lane.b32.xlu0 %v1477, 112
    %v1689 = vpop.permute.xlu0 %1688
    %1690 = vrot.lane.b32.xlu0 %v1482, 112
    %v1691 = vpop.permute.xlu0 %1690
    %1692 = vrot.lane.b32.xlu0 %v1477, 80
    %v1693 = vpop.permute.xlu0 %1692
    %1694 = vrot.lane.b32.xlu0 %v1482, 80
    %v1695 = vpop.permute.xlu0 %1694
    %v1696 = vsel %vm543, %v1689, 0
    %v1698 = vsel %vm543, %v1691, 0
    %v1700 = vsel %vm543, %v1693, 0
    %v1702 = vsel %vm543, %v1695, 0
    %1704 = vmatprep.subr.mxu0 0.0
    %1705 = vmatpush1.xpose.msra.mxu0 %v1700
    %1706 = vmatprep.subr.mxu0 0.0
    %1707 = vmatpush1.xpose.msra.mxu0 %v1702
    %1708 = vmatprep.subr.mxu0 0.0
    %1709 = vmatpush1.xpose.msra.mxu0 0.0
    %1710 = vmatprep.subr.mxu0 0.0
    %1711 = vmatpush1.xpose.msra.mxu0 0.0
    %1712 = vmatprep.subr.mxu0 0.0
    %1713 = vmatpush1.xpose.msra.mxu0 0.0
    %1714 = vmatprep.subr.mxu0 0.0
    %1715 = vmatpush1.xpose.msra.mxu0 0.0
    %1716 = vmatprep.subr.mxu0 0.0
    %1717 = vmatpush1.xpose.msra.mxu0 0.0
    %1718 = vmatprep.subr.mxu0 0.0
    %1719 = vmatpush1.xpose.msra.mxu0 0.0
    %1720 = vmatprep.subr.mxu0 0.0
    %1721 = vmatpush1.xpose.msra.mxu0 0.0
    %1722 = vmatprep.subr.mxu0 0.0
    %1723 = vmatpush1.xpose.msra.mxu0 0.0
    %1724 = vmatprep.subr.mxu0 0.0
    %1725 = vmatpush1.xpose.msra.mxu0 0.0
    %1726 = vmatprep.subr.mxu0 0.0
    %1727 = vmatpush1.xpose.msra.mxu0 0.0
    %1728 = vmatprep.subr.mxu0 0.0
    %1729 = vmatpush1.xpose.msra.mxu0 0.0
    %1730 = vmatprep.subr.mxu0 0.0
    %1731 = vmatpush1.xpose.msra.mxu0 0.0
    %1732 = vmatprep.subr.mxu0 0.0
    %1733 = vmatpush1.xpose.msra.mxu0 0.0
    %1734 = vmatprep.subr.mxu0 0.0
    %1735 = vmatpush1.xpose.msra.mxu0 0.0
    %1736 = vmatprep.subr.mxu0 0.0
    %1737 = vmatpush1.xpose.msra.mxu0 0.0
    %1738 = vmatprep.subr.mxu0 0.0
    %1739 = vmatpush1.xpose.msra.mxu0 0.0
    %1740 = vmatprep.subr.mxu0 0.0
    %1741 = vmatpush1.xpose.msra.mxu0 0.0
    %1742 = vmatprep.subr.mxu0 0.0
    %1743 = vmatpush1.xpose.msra.mxu0 0.0
    %1744 = vmatprep.subr.mxu0 0.0
    %1745 = vmatpush1.xpose.msra.mxu0 0.0
    %1746 = vmatprep.subr.mxu0 0.0
    %1747 = vmatpush1.xpose.msra.mxu0 0.0
    %1748 = vmatprep.subr.mxu0 0.0
    %1749 = vmatpush1.xpose.msra.mxu0 0.0
    %1750 = vmatprep.subr.mxu0 0.0
    %1751 = vmatpush1.xpose.msra.mxu0 0.0
    %1752 = vmatprep.subr.mxu0 0.0
    %1753 = vmatpush1.xpose.msra.mxu0 0.0
    %1754 = vmatprep.subr.mxu0 0.0
    %1755 = vmatpush1.xpose.msra.mxu0 0.0
    %1756 = vmatprep.subr.mxu0 0.0
    %1757 = vmatpush1.xpose.msra.mxu0 0.0
    %1758 = vmatprep.subr.mxu0 0.0
    %1759 = vmatpush1.xpose.msra.mxu0 0.0
    %1760 = vmatprep.subr.mxu0 0.0
    %1761 = vmatpush1.xpose.msra.mxu0 0.0
    %1762 = vmatprep.subr.mxu0 0.0
    %1763 = vmatpush1.xpose.msra.mxu0 0.0
    %1764 = vmatprep.subr.mxu0 0.0
    %1765 = vmatpush1.xpose.msra.mxu0 0.0
    %1766 = vmatprep.subr.mxu0 0.0
    %1767 = vmatpush1.xpose.msra.mxu0 0.0
    %1768 = vmatprep.mubr.f32.mxu0 0.0
    %1769 = vmatmul.mubr.f32.gmra.mrb[0].mxu0 %v1696
    %v1770 = vpop.f32.mrb[0].mxu0
    %v1771 = vadd.f32 0.0, %v1770
    %v1772 = vpop.f32.mrb[0].mxu0
    %1773 = vmatprep.mubr.f32.mxu0 0.0
    %1774 = vmatmul.mubr.f32.gmra.mrb[0].mxu0 %v1698
    %v1775 = vpop.f32.mrb[0].mxu0
    %v1776 = vadd.f32 0.0, %v1775
    %v1777 = vpop.f32.mrb[0].mxu0
    %1778 = vdwg.mxu0
    %v1779 = vmul.f32 %v1771, 0.25
    %v1780 = vmul.f32 %v1776, 0.25
    %v1781 = vadd.f32 %v1779, %v173
    %v1782 = vadd.f32 %v1780, %v174
    %v1783 = vsel %vm631, %v1781, -inf
    %1784 = vmax.xlane.f32.xlu0 %v1783
    %v1785 = vpop.xlane.xlu0 %1784
    %v1786 = vsel %vm635, %v1782, -inf
    %1787 = vmax.xlane.f32.xlu0 %v1786
    %v1788 = vpop.xlane.xlu0 %1787
    %v1789 = vsub.f32 %v1781, %v1785
    %v1790 = vsub.f32 %v1782, %v1788
    %v1791 = vmul.f32 %v1789, 1.442695
    %v1792 = vpow.pop %v1791
    %v1793 = vmul.f32 %v1790, 1.442695
    %v1794 = vpow.pop %v1793
    %v1795 = vsel %vm631, %v1792, 0.0
    %1796 = vadd.xlane.f32.xlu0 %v1795
    %v1797 = vpop.xlane.xlu0 %1796
    %v1798 = vsel %vm635, %v1794, 0.0
    %1799 = vadd.xlane.f32.xlu0 %v1798
    %v1800 = vpop.xlane.xlu0 %1799
    %v1801 = vrcp.pop %v1797
    %v1802 = vrcp.pop %v1800
    %v1803 = vmul.f32 %v1792, %v1801
    %v1804 = vmul.f32 %v1794, %v1802
    %1805 = vrot.lane.b32.xlu0 %v1477, 48
    %v1806 = vpop.permute.xlu0 %1805
    %1807 = vrot.lane.b32.xlu0 %v1482, 48
    %v1808 = vpop.permute.xlu0 %1807
    %v1811 = vsel %vm631, %v1803, 0
    %v1814 = vsel %vm631, %v1804, 0
    %v1816 = vsel %vm666, %v1808, 0
    %1818 = vmatprep.subr.mxu0 0.0
    %1819 = vmatpush1.msra.mxu0 %v1806
    %1820 = vmatprep.subr.mxu0 0.0
    %1821 = vmatpush1.msra.mxu0 %v1816
    %1822 = vmatprep.subr.mxu0 0.0
    %1823 = vmatpush1.msra.mxu0 0.0
    %1824 = vmatprep.subr.mxu0 0.0
    %1825 = vmatpush1.msra.mxu0 0.0
    %1826 = vmatprep.subr.mxu0 0.0
    %1827 = vmatpush1.msra.mxu0 0.0
    %1828 = vmatprep.subr.mxu0 0.0
    %1829 = vmatpush1.msra.mxu0 0.0
    %1830 = vmatprep.subr.mxu0 0.0
    %1831 = vmatpush1.msra.mxu0 0.0
    %1832 = vmatprep.subr.mxu0 0.0
    %1833 = vmatpush1.msra.mxu0 0.0
    %1834 = vmatprep.subr.mxu0 0.0
    %1835 = vmatpush1.msra.mxu0 0.0
    %1836 = vmatprep.subr.mxu0 0.0
    %1837 = vmatpush1.msra.mxu0 0.0
    %1838 = vmatprep.subr.mxu0 0.0
    %1839 = vmatpush1.msra.mxu0 0.0
    %1840 = vmatprep.subr.mxu0 0.0
    %1841 = vmatpush1.msra.mxu0 0.0
    %1842 = vmatprep.subr.mxu0 0.0
    %1843 = vmatpush1.msra.mxu0 0.0
    %1844 = vmatprep.subr.mxu0 0.0
    %1845 = vmatpush1.msra.mxu0 0.0
    %1846 = vmatprep.subr.mxu0 0.0
    %1847 = vmatpush1.msra.mxu0 0.0
    %1848 = vmatprep.subr.mxu0 0.0
    %1849 = vmatpush1.msra.mxu0 0.0
    %1850 = vmatprep.subr.mxu0 0.0
    %1851 = vmatpush1.msra.mxu0 0.0
    %1852 = vmatprep.subr.mxu0 0.0
    %1853 = vmatpush1.msra.mxu0 0.0
    %1854 = vmatprep.subr.mxu0 0.0
    %1855 = vmatpush1.msra.mxu0 0.0
    %1856 = vmatprep.subr.mxu0 0.0
    %1857 = vmatpush1.msra.mxu0 0.0
    %1858 = vmatprep.subr.mxu0 0.0
    %1859 = vmatpush1.msra.mxu0 0.0
    %1860 = vmatprep.subr.mxu0 0.0
    %1861 = vmatpush1.msra.mxu0 0.0
    %1862 = vmatprep.subr.mxu0 0.0
    %1863 = vmatpush1.msra.mxu0 0.0
    %1864 = vmatprep.subr.mxu0 0.0
    %1865 = vmatpush1.msra.mxu0 0.0
    %1866 = vmatprep.subr.mxu0 0.0
    %1867 = vmatpush1.msra.mxu0 0.0
    %1868 = vmatprep.subr.mxu0 0.0
    %1869 = vmatpush1.msra.mxu0 0.0
    %1870 = vmatprep.subr.mxu0 0.0
    %1871 = vmatpush1.msra.mxu0 0.0
    %1872 = vmatprep.subr.mxu0 0.0
    %1873 = vmatpush1.msra.mxu0 0.0
    %1874 = vmatprep.subr.mxu0 0.0
    %1875 = vmatpush1.msra.mxu0 0.0
    %1876 = vmatprep.subr.mxu0 0.0
    %1877 = vmatpush1.msra.mxu0 0.0
    %1878 = vmatprep.subr.mxu0 0.0
    %1879 = vmatpush1.msra.mxu0 0.0
    %1880 = vmatprep.subr.mxu0 0.0
    %1881 = vmatpush1.msra.mxu0 0.0
    %1882 = vmatprep.mubr.f32.mxu0 0.0
    %1883 = vmatmul.mubr.f32.gmra.mrb[0].mxu0 %v1811
    %v1884 = vpop.f32.mrb[0].mxu0
    %v1885 = vadd.f32 0.0, %v1884
    %v1886 = vpop.f32.mrb[0].mxu0
    %1887 = vmatprep.mubr.f32.mxu0 0.0
    %1888 = vmatmul.mubr.f32.gmra.mrb[0].mxu0 %v1814
    %v1889 = vpop.f32.mrb[0].mxu0
    %v1890 = vadd.f32 0.0, %v1889
    %v1891 = vpop.f32.mrb[0].mxu0
    %1892 = vdwg.mxu0
    %v1894 = vsel %vm543, %v1885, 0
    %v1897 = vsel %vm543, %v1890, 0
    %1899 = vmatprep.subr.mxu0 0.0
    %1900 = vmatpush1.msra.mxu0 %v244
    %1901 = vmatprep.subr.mxu0 0.0
    %1902 = vmatpush1.msra.mxu0 %v245
    %1903 = vmatprep.subr.mxu0 0.0
    %1904 = vmatpush1.msra.mxu0 0.0
    %1905 = vmatprep.subr.mxu0 0.0
    %1906 = vmatpush1.msra.mxu0 0.0
    %1907 = vmatprep.subr.mxu0 0.0
    %1908 = vmatpush1.msra.mxu0 0.0
    %1909 = vmatprep.subr.mxu0 0.0
    %1910 = vmatpush1.msra.mxu0 0.0
    %1911 = vmatprep.subr.mxu0 0.0
    %1912 = vmatpush1.msra.mxu0 0.0
    %1913 = vmatprep.subr.mxu0 0.0
    %1914 = vmatpush1.msra.mxu0 0.0
    %1915 = vmatprep.subr.mxu0 0.0
    %1916 = vmatpush1.msra.mxu0 0.0
    %1917 = vmatprep.subr.mxu0 0.0
    %1918 = vmatpush1.msra.mxu0 0.0
    %1919 = vmatprep.subr.mxu0 0.0
    %1920 = vmatpush1.msra.mxu0 0.0
    %1921 = vmatprep.subr.mxu0 0.0
    %1922 = vmatpush1.msra.mxu0 0.0
    %1923 = vmatprep.subr.mxu0 0.0
    %1924 = vmatpush1.msra.mxu0 0.0
    %1925 = vmatprep.subr.mxu0 0.0
    %1926 = vmatpush1.msra.mxu0 0.0
    %1927 = vmatprep.subr.mxu0 0.0
    %1928 = vmatpush1.msra.mxu0 0.0
    %1929 = vmatprep.subr.mxu0 0.0
    %1930 = vmatpush1.msra.mxu0 0.0
    %1931 = vmatprep.subr.mxu0 0.0
    %1932 = vmatpush1.msra.mxu0 0.0
    %1933 = vmatprep.subr.mxu0 0.0
    %1934 = vmatpush1.msra.mxu0 0.0
    %1935 = vmatprep.subr.mxu0 0.0
    %1936 = vmatpush1.msra.mxu0 0.0
    %1937 = vmatprep.subr.mxu0 0.0
    %1938 = vmatpush1.msra.mxu0 0.0
    %1939 = vmatprep.subr.mxu0 0.0
    %1940 = vmatpush1.msra.mxu0 0.0
    %1941 = vmatprep.subr.mxu0 0.0
    %1942 = vmatpush1.msra.mxu0 0.0
    %1943 = vmatprep.subr.mxu0 0.0
    %1944 = vmatpush1.msra.mxu0 0.0
    %1945 = vmatprep.subr.mxu0 0.0
    %1946 = vmatpush1.msra.mxu0 0.0
    %1947 = vmatprep.subr.mxu0 0.0
    %1948 = vmatpush1.msra.mxu0 0.0
    %1949 = vmatprep.subr.mxu0 0.0
    %1950 = vmatpush1.msra.mxu0 0.0
    %1951 = vmatprep.subr.mxu0 0.0
    %1952 = vmatpush1.msra.mxu0 0.0
    %1953 = vmatprep.subr.mxu0 0.0
    %1954 = vmatpush1.msra.mxu0 0.0
    %1955 = vmatprep.subr.mxu0 0.0
    %1956 = vmatpush1.msra.mxu0 0.0
    %1957 = vmatprep.subr.mxu0 0.0
    %1958 = vmatpush1.msra.mxu0 0.0
    %1959 = vmatprep.subr.mxu0 0.0
    %1960 = vmatpush1.msra.mxu0 0.0
    %1961 = vmatprep.subr.mxu0 0.0
    %1962 = vmatpush1.msra.mxu0 0.0
    %1963 = vmatprep.mubr.f32.mxu0 0.0
    %1964 = vmatmul.mubr.f32.gmra.mrb[0].mxu0 %v1894
    %v1965 = vpop.f32.mrb[0].mxu0
    %v1966 = vadd.f32 0.0, %v1965
    %v1967 = vpop.f32.mrb[0].mxu0
    %1968 = vmatprep.mubr.f32.mxu0 0.0
    %1969 = vmatmul.mubr.f32.gmra.mrb[0].mxu0 %v1897
    %v1970 = vpop.f32.mrb[0].mxu0
    %v1971 = vadd.f32 0.0, %v1970
    %v1972 = vpop.f32.mrb[0].mxu0
    %1973 = vdwg.mxu0
    %v1975 = vsel %vm543, %v1680, 0
    %v1978 = vsel %vm543, %v1685, 0
    %1980 = vmatprep.subr.mxu0 0.0
    %1981 = vmatpush1.msra.mxu0 %v242
    %1982 = vmatprep.subr.mxu0 0.0
    %1983 = vmatpush1.msra.mxu0 %v243
    %1984 = vmatprep.subr.mxu0 0.0
    %1985 = vmatpush1.msra.mxu0 0.0
    %1986 = vmatprep.subr.mxu0 0.0
    %1987 = vmatpush1.msra.mxu0 0.0
    %1988 = vmatprep.subr.mxu0 0.0
    %1989 = vmatpush1.msra.mxu0 0.0
    %1990 = vmatprep.subr.mxu0 0.0
    %1991 = vmatpush1.msra.mxu0 0.0
    %1992 = vmatprep.subr.mxu0 0.0
    %1993 = vmatpush1.msra.mxu0 0.0
    %1994 = vmatprep.subr.mxu0 0.0
    %1995 = vmatpush1.msra.mxu0 0.0
    %1996 = vmatprep.subr.mxu0 0.0
    %1997 = vmatpush1.msra.mxu0 0.0
    %1998 = vmatprep.subr.mxu0 0.0
    %1999 = vmatpush1.msra.mxu0 0.0
    %2000 = vmatprep.subr.mxu0 0.0
    %2001 = vmatpush1.msra.mxu0 0.0
    %2002 = vmatprep.subr.mxu0 0.0
    %2003 = vmatpush1.msra.mxu0 0.0
    %2004 = vmatprep.subr.mxu0 0.0
    %2005 = vmatpush1.msra.mxu0 0.0
    %2006 = vmatprep.subr.mxu0 0.0
    %2007 = vmatpush1.msra.mxu0 0.0
    %2008 = vmatprep.subr.mxu0 0.0
    %2009 = vmatpush1.msra.mxu0 0.0
    %2010 = vmatprep.subr.mxu0 0.0
    %2011 = vmatpush1.msra.mxu0 0.0
    %2012 = vmatprep.subr.mxu0 0.0
    %2013 = vmatpush1.msra.mxu0 0.0
    %2014 = vmatprep.subr.mxu0 0.0
    %2015 = vmatpush1.msra.mxu0 0.0
    %2016 = vmatprep.subr.mxu0 0.0
    %2017 = vmatpush1.msra.mxu0 0.0
    %2018 = vmatprep.subr.mxu0 0.0
    %2019 = vmatpush1.msra.mxu0 0.0
    %2020 = vmatprep.subr.mxu0 0.0
    %2021 = vmatpush1.msra.mxu0 0.0
    %2022 = vmatprep.subr.mxu0 0.0
    %2023 = vmatpush1.msra.mxu0 0.0
    %2024 = vmatprep.subr.mxu0 0.0
    %2025 = vmatpush1.msra.mxu0 0.0
    %2026 = vmatprep.subr.mxu0 0.0
    %2027 = vmatpush1.msra.mxu0 0.0
    %2028 = vmatprep.subr.mxu0 0.0
    %2029 = vmatpush1.msra.mxu0 0.0
    %2030 = vmatprep.subr.mxu0 0.0
    %2031 = vmatpush1.msra.mxu0 0.0
    %2032 = vmatprep.subr.mxu0 0.0
    %2033 = vmatpush1.msra.mxu0 0.0
    %2034 = vmatprep.subr.mxu0 0.0
    %2035 = vmatpush1.msra.mxu0 0.0
    %2036 = vmatprep.subr.mxu0 0.0
    %2037 = vmatpush1.msra.mxu0 0.0
    %2038 = vmatprep.subr.mxu0 0.0
    %2039 = vmatpush1.msra.mxu0 0.0
    %2040 = vmatprep.subr.mxu0 0.0
    %2041 = vmatpush1.msra.mxu0 0.0
    %2042 = vmatprep.subr.mxu0 0.0
    %2043 = vmatpush1.msra.mxu0 0.0
    %2044 = vmatprep.mubr.f32.mxu0 0.0
    %2045 = vmatmul.mubr.f32.gmra.mrb[0].mxu0 %v1975
    %v2046 = vpop.f32.mrb[0].mxu0
    %v2047 = vadd.f32 %v1966, %v2046
    %v2048 = vpop.f32.mrb[0].mxu0
    %2049 = vmatprep.mubr.f32.mxu0 0.0
    %2050 = vmatmul.mubr.f32.gmra.mrb[0].mxu0 %v1978
    %v2051 = vpop.f32.mrb[0].mxu0
    %v2052 = vadd.f32 %v1971, %v2051
    %v2053 = vpop.f32.mrb[0].mxu0
    %2054 = vdwg.mxu0
    %v2056 = vlaneseq
    %v2057 = vshrl.u32 %v2056, 7
    %v2058 = vsub.s32 0, %v2057
    %v2059 = vrot.slane %v247, %v2058
    %v2061 = vadd.f32 %v2047, %v2059
    %v2062 = vadd.f32 %v2052, %v2059
    %v2063 = vadd.f32 %v1354, %v2061
    %v2064 = vadd.f32 %v1355, %v2062
    %v2065 = vsel %vm363, %v2063, 0.0
    %2066 = vadd.xlane.f32.xlu0 %v2065
    %v2067 = vpop.xlane.xlu0 %2066
    %v2068 = vsel %vm367, %v2064, 0.0
    %2069 = vadd.xlane.f32.xlu0 %v2068
    %v2070 = vpop.xlane.xlu0 %2069
    %v2071 = vmul.f32 %v2067, %v371
    %v2072 = vmul.f32 %v2070, %v371
    %v2073 = vsub.f32 %v2063, %v2071
    %v2074 = vsub.f32 %v2064, %v2072
    %v2075 = vmul.f32 %v2073, %v2073
    %v2076 = vmul.f32 %v2074, %v2074
    %v2077 = vsel %vm363, %v2075, 0.0
    %2078 = vadd.xlane.f32.xlu0 %v2077
    %v2079 = vpop.xlane.xlu0 %2078
    %v2080 = vsel %vm367, %v2076, 0.0
    %2081 = vadd.xlane.f32.xlu0 %v2080
    %v2082 = vpop.xlane.xlu0 %2081
    %v2083 = vmul.f32 %v2079, %v371
    %v2084 = vmul.f32 %v2082, %v371
    %v2085 = vadd.f32 %v2083, 1e-05
    %v2086 = vadd.f32 %v2084, 1e-05
    %v2087 = vrsqrt.pop %v2085
    %v2088 = vrsqrt.pop %v2086
    %v2089 = vmul.f32 %v2073, %v2087
    %v2090 = vmul.f32 %v2074, %v2088
    %v2092 = vlaneseq
    %v2093 = vshrl.u32 %v2092, 7
    %v2094 = vsub.s32 0, %v2093
    %v2095 = vrot.slane %v249, %v2094
    %v2097 = vmul.f32 %v2089, %v2095
    %v2098 = vmul.f32 %v2090, %v2095
    %v2100 = vlaneseq
    %v2101 = vshrl.u32 %v2100, 7
    %v2102 = vsub.s32 0, %v2101
    %v2103 = vrot.slane %v251, %v2102
    %v2105 = vadd.f32 %v2097, %v2103
    %v2106 = vadd.f32 %v2098, %v2103
    %v2108 = vlaneseq
    %v2109 = vshrl.u32 %v2108, 7
    %v2110 = vsub.s32 0, %v2109
    %v2111 = vrot.slane %v258, %v2110
    %v2114 = vsel %vm363, %v2105, 0
    %v2117 = vsel %vm363, %v2106, 0
    %2119 = vmatprep.subr.mxu0 0.0
    %2120 = vmatpush1.msra.mxu0 %v253
    %2121 = vmatprep.subr.mxu0 0.0
    %2122 = vmatpush1.msra.mxu0 %v254
    %2123 = vmatprep.subr.mxu0 0.0
    %2124 = vmatpush1.msra.mxu0 %v255
    %2125 = vmatprep.subr.mxu0 0.0
    %2126 = vmatpush1.msra.mxu0 %v256
    %2127 = vmatprep.subr.mxu0 0.0
    %2128 = vmatpush1.msra.mxu0 0.0
    %2129 = vmatprep.subr.mxu0 0.0
    %2130 = vmatpush1.msra.mxu0 0.0
    %2131 = vmatprep.subr.mxu0 0.0
    %2132 = vmatpush1.msra.mxu0 0.0
    %2133 = vmatprep.subr.mxu0 0.0
    %2134 = vmatpush1.msra.mxu0 0.0
    %2135 = vmatprep.subr.mxu0 0.0
    %2136 = vmatpush1.msra.mxu0 0.0
    %2137 = vmatprep.subr.mxu0 0.0
    %2138 = vmatpush1.msra.mxu0 0.0
    %2139 = vmatprep.subr.mxu0 0.0
    %2140 = vmatpush1.msra.mxu0 0.0
    %2141 = vmatprep.subr.mxu0 0.0
    %2142 = vmatpush1.msra.mxu0 0.0
    %2143 = vmatprep.subr.mxu0 0.0
    %2144 = vmatpush1.msra.mxu0 0.0
    %2145 = vmatprep.subr.mxu0 0.0
    %2146 = vmatpush1.msra.mxu0 0.0
    %2147 = vmatprep.subr.mxu0 0.0
    %2148 = vmatpush1.msra.mxu0 0.0
    %2149 = vmatprep.subr.mxu0 0.0
    %2150 = vmatpush1.msra.mxu0 0.0
    %2151 = vmatprep.subr.mxu0 0.0
    %2152 = vmatpush1.msra.mxu0 0.0
    %2153 = vmatprep.subr.mxu0 0.0
    %2154 = vmatpush1.msra.mxu0 0.0
    %2155 = vmatprep.subr.mxu0 0.0
    %2156 = vmatpush1.msra.mxu0 0.0
    %2157 = vmatprep.subr.mxu0 0.0
    %2158 = vmatpush1.msra.mxu0 0.0
    %2159 = vmatprep.subr.mxu0 0.0
    %2160 = vmatpush1.msra.mxu0 0.0
    %2161 = vmatprep.subr.mxu0 0.0
    %2162 = vmatpush1.msra.mxu0 0.0
    %2163 = vmatprep.subr.mxu0 0.0
    %2164 = vmatpush1.msra.mxu0 0.0
    %2165 = vmatprep.subr.mxu0 0.0
    %2166 = vmatpush1.msra.mxu0 0.0
    %2167 = vmatprep.subr.mxu0 0.0
    %2168 = vmatpush1.msra.mxu0 0.0
    %2169 = vmatprep.subr.mxu0 0.0
    %2170 = vmatpush1.msra.mxu0 0.0
    %2171 = vmatprep.subr.mxu0 0.0
    %2172 = vmatpush1.msra.mxu0 0.0
    %2173 = vmatprep.subr.mxu0 0.0
    %2174 = vmatpush1.msra.mxu0 0.0
    %2175 = vmatprep.subr.mxu0 0.0
    %2176 = vmatpush1.msra.mxu0 0.0
    %2177 = vmatprep.subr.mxu0 0.0
    %2178 = vmatpush1.msra.mxu0 0.0
    %2179 = vmatprep.subr.mxu0 0.0
    %2180 = vmatpush1.msra.mxu0 0.0
    %2181 = vmatprep.subr.mxu0 0.0
    %2182 = vmatpush1.msra.mxu0 0.0
    %2183 = vmatprep.mubr.f32.mxu0 0.0
    %2184 = vmatmul.mubr.f32.gmra.mrb[0].mxu0 %v2114
    %v2185 = vpop.f32.mrb[0].mxu0
    %v2186 = vadd.f32 %v2111, %v2185
    %v2187 = vpop.f32.mrb[0].mxu0
    %2188 = vmatprep.mubr.f32.mxu0 0.0
    %2189 = vmatmul.mubr.f32.gmra.mrb[0].mxu0 %v2117
    %v2190 = vpop.f32.mrb[0].mxu0
    %v2191 = vadd.f32 %v2111, %v2190
    %v2192 = vpop.f32.mrb[0].mxu0
    %2193 = vdwg.mxu0
    %v2194 = vmul.f32 %v2186, 1.702
    %v2195 = vmul.f32 %v2191, 1.702
    %v2196 = vxor.u32 %v2194, 2147483648
    %v2197 = vxor.u32 %v2195, 2147483648
    %v2198 = vmul.f32 %v2196, 1.442695
    %v2199 = vpow.pop %v2198
    %v2200 = vmul.f32 %v2197, 1.442695
    %v2201 = vpow.pop %v2200
    %v2202 = vadd.f32 %v2199, 1.0
    %v2203 = vadd.f32 %v2201, 1.0
    %v2204 = vrcp.pop %v2202
    %v2205 = vmul.f32 1.0, %v2204
    %v2206 = vrcp.pop %v2203
    %v2207 = vmul.f32 1.0, %v2206
    %v2208 = vmul.f32 %v2186, %v2205
    %v2209 = vmul.f32 %v2191, %v2207
    %v2211 = vlaneseq
    %v2212 = vshrl.u32 %v2211, 7
    %v2213 = vsub.s32 0, %v2212
    %v2214 = vrot.slane %v269, %v2213
    %v2217 = vsel %vm1272, %v2208, 0
    %v2220 = vsel %vm1272, %v2209, 0
    %2222 = vmatprep.subr.mxu0 0.0
    %2223 = vmatpush1.msra.mxu0 %v260
    %2224 = vmatprep.subr.mxu0 0.0
    %2225 = vmatpush1.msra.mxu0 %v261
    %2226 = vmatprep.subr.mxu0 0.0
    %2227 = vmatpush1.msra.mxu0 %v262
    %2228 = vmatprep.subr.mxu0 0.0
    %2229 = vmatpush1.msra.mxu0 %v263
    %2230 = vmatprep.subr.mxu0 0.0
    %2231 = vmatpush1.msra.mxu0 %v264
    %2232 = vmatprep.subr.mxu0 0.0
    %2233 = vmatpush1.msra.mxu0 %v265
    %2234 = vmatprep.subr.mxu0 0.0
    %2235 = vmatpush1.msra.mxu0 %v266
    %2236 = vmatprep.subr.mxu0 0.0
    %2237 = vmatpush1.msra.mxu0 %v267
    %2238 = vmatprep.subr.mxu0 0.0
    %2239 = vmatpush1.msra.mxu0 0.0
    %2240 = vmatprep.subr.mxu0 0.0
    %2241 = vmatpush1.msra.mxu0 0.0
    %2242 = vmatprep.subr.mxu0 0.0
    %2243 = vmatpush1.msra.mxu0 0.0
    %2244 = vmatprep.subr.mxu0 0.0
    %2245 = vmatpush1.msra.mxu0 0.0
    %2246 = vmatprep.subr.mxu0 0.0
    %2247 = vmatpush1.msra.mxu0 0.0
    %2248 = vmatprep.subr.mxu0 0.0
    %2249 = vmatpush1.msra.mxu0 0.0
    %2250 = vmatprep.subr.mxu0 0.0
    %2251 = vmatpush1.msra.mxu0 0.0
    %2252 = vmatprep.subr.mxu0 0.0
    %2253 = vmatpush1.msra.mxu0 0.0
    %2254 = vmatprep.subr.mxu0 0.0
    %2255 = vmatpush1.msra.mxu0 0.0
    %2256 = vmatprep.subr.mxu0 0.0
    %2257 = vmatpush1.msra.mxu0 0.0
    %2258 = vmatprep.subr.mxu0 0.0
    %2259 = vmatpush1.msra.mxu0 0.0
    %2260 = vmatprep.subr.mxu0 0.0
    %2261 = vmatpush1.msra.mxu0 0.0
    %2262 = vmatprep.subr.mxu0 0.0
    %2263 = vmatpush1.msra.mxu0 0.0
    %2264 = vmatprep.subr.mxu0 0.0
    %2265 = vmatpush1.msra.mxu0 0.0
    %2266 = vmatprep.subr.mxu0 0.0
    %2267 = vmatpush1.msra.mxu0 0.0
    %2268 = vmatprep.subr.mxu0 0.0
    %2269 = vmatpush1.msra.mxu0 0.0
    %2270 = vmatprep.subr.mxu0 0.0
    %2271 = vmatpush1.msra.mxu0 0.0
    %2272 = vmatprep.subr.mxu0 0.0
    %2273 = vmatpush1.msra.mxu0 0.0
    %2274 = vmatprep.subr.mxu0 0.0
    %2275 = vmatpush1.msra.mxu0 0.0
    %2276 = vmatprep.subr.mxu0 0.0
    %2277 = vmatpush1.msra.mxu0 0.0
    %2278 = vmatprep.subr.mxu0 0.0
    %2279 = vmatpush1.msra.mxu0 0.0
    %2280 = vmatprep.subr.mxu0 0.0
    %2281 = vmatpush1.msra.mxu0 0.0
    %2282 = vmatprep.subr.mxu0 0.0
    %2283 = vmatpush1.msra.mxu0 0.0
    %2284 = vmatprep.subr.mxu0 0.0
    %2285 = vmatpush1.msra.mxu0 0.0
    %2286 = vmatprep.mubr.f32.mxu0 0.0
    %2287 = vmatmul.mubr.f32.gmra.mrb[0].mxu0 %v2217
    %v2288 = vpop.f32.mrb[0].mxu0
    %v2289 = vadd.f32 %v2214, %v2288
    %v2290 = vpop.f32.mrb[0].mxu0
    %2291 = vmatprep.mubr.f32.mxu0 0.0
    %2292 = vmatmul.mubr.f32.gmra.mrb[0].mxu0 %v2220
    %v2293 = vpop.f32.mrb[0].mxu0
    %v2294 = vadd.f32 %v2214, %v2293
    %v2295 = vpop.f32.mrb[0].mxu0
    %2296 = vdwg.mxu0
    %v2297 = vadd.f32 %v2063, %v2289
    %v2298 = vadd.f32 %v2064, %v2294
    %v2300 = vsel %vm631, %v276, 0
    %v2303 = vsel %vm666, %v2298, 0
    %2305 = vmatprep.subr.mxu0 0.0
    %2306 = vmatpush1.msra.mxu0 %v2297
    %2307 = vmatprep.subr.mxu0 0.0
    %2308 = vmatpush1.msra.mxu0 %v2303
    %2309 = vmatprep.subr.mxu0 0.0
    %2310 = vmatpush1.msra.mxu0 0.0
    %2311 = vmatprep.subr.mxu0 0.0
    %2312 = vmatpush1.msra.mxu0 0.0
    %2313 = vmatprep.subr.mxu0 0.0
    %2314 = vmatpush1.msra.mxu0 0.0
    %2315 = vmatprep.subr.mxu0 0.0
    %2316 = vmatpush1.msra.mxu0 0.0
    %2317 = vmatprep.subr.mxu0 0.0
    %2318 = vmatpush1.msra.mxu0 0.0
    %2319 = vmatprep.subr.mxu0 0.0
    %2320 = vmatpush1.msra.mxu0 0.0
    %2321 = vmatprep.subr.mxu0 0.0
    %2322 = vmatpush1.msra.mxu0 0.0
    %2323 = vmatprep.subr.mxu0 0.0
    %2324 = vmatpush1.msra.mxu0 0.0
    %2325 = vmatprep.subr.mxu0 0.0
    %2326 = vmatpush1.msra.mxu0 0.0
    %2327 = vmatprep.subr.mxu0 0.0
    %2328 = vmatpush1.msra.mxu0 0.0
    %2329 = vmatprep.subr.mxu0 0.0
    %2330 = vmatpush1.msra.mxu0 0.0
    %2331 = vmatprep.subr.mxu0 0.0
    %2332 = vmatpush1.msra.mxu0 0.0
    %2333 = vmatprep.subr.mxu0 0.0
    %2334 = vmatpush1.msra.mxu0 0.0
    %2335 = vmatprep.subr.mxu0 0.0
    %2336 = vmatpush1.msra.mxu0 0.0
    %2337 = vmatprep.subr.mxu0 0.0
    %2338 = vmatpush1.msra.mxu0 0.0
    %2339 = vmatprep.subr.mxu0 0.0
    %2340 = vmatpush1.msra.mxu0 0.0
    %2341 = vmatprep.subr.mxu0 0.0
    %2342 = vmatpush1.msra.mxu0 0.0
    %2343 = vmatprep.subr.mxu0 0.0
    %2344 = vmatpush1.msra.mxu0 0.0
    %2345 = vmatprep.subr.mxu0 0.0
    %2346 = vmatpush1.msra.mxu0 0.0
    %2347 = vmatprep.subr.mxu0 0.0
    %2348 = vmatpush1.msra.mxu0 0.0
    %2349 = vmatprep.subr.mxu0 0.0
    %2350 = vmatpush1.msra.mxu0 0.0
    %2351 = vmatprep.subr.mxu0 0.0
    %2352 = vmatpush1.msra.mxu0 0.0
    %2353 = vmatprep.subr.mxu0 0.0
    %2354 = vmatpush1.msra.mxu0 0.0
    %2355 = vmatprep.subr.mxu0 0.0
    %2356 = vmatpush1.msra.mxu0 0.0
    %2357 = vmatprep.subr.mxu0 0.0
    %2358 = vmatpush1.msra.mxu0 0.0
    %2359 = vmatprep.subr.mxu0 0.0
    %2360 = vmatpush1.msra.mxu0 0.0
    %2361 = vmatprep.subr.mxu0 0.0
    %2362 = vmatpush1.msra.mxu0 0.0
    %2363 = vmatprep.subr.mxu0 0.0
    %2364 = vmatpush1.msra.mxu0 0.0
    %2365 = vmatprep.subr.mxu0 0.0
    %2366 = vmatpush1.msra.mxu0 0.0
    %2367 = vmatprep.subr.mxu0 0.0
    %2368 = vmatpush1.msra.mxu0 0.0
    %2369 = vmatprep.mubr.f32.mxu0 0.0
    %2370 = vmatmul.mubr.f32.gmra.mrb[0].mxu0 %v2300
    %v2371 = vpop.f32.mrb[0].mxu0
    %v2372 = vadd.f32 0.0, %v2371
    %v2373 = vpop.f32.mrb[0].mxu0
    %2374 = vdwg.mxu0
    %v2375 = vsel %vm367, %v2372, 0.0
    %2376 = vadd.xlane.f32.xlu0 %v2375
    %v2377 = vpop.xlane.xlu0 %2376
    %v2378 = vmul.f32 %v2377, %v371
    %v2379 = vsub.f32 %v2372, %v2378
    %v2380 = vmul.f32 %v2379, %v2379
    %v2381 = vsel %vm367, %v2380, 0.0
    %2382 = vadd.xlane.f32.xlu0 %v2381
    %v2383 = vpop.xlane.xlu0 %2382
    %v2384 = vmul.f32 %v2383, %v371
    %v2385 = vadd.f32 %v2384, 1e-05
    %v2386 = vrsqrt.pop %v2385
    %v2387 = vmul.f32 %v2379, %v2386
    %v2389 = vlaneseq
    %v2390 = vshrl.u32 %v2389, 7
    %v2391 = vsub.s32 0, %v2390
    %v2392 = vrot.slane %v270, %v2391
    %v2394 = vmul.f32 %v2387, %v2392
    %v2396 = vlaneseq
    %v2397 = vshrl.u32 %v2396, 7
    %v2398 = vsub.s32 0, %v2397
    %v2399 = vrot.slane %v271, %v2398
    %v2401 = vadd.f32 %v2394, %v2399
    %v2402 = vld [vmem:[%s45] sm:$0xff]
    %v2403 = vld [vmem:[%s45 + $0x8] sm:$0xff]
    %v2404 = vld [vmem:[%s47] sm:$0xff]
    %v2405 = vld [vmem:[%s47 + $0x8] sm:$0xff]
    %v2406 = vld [vmem:[%s49] sm:$0x3]
    %v2407 = vld [vmem:[%s51] sm:$0x1]
    %v2408 = vld [vmem:[%s53] sm:$0x1]
    %v2409 = vld [vmem:[%s55] sm:$0xff]
    %v2410 = vld [vmem:[%s55 + $0x8] sm:$0xff]
    %v2411 = vld [vmem:[%s55 + $0x10] sm:$0xff]
    %v2412 = vld [vmem:[%s55 + $0x18] sm:$0xff]
    %v2413 = vld [vmem:[%s57] sm:$0x1]
    %v2414 = vld [vmem:[%s59] sm:$0xff]
    %v2415 = vld [vmem:[%s59 + $0x8] sm:$0xff]
    %v2416 = vld [vmem:[%s59 + $0x10] sm:$0xff]
    %v2417 = vld [vmem:[%s59 + $0x18] sm:$0xff]
    %v2418 = vld [vmem:[%s61] sm:$0x1]
    %v2419 = vld [vmem:[%s63] sm:$0x1]
    %v2420 = vld [vmem:[%s65] sm:$0x1]
    %v2421 = vld [vmem:[%s67] sm:$0xff]
    %v2422 = vld [vmem:[%s67 + $0x8] sm:$0xff]
    %v2423 = vld [vmem:[%s67 + $0x10] sm:$0xff]
    %v2424 = vld [vmem:[%s67 + $0x18] sm:$0xff]
    %v2425 = vld [vmem:[%s69] sm:$0x1]
    %v2426 = vld [vmem:[%s71] sm:$0xff]
    %v2427 = vld [vmem:[%s71 + $0x8] sm:$0xff]
    %v2428 = vld [vmem:[%s71 + $0x10] sm:$0xff]
    %v2429 = vld [vmem:[%s71 + $0x18] sm:$0xff]
    %v2430 = vld [vmem:[%s71 + $0x20] sm:$0xff]
    %v2431 = vld [vmem:[%s71 + $0x28] sm:$0xff]
    %v2432 = vld [vmem:[%s71 + $0x30] sm:$0xff]
    %v2433 = vld [vmem:[%s71 + $0x38] sm:$0xff]
    %v2434 = vld [vmem:[%s73] sm:$0x1]
    %s2435 = scalar_lea.vmem %s51, 1
    %v2436 = vld [vmem:[%s2435] sm:$0x1]
    %s2437 = scalar_lea.vmem %s53, 1
    %v2438 = vld [vmem:[%s2437] sm:$0x1]
    %s2439 = scalar_lea.vmem %s55, 32
    %v2440 = vld [vmem:[%s2439] sm:$0xff]
    %v2441 = vld [vmem:[%s2439 + $0x8] sm:$0xff]
    %v2442 = vld [vmem:[%s2439 + $0x10] sm:$0xff]
    %v2443 = vld [vmem:[%s2439 + $0x18] sm:$0xff]
    %s2444 = scalar_lea.vmem %s57, 1
    %v2445 = vld [vmem:[%s2444] sm:$0x1]
    %s2446 = scalar_lea.vmem %s59, 32
    %v2447 = vld [vmem:[%s2446] sm:$0xff]
    %v2448 = vld [vmem:[%s2446 + $0x8] sm:$0xff]
    %v2449 = vld [vmem:[%s2446 + $0x10] sm:$0xff]
    %v2450 = vld [vmem:[%s2446 + $0x18] sm:$0xff]
    %s2451 = scalar_lea.vmem %s61, 1
    %v2452 = vld [vmem:[%s2451] sm:$0x1]
    %s2453 = scalar_lea.vmem %s63, 1
    %v2454 = vld [vmem:[%s2453] sm:$0x1]
    %s2455 = scalar_lea.vmem %s65, 1
    %v2456 = vld [vmem:[%s2455] sm:$0x1]
    %s2457 = scalar_lea.vmem %s67, 32
    %v2458 = vld [vmem:[%s2457] sm:$0xff]
    %v2459 = vld [vmem:[%s2457 + $0x8] sm:$0xff]
    %v2460 = vld [vmem:[%s2457 + $0x10] sm:$0xff]
    %v2461 = vld [vmem:[%s2457 + $0x18] sm:$0xff]
    %s2462 = scalar_lea.vmem %s69, 1
    %v2463 = vld [vmem:[%s2462] sm:$0x1]
    %s2464 = scalar_lea.vmem %s71, 64
    %v2465 = vld [vmem:[%s2464] sm:$0xff]
    %v2466 = vld [vmem:[%s2464 + $0x8] sm:$0xff]
    %v2467 = vld [vmem:[%s2464 + $0x10] sm:$0xff]
    %v2468 = vld [vmem:[%s2464 + $0x18] sm:$0xff]
    %v2469 = vld [vmem:[%s2464 + $0x20] sm:$0xff]
    %v2470 = vld [vmem:[%s2464 + $0x28] sm:$0xff]
    %v2471 = vld [vmem:[%s2464 + $0x30] sm:$0xff]
    %v2472 = vld [vmem:[%s2464 + $0x38] sm:$0xff]
    %s2473 = scalar_lea.vmem %s73, 1
    %v2474 = vld [vmem:[%s2473] sm:$0x1]
    %v2475 = vld [vmem:[%s75] sm:$0x1]
    %v2476 = vld [vmem:[%s77] sm:$0x1]
    %v2477 = vld [vmem:[%s79] sm:$0xff]
    %v2478 = vld [vmem:[%s79 + $0x8] sm:$0xff]
    %v2479 = vld [vmem:[%s79 + $0x10] sm:$0xff]
    %v2480 = vld [vmem:[%s79 + $0x18] sm:$0xff]
    %v2481 = vsel %vm363, %v2402, 0.0
    %2482 = vadd.xlane.f32.xlu0 %v2481
    %v2483 = vpop.xlane.xlu0 %2482
    %v2484 = vsel %vm363, %v2403, 0.0
    %2485 = vadd.xlane.f32.xlu0 %v2484
    %v2486 = vpop.xlane.xlu0 %2485
    %v2487 = vmul.f32 %v2483, %v371
    %v2488 = vmul.f32 %v2486, %v371
    %v2489 = vsub.f32 %v2402, %v2487
    %v2490 = vsub.f32 %v2403, %v2488
    %v2491 = vmul.f32 %v2489, %v2489
    %v2492 = vmul.f32 %v2490, %v2490
    %v2493 = vsel %vm363, %v2491, 0.0
    %2494 = vadd.xlane.f32.xlu0 %v2493
    %v2495 = vpop.xlane.xlu0 %2494
    %v2496 = vsel %vm363, %v2492, 0.0
    %2497 = vadd.xlane.f32.xlu0 %v2496
    %v2498 = vpop.xlane.xlu0 %2497
    %v2499 = vmul.f32 %v2495, %v371
    %v2500 = vmul.f32 %v2498, %v371
    %v2501 = vadd.f32 %v2499, 1e-05
    %v2502 = vadd.f32 %v2500, 1e-05
    %v2503 = vrsqrt.pop %v2501
    %v2504 = vrsqrt.pop %v2502
    %v2505 = vmul.f32 %v2489, %v2503
    %v2506 = vmul.f32 %v2490, %v2504
    %v2508 = vlaneseq
    %v2509 = vshrl.u32 %v2508, 7
    %v2510 = vsub.s32 0, %v2509
    %v2511 = vrot.slane %v2407, %v2510
    %v2513 = vmul.f32 %v2505, %v2511
    %v2514 = vmul.f32 %v2506, %v2511
    %v2516 = vlaneseq
    %v2517 = vshrl.u32 %v2516, 7
    %v2518 = vsub.s32 0, %v2517
    %v2519 = vrot.slane %v2408, %v2518
    %v2521 = vadd.f32 %v2513, %v2519
    %v2522 = vadd.f32 %v2514, %v2519
    %v2524 = vlaneseq
    %v2525 = vshrl.u32 %v2524, 7
    %v2526 = vsub.s32 0, %v2525
    %v2527 = vrot.slane %v2413, %v2526
    %v2530 = vsel %vm363, %v2521, 0
    %v2533 = vsel %vm363, %v2522, 0
    %2535 = vmatprep.subr.mxu0 0.0
    %2536 = vmatpush1.msra.mxu0 %v2409
    %2537 = vmatprep.subr.mxu0 0.0
    %2538 = vmatpush1.msra.mxu0 %v2410
    %2539 = vmatprep.subr.mxu0 0.0
    %2540 = vmatpush1.msra.mxu0 %v2411
    %2541 = vmatprep.subr.mxu0 0.0
    %2542 = vmatpush1.msra.mxu0 %v2412
    %2543 = vmatprep.subr.mxu0 0.0
    %2544 = vmatpush1.msra.mxu0 0.0
    %2545 = vmatprep.subr.mxu0 0.0
    %2546 = vmatpush1.msra.mxu0 0.0
    %2547 = vmatprep.subr.mxu0 0.0
    %2548 = vmatpush1.msra.mxu0 0.0
    %2549 = vmatprep.subr.mxu0 0.0
    %2550 = vmatpush1.msra.mxu0 0.0
    %2551 = vmatprep.subr.mxu0 0.0
    %2552 = vmatpush1.msra.mxu0 0.0
    %2553 = vmatprep.subr.mxu0 0.0
    %2554 = vmatpush1.msra.mxu0 0.0
    %2555 = vmatprep.subr.mxu0 0.0
    %2556 = vmatpush1.msra.mxu0 0.0
    %2557 = vmatprep.subr.mxu0 0.0
    %2558 = vmatpush1.msra.mxu0 0.0
    %2559 = vmatprep.subr.mxu0 0.0
    %2560 = vmatpush1.msra.mxu0 0.0
    %2561 = vmatprep.subr.mxu0 0.0
    %2562 = vmatpush1.msra.mxu0 0.0
    %2563 = vmatprep.subr.mxu0 0.0
    %2564 = vmatpush1.msra.mxu0 0.0
    %2565 = vmatprep.subr.mxu0 0.0
    %2566 = vmatpush1.msra.mxu0 0.0
    %2567 = vmatprep.subr.mxu0 0.0
    %2568 = vmatpush1.msra.mxu0 0.0
    %2569 = vmatprep.subr.mxu0 0.0
    %2570 = vmatpush1.msra.mxu0 0.0
    %2571 = vmatprep.subr.mxu0 0.0
    %2572 = vmatpush1.msra.mxu0 0.0
    %2573 = vmatprep.subr.mxu0 0.0
    %2574 = vmatpush1.msra.mxu0 0.0
    %2575 = vmatprep.subr.mxu0 0.0
    %2576 = vmatpush1.msra.mxu0 0.0
    %2577 = vmatprep.subr.mxu0 0.0
    %2578 = vmatpush1.msra.mxu0 0.0
    %2579 = vmatprep.subr.mxu0 0.0
    %2580 = vmatpush1.msra.mxu0 0.0
    %2581 = vmatprep.subr.mxu0 0.0
    %2582 = vmatpush1.msra.mxu0 0.0
    %2583 = vmatprep.subr.mxu0 0.0
    %2584 = vmatpush1.msra.mxu0 0.0
    %2585 = vmatprep.subr.mxu0 0.0
    %2586 = vmatpush1.msra.mxu0 0.0
    %2587 = vmatprep.subr.mxu0 0.0
    %2588 = vmatpush1.msra.mxu0 0.0
    %2589 = vmatprep.subr.mxu0 0.0
    %2590 = vmatpush1.msra.mxu0 0.0
    %2591 = vmatprep.subr.mxu0 0.0
    %2592 = vmatpush1.msra.mxu0 0.0
    %2593 = vmatprep.subr.mxu0 0.0
    %2594 = vmatpush1.msra.mxu0 0.0
    %2595 = vmatprep.subr.mxu0 0.0
    %2596 = vmatpush1.msra.mxu0 0.0
    %2597 = vmatprep.subr.mxu0 0.0
    %2598 = vmatpush1.msra.mxu0 0.0
    %2599 = vmatprep.mubr.f32.mxu0 0.0
    %2600 = vmatmul.mubr.f32.gmra.mrb[0].mxu0 %v2530
    %v2601 = vpop.f32.mrb[0].mxu0
    %v2602 = vadd.f32 %v2527, %v2601
    %v2603 = vpop.f32.mrb[0].mxu0
    %2604 = vmatprep.mubr.f32.mxu0 0.0
    %2605 = vmatmul.mubr.f32.gmra.mrb[0].mxu0 %v2533
    %v2606 = vpop.f32.mrb[0].mxu0
    %v2607 = vadd.f32 %v2527, %v2606
    %v2608 = vpop.f32.mrb[0].mxu0
    %2609 = vdwg.mxu0
    %2612 = vrot.lane.b32.xlu0 %v2602, 96
    %v2613 = vpop.permute.xlu0 %2612
    %2614 = vrot.lane.b32.xlu0 %v2607, 96
    %v2615 = vpop.permute.xlu0 %2614
    %v2616 = vsel %vm543, %v2602, 0
    %v2618 = vsel %vm543, %v2607, 0
    %v2620 = vsel %vm543, %v2613, 0
    %v2622 = vsel %vm543, %v2615, 0
    %2624 = vmatprep.subr.mxu0 0.0
    %2625 = vmatpush1.xpose.msra.mxu0 %v2620
    %2626 = vmatprep.subr.mxu0 0.0
    %2627 = vmatpush1.xpose.msra.mxu0 %v2622
    %2628 = vmatprep.subr.mxu0 0.0
    %2629 = vmatpush1.xpose.msra.mxu0 0.0
    %2630 = vmatprep.subr.mxu0 0.0
    %2631 = vmatpush1.xpose.msra.mxu0 0.0
    %2632 = vmatprep.subr.mxu0 0.0
    %2633 = vmatpush1.xpose.msra.mxu0 0.0
    %2634 = vmatprep.subr.mxu0 0.0
    %2635 = vmatpush1.xpose.msra.mxu0 0.0
    %2636 = vmatprep.subr.mxu0 0.0
    %2637 = vmatpush1.xpose.msra.mxu0 0.0
    %2638 = vmatprep.subr.mxu0 0.0
    %2639 = vmatpush1.xpose.msra.mxu0 0.0
    %2640 = vmatprep.subr.mxu0 0.0
    %2641 = vmatpush1.xpose.msra.mxu0 0.0
    %2642 = vmatprep.subr.mxu0 0.0
    %2643 = vmatpush1.xpose.msra.mxu0 0.0
    %2644 = vmatprep.subr.mxu0 0.0
    %2645 = vmatpush1.xpose.msra.mxu0 0.0
    %2646 = vmatprep.subr.mxu0 0.0
    %2647 = vmatpush1.xpose.msra.mxu0 0.0
    %2648 = vmatprep.subr.mxu0 0.0
    %2649 = vmatpush1.xpose.msra.mxu0 0.0
    %2650 = vmatprep.subr.mxu0 0.0
    %2651 = vmatpush1.xpose.msra.mxu0 0.0
    %2652 = vmatprep.subr.mxu0 0.0
    %2653 = vmatpush1.xpose.msra.mxu0 0.0
    %2654 = vmatprep.subr.mxu0 0.0
    %2655 = vmatpush1.xpose.msra.mxu0 0.0
    %2656 = vmatprep.subr.mxu0 0.0
    %2657 = vmatpush1.xpose.msra.mxu0 0.0
    %2658 = vmatprep.subr.mxu0 0.0
    %2659 = vmatpush1.xpose.msra.mxu0 0.0
    %2660 = vmatprep.subr.mxu0 0.0
    %2661 = vmatpush1.xpose.msra.mxu0 0.0
    %2662 = vmatprep.subr.mxu0 0.0
    %2663 = vmatpush1.xpose.msra.mxu0 0.0
    %2664 = vmatprep.subr.mxu0 0.0
    %2665 = vmatpush1.xpose.msra.mxu0 0.0
    %2666 = vmatprep.subr.mxu0 0.0
    %2667 = vmatpush1.xpose.msra.mxu0 0.0
    %2668 = vmatprep.subr.mxu0 0.0
    %2669 = vmatpush1.xpose.msra.mxu0 0.0
    %2670 = vmatprep.subr.mxu0 0.0
    %2671 = vmatpush1.xpose.msra.mxu0 0.0
    %2672 = vmatprep.subr.mxu0 0.0
    %2673 = vmatpush1.xpose.msra.mxu0 0.0
    %2674 = vmatprep.subr.mxu0 0.0
    %2675 = vmatpush1.xpose.msra.mxu0 0.0
    %2676 = vmatprep.subr.mxu0 0.0
    %2677 = vmatpush1.xpose.msra.mxu0 0.0
    %2678 = vmatprep.subr.mxu0 0.0
    %2679 = vmatpush1.xpose.msra.mxu0 0.0
    %2680 = vmatprep.subr.mxu0 0.0
    %2681 = vmatpush1.xpose.msra.mxu0 0.0
    %2682 = vmatprep.subr.mxu0 0.0
    %2683 = vmatpush1.xpose.msra.mxu0 0.0
    %2684 = vmatprep.subr.mxu0 0.0
    %2685 = vmatpush1.xpose.msra.mxu0 0.0
    %2686 = vmatprep.subr.mxu0 0.0
    %2687 = vmatpush1.xpose.msra.mxu0 0.0
    %2688 = vmatprep.mubr.f32.mxu0 0.0
    %2689 = vmatmul.mubr.f32.gmra.mrb[0].mxu0 %v2616
    %v2690 = vpop.f32.mrb[0].mxu0
    %v2691 = vadd.f32 0.0, %v2690
    %v2692 = vpop.f32.mrb[0].mxu0
    %2693 = vmatprep.mubr.f32.mxu0 0.0
    %2694 = vmatmul.mubr.f32.gmra.mrb[0].mxu0 %v2618
    %v2695 = vpop.f32.mrb[0].mxu0
    %v2696 = vadd.f32 0.0, %v2695
    %v2697 = vpop.f32.mrb[0].mxu0
    %2698 = vdwg.mxu0
    %v2699 = vmul.f32 %v2691, 0.25
    %v2700 = vmul.f32 %v2696, 0.25
    %v2701 = vadd.f32 %v2699, %v2404
    %v2702 = vadd.f32 %v2700, %v2405
    %v2703 = vsel %vm543, %v2701, -inf
    %2704 = vmax.xlane.f32.xlu0 %v2703
    %v2705 = vpop.xlane.xlu0 %2704
    %v2706 = vsel %vm543, %v2702, -inf
    %2707 = vmax.xlane.f32.xlu0 %v2706
    %v2708 = vpop.xlane.xlu0 %2707
    %v2709 = vsub.f32 %v2701, %v2705
    %v2710 = vsub.f32 %v2702, %v2708
    %v2711 = vmul.f32 %v2709, 1.442695
    %v2712 = vpow.pop %v2711
    %v2713 = vmul.f32 %v2710, 1.442695
    %v2714 = vpow.pop %v2713
    %v2715 = vsel %vm543, %v2712, 0.0
    %2716 = vadd.xlane.f32.xlu0 %v2715
    %v2717 = vpop.xlane.xlu0 %2716
    %v2718 = vsel %vm543, %v2714, 0.0
    %2719 = vadd.xlane.f32.xlu0 %v2718
    %v2720 = vpop.xlane.xlu0 %2719
    %v2721 = vrcp.pop %v2717
    %v2722 = vrcp.pop %v2720
    %v2723 = vmul.f32 %v2712, %v2721
    %v2724 = vmul.f32 %v2714, %v2722
    %2725 = vrot.lane.b32.xlu0 %v2602, 64
    %v2726 = vpop.permute.xlu0 %2725
    %2727 = vrot.lane.b32.xlu0 %v2607, 64
    %v2728 = vpop.permute.xlu0 %2727
    %v2732 = vsel %vm543, %v2723, 0
    %v2735 = vsel %vm543, %v2724, 0
    %2737 = vmatprep.subr.mxu0 0.0
    %2738 = vmatpush1.msra.mxu0 %v2726
    %2739 = vmatprep.subr.mxu0 0.0
    %2740 = vmatpush1.msra.mxu0 %v2728
    %2741 = vmatprep.subr.mxu0 0.0
    %2742 = vmatpush1.msra.mxu0 0.0
    %2743 = vmatprep.subr.mxu0 0.0
    %2744 = vmatpush1.msra.mxu0 0.0
    %2745 = vmatprep.subr.mxu0 0.0
    %2746 = vmatpush1.msra.mxu0 0.0
    %2747 = vmatprep.subr.mxu0 0.0
    %2748 = vmatpush1.msra.mxu0 0.0
    %2749 = vmatprep.subr.mxu0 0.0
    %2750 = vmatpush1.msra.mxu0 0.0
    %2751 = vmatprep.subr.mxu0 0.0
    %2752 = vmatpush1.msra.mxu0 0.0
    %2753 = vmatprep.subr.mxu0 0.0
    %2754 = vmatpush1.msra.mxu0 0.0
    %2755 = vmatprep.subr.mxu0 0.0
    %2756 = vmatpush1.msra.mxu0 0.0
    %2757 = vmatprep.subr.mxu0 0.0
    %2758 = vmatpush1.msra.mxu0 0.0
    %2759 = vmatprep.subr.mxu0 0.0
    %2760 = vmatpush1.msra.mxu0 0.0
    %2761 = vmatprep.subr.mxu0 0.0
    %2762 = vmatpush1.msra.mxu0 0.0
    %2763 = vmatprep.subr.mxu0 0.0
    %2764 = vmatpush1.msra.mxu0 0.0
    %2765 = vmatprep.subr.mxu0 0.0
    %2766 = vmatpush1.msra.mxu0 0.0
    %2767 = vmatprep.subr.mxu0 0.0
    %2768 = vmatpush1.msra.mxu0 0.0
    %2769 = vmatprep.subr.mxu0 0.0
    %2770 = vmatpush1.msra.mxu0 0.0
    %2771 = vmatprep.subr.mxu0 0.0
    %2772 = vmatpush1.msra.mxu0 0.0
    %2773 = vmatprep.subr.mxu0 0.0
    %2774 = vmatpush1.msra.mxu0 0.0
    %2775 = vmatprep.subr.mxu0 0.0
    %2776 = vmatpush1.msra.mxu0 0.0
    %2777 = vmatprep.subr.mxu0 0.0
    %2778 = vmatpush1.msra.mxu0 0.0
    %2779 = vmatprep.subr.mxu0 0.0
    %2780 = vmatpush1.msra.mxu0 0.0
    %2781 = vmatprep.subr.mxu0 0.0
    %2782 = vmatpush1.msra.mxu0 0.0
    %2783 = vmatprep.subr.mxu0 0.0
    %2784 = vmatpush1.msra.mxu0 0.0
    %2785 = vmatprep.subr.mxu0 0.0
    %2786 = vmatpush1.msra.mxu0 0.0
    %2787 = vmatprep.subr.mxu0 0.0
    %2788 = vmatpush1.msra.mxu0 0.0
    %2789 = vmatprep.subr.mxu0 0.0
    %2790 = vmatpush1.msra.mxu0 0.0
    %2791 = vmatprep.subr.mxu0 0.0
    %2792 = vmatpush1.msra.mxu0 0.0
    %2793 = vmatprep.subr.mxu0 0.0
    %2794 = vmatpush1.msra.mxu0 0.0
    %2795 = vmatprep.subr.mxu0 0.0
    %2796 = vmatpush1.msra.mxu0 0.0
    %2797 = vmatprep.subr.mxu0 0.0
    %2798 = vmatpush1.msra.mxu0 0.0
    %2799 = vmatprep.subr.mxu0 0.0
    %2800 = vmatpush1.msra.mxu0 0.0
    %2801 = vmatprep.mubr.f32.mxu0 0.0
    %2802 = vmatmul.mubr.f32.gmra.mrb[0].mxu0 %v2732
    %v2803 = vpop.f32.mrb[0].mxu0
    %v2804 = vadd.f32 0.0, %v2803
    %v2805 = vpop.f32.mrb[0].mxu0
    %2806 = vmatprep.mubr.f32.mxu0 0.0
    %2807 = vmatmul.mubr.f32.gmra.mrb[0].mxu0 %v2735
    %v2808 = vpop.f32.mrb[0].mxu0
    %v2809 = vadd.f32 0.0, %v2808
    %v2810 = vpop.f32.mrb[0].mxu0
    %2811 = vdwg.mxu0
    %2812 = vrot.lane.b32.xlu0 %v2602, 112
    %v2813 = vpop.permute.xlu0 %2812
    %2814 = vrot.lane.b32.xlu0 %v2607, 112
    %v2815 = vpop.permute.xlu0 %2814
    %2816 = vrot.lane.b32.xlu0 %v2602, 80
    %v2817 = vpop.permute.xlu0 %2816
    %2818 = vrot.lane.b32.xlu0 %v2607, 80
    %v2819 = vpop.permute.xlu0 %2818
    %v2820 = vsel %vm543, %v2813, 0
    %v2822 = vsel %vm543, %v2815, 0
    %v2824 = vsel %vm543, %v2817, 0
    %v2826 = vsel %vm543, %v2819, 0
    %2828 = vmatprep.subr.mxu0 0.0
    %2829 = vmatpush1.xpose.msra.mxu0 %v2824
    %2830 = vmatprep.subr.mxu0 0.0
    %2831 = vmatpush1.xpose.msra.mxu0 %v2826
    %2832 = vmatprep.subr.mxu0 0.0
    %2833 = vmatpush1.xpose.msra.mxu0 0.0
    %2834 = vmatprep.subr.mxu0 0.0
    %2835 = vmatpush1.xpose.msra.mxu0 0.0
    %2836 = vmatprep.subr.mxu0 0.0
    %2837 = vmatpush1.xpose.msra.mxu0 0.0
    %2838 = vmatprep.subr.mxu0 0.0
    %2839 = vmatpush1.xpose.msra.mxu0 0.0
    %2840 = vmatprep.subr.mxu0 0.0
    %2841 = vmatpush1.xpose.msra.mxu0 0.0
    %2842 = vmatprep.subr.mxu0 0.0
    %2843 = vmatpush1.xpose.msra.mxu0 0.0
    %2844 = vmatprep.subr.mxu0 0.0
    %2845 = vmatpush1.xpose.msra.mxu0 0.0
    %2846 = vmatprep.subr.mxu0 0.0
    %2847 = vmatpush1.xpose.msra.mxu0 0.0
    %2848 = vmatprep.subr.mxu0 0.0
    %2849 = vmatpush1.xpose.msra.mxu0 0.0
    %2850 = vmatprep.subr.mxu0 0.0
    %2851 = vmatpush1.xpose.msra.mxu0 0.0
    %2852 = vmatprep.subr.mxu0 0.0
    %2853 = vmatpush1.xpose.msra.mxu0 0.0
    %2854 = vmatprep.subr.mxu0 0.0
    %2855 = vmatpush1.xpose.msra.mxu0 0.0
    %2856 = vmatprep.subr.mxu0 0.0
    %2857 = vmatpush1.xpose.msra.mxu0 0.0
    %2858 = vmatprep.subr.mxu0 0.0
    %2859 = vmatpush1.xpose.msra.mxu0 0.0
    %2860 = vmatprep.subr.mxu0 0.0
    %2861 = vmatpush1.xpose.msra.mxu0 0.0
    %2862 = vmatprep.subr.mxu0 0.0
    %2863 = vmatpush1.xpose.msra.mxu0 0.0
    %2864 = vmatprep.subr.mxu0 0.0
    %2865 = vmatpush1.xpose.msra.mxu0 0.0
    %2866 = vmatprep.subr.mxu0 0.0
    %2867 = vmatpush1.xpose.msra.mxu0 0.0
    %2868 = vmatprep.subr.mxu0 0.0
    %2869 = vmatpush1.xpose.msra.mxu0 0.0
    %2870 = vmatprep.subr.mxu0 0.0
    %2871 = vmatpush1.xpose.msra.mxu0 0.0
    %2872 = vmatprep.subr.mxu0 0.0
    %2873 = vmatpush1.xpose.msra.mxu0 0.0
    %2874 = vmatprep.subr.mxu0 0.0
    %2875 = vmatpush1.xpose.msra.mxu0 0.0
    %2876 = vmatprep.subr.mxu0 0.0
    %2877 = vmatpush1.xpose.msra.mxu0 0.0
    %2878 = vmatprep.subr.mxu0 0.0
    %2879 = vmatpush1.xpose.msra.mxu0 0.0
    %2880 = vmatprep.subr.mxu0 0.0
    %2881 = vmatpush1.xpose.msra.mxu0 0.0
    %2882 = vmatprep.subr.mxu0 0.0
    %2883 = vmatpush1.xpose.msra.mxu0 0.0
    %2884 = vmatprep.subr.mxu0 0.0
    %2885 = vmatpush1.xpose.msra.mxu0 0.0
    %2886 = vmatprep.subr.mxu0 0.0
    %2887 = vmatpush1.xpose.msra.mxu0 0.0
    %2888 = vmatprep.subr.mxu0 0.0
    %2889 = vmatpush1.xpose.msra.mxu0 0.0
    %2890 = vmatprep.subr.mxu0 0.0
    %2891 = vmatpush1.xpose.msra.mxu0 0.0
    %2892 = vmatprep.mubr.f32.mxu0 0.0
    %2893 = vmatmul.mubr.f32.gmra.mrb[0].mxu0 %v2820
    %v2894 = vpop.f32.mrb[0].mxu0
    %v2895 = vadd.f32 0.0, %v2894
    %v2896 = vpop.f32.mrb[0].mxu0
    %2897 = vmatprep.mubr.f32.mxu0 0.0
    %2898 = vmatmul.mubr.f32.gmra.mrb[0].mxu0 %v2822
    %v2899 = vpop.f32.mrb[0].mxu0
    %v2900 = vadd.f32 0.0, %v2899
    %v2901 = vpop.f32.mrb[0].mxu0
    %2902 = vdwg.mxu0
    %v2903 = vmul.f32 %v2895, 0.25
    %v2904 = vmul.f32 %v2900, 0.25
    %v2905 = vadd.f32 %v2903, %v2404
    %v2906 = vadd.f32 %v2904, %v2405
    %v2907 = vsel %vm543, %v2905, -inf
    %2908 = vmax.xlane.f32.xlu0 %v2907
    %v2909 = vpop.xlane.xlu0 %2908
    %v2910 = vsel %vm543, %v2906, -inf
    %2911 = vmax.xlane.f32.xlu0 %v2910
    %v2912 = vpop.xlane.xlu0 %2911
    %v2913 = vsub.f32 %v2905, %v2909
    %v2914 = vsub.f32 %v2906, %v2912
    %v2915 = vmul.f32 %v2913, 1.442695
    %v2916 = vpow.pop %v2915
    %v2917 = vmul.f32 %v2914, 1.442695
    %v2918 = vpow.pop %v2917
    %v2919 = vsel %vm543, %v2916, 0.0
    %2920 = vadd.xlane.f32.xlu0 %v2919
    %v2921 = vpop.xlane.xlu0 %2920
    %v2922 = vsel %vm543, %v2918, 0.0
    %2923 = vadd.xlane.f32.xlu0 %v2922
    %v2924 = vpop.xlane.xlu0 %2923
    %v2925 = vrcp.pop %v2921
    %v2926 = vrcp.pop %v2924
    %v2927 = vmul.f32 %v2916, %v2925
    %v2928 = vmul.f32 %v2918, %v2926
    %2929 = vrot.lane.b32.xlu0 %v2602, 48
    %v2930 = vpop.permute.xlu0 %2929
    %2931 = vrot.lane.b32.xlu0 %v2607, 48
    %v2932 = vpop.permute.xlu0 %2931
    %v2936 = vsel %vm543, %v2927, 0
    %v2939 = vsel %vm543, %v2928, 0
    %2941 = vmatprep.subr.mxu0 0.0
    %2942 = vmatpush1.msra.mxu0 %v2930
    %2943 = vmatprep.subr.mxu0 0.0
    %2944 = vmatpush1.msra.mxu0 %v2932
    %2945 = vmatprep.subr.mxu0 0.0
    %2946 = vmatpush1.msra.mxu0 0.0
    %2947 = vmatprep.subr.mxu0 0.0
    %2948 = vmatpush1.msra.mxu0 0.0
    %2949 = vmatprep.subr.mxu0 0.0
    %2950 = vmatpush1.msra.mxu0 0.0
    %2951 = vmatprep.subr.mxu0 0.0
    %2952 = vmatpush1.msra.mxu0 0.0
    %2953 = vmatprep.subr.mxu0 0.0
    %2954 = vmatpush1.msra.mxu0 0.0
    %2955 = vmatprep.subr.mxu0 0.0
    %2956 = vmatpush1.msra.mxu0 0.0
    %2957 = vmatprep.subr.mxu0 0.0
    %2958 = vmatpush1.msra.mxu0 0.0
    %2959 = vmatprep.subr.mxu0 0.0
    %2960 = vmatpush1.msra.mxu0 0.0
    %2961 = vmatprep.subr.mxu0 0.0
    %2962 = vmatpush1.msra.mxu0 0.0
    %2963 = vmatprep.subr.mxu0 0.0
    %2964 = vmatpush1.msra.mxu0 0.0
    %2965 = vmatprep.subr.mxu0 0.0
    %2966 = vmatpush1.msra.mxu0 0.0
    %2967 = vmatprep.subr.mxu0 0.0
    %2968 = vmatpush1.msra.mxu0 0.0
    %2969 = vmatprep.subr.mxu0 0.0
    %2970 = vmatpush1.msra.mxu0 0.0
    %2971 = vmatprep.subr.mxu0 0.0
    %2972 = vmatpush1.msra.mxu0 0.0
    %2973 = vmatprep.subr.mxu0 0.0
    %2974 = vmatpush1.msra.mxu0 0.0
    %2975 = vmatprep.subr.mxu0 0.0
    %2976 = vmatpush1.msra.mxu0 0.0
    %2977 = vmatprep.subr.mxu0 0.0
    %2978 = vmatpush1.msra.mxu0 0.0
    %2979 = vmatprep.subr.mxu0 0.0
    %2980 = vmatpush1.msra.mxu0 0.0
    %2981 = vmatprep.subr.mxu0 0.0
    %2982 = vmatpush1.msra.mxu0 0.0
    %2983 = vmatprep.subr.mxu0 0.0
    %2984 = vmatpush1.msra.mxu0 0.0
    %2985 = vmatprep.subr.mxu0 0.0
    %2986 = vmatpush1.msra.mxu0 0.0
    %2987 = vmatprep.subr.mxu0 0.0
    %2988 = vmatpush1.msra.mxu0 0.0
    %2989 = vmatprep.subr.mxu0 0.0
    %2990 = vmatpush1.msra.mxu0 0.0
    %2991 = vmatprep.subr.mxu0 0.0
    %2992 = vmatpush1.msra.mxu0 0.0
    %2993 = vmatprep.subr.mxu0 0.0
    %2994 = vmatpush1.msra.mxu0 0.0
    %2995 = vmatprep.subr.mxu0 0.0
    %2996 = vmatpush1.msra.mxu0 0.0
    %2997 = vmatprep.subr.mxu0 0.0
    %2998 = vmatpush1.msra.mxu0 0.0
    %2999 = vmatprep.subr.mxu0 0.0
    %3000 = vmatpush1.msra.mxu0 0.0
    %3001 = vmatprep.subr.mxu0 0.0
    %3002 = vmatpush1.msra.mxu0 0.0
    %3003 = vmatprep.subr.mxu0 0.0
    %3004 = vmatpush1.msra.mxu0 0.0
    %3005 = vmatprep.mubr.f32.mxu0 0.0
    %3006 = vmatmul.mubr.f32.gmra.mrb[0].mxu0 %v2936
    %v3007 = vpop.f32.mrb[0].mxu0
    %v3008 = vadd.f32 0.0, %v3007
    %v3009 = vpop.f32.mrb[0].mxu0
    %3010 = vmatprep.mubr.f32.mxu0 0.0
    %3011 = vmatmul.mubr.f32.gmra.mrb[0].mxu0 %v2939
    %v3012 = vpop.f32.mrb[0].mxu0
    %v3013 = vadd.f32 0.0, %v3012
    %v3014 = vpop.f32.mrb[0].mxu0
    %3015 = vdwg.mxu0
    %v3017 = vsel %vm543, %v3008, 0
    %v3020 = vsel %vm543, %v3013, 0
    %3022 = vmatprep.subr.mxu0 0.0
    %3023 = vmatpush1.msra.mxu0 %v2416
    %3024 = vmatprep.subr.mxu0 0.0
    %3025 = vmatpush1.msra.mxu0 %v2417
    %3026 = vmatprep.subr.mxu0 0.0
    %3027 = vmatpush1.msra.mxu0 0.0
    %3028 = vmatprep.subr.mxu0 0.0
    %3029 = vmatpush1.msra.mxu0 0.0
    %3030 = vmatprep.subr.mxu0 0.0
    %3031 = vmatpush1.msra.mxu0 0.0
    %3032 = vmatprep.subr.mxu0 0.0
    %3033 = vmatpush1.msra.mxu0 0.0
    %3034 = vmatprep.subr.mxu0 0.0
    %3035 = vmatpush1.msra.mxu0 0.0
    %3036 = vmatprep.subr.mxu0 0.0
    %3037 = vmatpush1.msra.mxu0 0.0
    %3038 = vmatprep.subr.mxu0 0.0
    %3039 = vmatpush1.msra.mxu0 0.0
    %3040 = vmatprep.subr.mxu0 0.0
    %3041 = vmatpush1.msra.mxu0 0.0
    %3042 = vmatprep.subr.mxu0 0.0
    %3043 = vmatpush1.msra.mxu0 0.0
    %3044 = vmatprep.subr.mxu0 0.0
    %3045 = vmatpush1.msra.mxu0 0.0
    %3046 = vmatprep.subr.mxu0 0.0
    %3047 = vmatpush1.msra.mxu0 0.0
    %3048 = vmatprep.subr.mxu0 0.0
    %3049 = vmatpush1.msra.mxu0 0.0
    %3050 = vmatprep.subr.mxu0 0.0
    %3051 = vmatpush1.msra.mxu0 0.0
    %3052 = vmatprep.subr.mxu0 0.0
    %3053 = vmatpush1.msra.mxu0 0.0
    %3054 = vmatprep.subr.mxu0 0.0
    %3055 = vmatpush1.msra.mxu0 0.0
    %3056 = vmatprep.subr.mxu0 0.0
    %3057 = vmatpush1.msra.mxu0 0.0
    %3058 = vmatprep.subr.mxu0 0.0
    %3059 = vmatpush1.msra.mxu0 0.0
    %3060 = vmatprep.subr.mxu0 0.0
    %3061 = vmatpush1.msra.mxu0 0.0
    %3062 = vmatprep.subr.mxu0 0.0
    %3063 = vmatpush1.msra.mxu0 0.0
    %3064 = vmatprep.subr.mxu0 0.0
    %3065 = vmatpush1.msra.mxu0 0.0
    %3066 = vmatprep.subr.mxu0 0.0
    %3067 = vmatpush1.msra.mxu0 0.0
    %3068 = vmatprep.subr.mxu0 0.0
    %3069 = vmatpush1.msra.mxu0 0.0
    %3070 = vmatprep.subr.mxu0 0.0
    %3071 = vmatpush1.msra.mxu0 0.0
    %3072 = vmatprep.subr.mxu0 0.0
    %3073 = vmatpush1.msra.mxu0 0.0
    %3074 = vmatprep.subr.mxu0 0.0
    %3075 = vmatpush1.msra.mxu0 0.0
    %3076 = vmatprep.subr.mxu0 0.0
    %3077 = vmatpush1.msra.mxu0 0.0
    %3078 = vmatprep.subr.mxu0 0.0
    %3079 = vmatpush1.msra.mxu0 0.0
    %3080 = vmatprep.subr.mxu0 0.0
    %3081 = vmatpush1.msra.mxu0 0.0
    %3082 = vmatprep.subr.mxu0 0.0
    %3083 = vmatpush1.msra.mxu0 0.0
    %3084 = vmatprep.subr.mxu0 0.0
    %3085 = vmatpush1.msra.mxu0 0.0
    %3086 = vmatprep.mubr.f32.mxu0 0.0
    %3087 = vmatmul.mubr.f32.gmra.mrb[0].mxu0 %v3017
    %v3088 = vpop.f32.mrb[0].mxu0
    %v3089 = vadd.f32 0.0, %v3088
    %v3090 = vpop.f32.mrb[0].mxu0
    %3091 = vmatprep.mubr.f32.mxu0 0.0
    %3092 = vmatmul.mubr.f32.gmra.mrb[0].mxu0 %v3020
    %v3093 = vpop.f32.mrb[0].mxu0
    %v3094 = vadd.f32 0.0, %v3093
    %v3095 = vpop.f32.mrb[0].mxu0
    %3096 = vdwg.mxu0
    %v3098 = vsel %vm543, %v2804, 0
    %v3101 = vsel %vm543, %v2809, 0
    %3103 = vmatprep.subr.mxu0 0.0
    %3104 = vmatpush1.msra.mxu0 %v2414
    %3105 = vmatprep.subr.mxu0 0.0
    %3106 = vmatpush1.msra.mxu0 %v2415
    %3107 = vmatprep.subr.mxu0 0.0
    %3108 = vmatpush1.msra.mxu0 0.0
    %3109 = vmatprep.subr.mxu0 0.0
    %3110 = vmatpush1.msra.mxu0 0.0
    %3111 = vmatprep.subr.mxu0 0.0
    %3112 = vmatpush1.msra.mxu0 0.0
    %3113 = vmatprep.subr.mxu0 0.0
    %3114 = vmatpush1.msra.mxu0 0.0
    %3115 = vmatprep.subr.mxu0 0.0
    %3116 = vmatpush1.msra.mxu0 0.0
    %3117 = vmatprep.subr.mxu0 0.0
    %3118 = vmatpush1.msra.mxu0 0.0
    %3119 = vmatprep.subr.mxu0 0.0
    %3120 = vmatpush1.msra.mxu0 0.0
    %3121 = vmatprep.subr.mxu0 0.0
    %3122 = vmatpush1.msra.mxu0 0.0
    %3123 = vmatprep.subr.mxu0 0.0
    %3124 = vmatpush1.msra.mxu0 0.0
    %3125 = vmatprep.subr.mxu0 0.0
    %3126 = vmatpush1.msra.mxu0 0.0
    %3127 = vmatprep.subr.mxu0 0.0
    %3128 = vmatpush1.msra.mxu0 0.0
    %3129 = vmatprep.subr.mxu0 0.0
    %3130 = vmatpush1.msra.mxu0 0.0
    %3131 = vmatprep.subr.mxu0 0.0
    %3132 = vmatpush1.msra.mxu0 0.0
    %3133 = vmatprep.subr.mxu0 0.0
    %3134 = vmatpush1.msra.mxu0 0.0
    %3135 = vmatprep.subr.mxu0 0.0
    %3136 = vmatpush1.msra.mxu0 0.0
    %3137 = vmatprep.subr.mxu0 0.0
    %3138 = vmatpush1.msra.mxu0 0.0
    %3139 = vmatprep.subr.mxu0 0.0
    %3140 = vmatpush1.msra.mxu0 0.0
    %3141 = vmatprep.subr.mxu0 0.0
    %3142 = vmatpush1.msra.mxu0 0.0
    %3143 = vmatprep.subr.mxu0 0.0
    %3144 = vmatpush1.msra.mxu0 0.0
    %3145 = vmatprep.subr.mxu0 0.0
    %3146 = vmatpush1.msra.mxu0 0.0
    %3147 = vmatprep.subr.mxu0 0.0
    %3148 = vmatpush1.msra.mxu0 0.0
    %3149 = vmatprep.subr.mxu0 0.0
    %3150 = vmatpush1.msra.mxu0 0.0
    %3151 = vmatprep.subr.mxu0 0.0
    %3152 = vmatpush1.msra.mxu0 0.0
    %3153 = vmatprep.subr.mxu0 0.0
    %3154 = vmatpush1.msra.mxu0 0.0
    %3155 = vmatprep.subr.mxu0 0.0
    %3156 = vmatpush1.msra.mxu0 0.0
    %3157 = vmatprep.subr.mxu0 0.0
    %3158 = vmatpush1.msra.mxu0 0.0
    %3159 = vmatprep.subr.mxu0 0.0
    %3160 = vmatpush1.msra.mxu0 0.0
    %3161 = vmatprep.subr.mxu0 0.0
    %3162 = vmatpush1.msra.mxu0 0.0
    %3163 = vmatprep.subr.mxu0 0.0
    %3164 = vmatpush1.msra.mxu0 0.0
    %3165 = vmatprep.subr.mxu0 0.0
    %3166 = vmatpush1.msra.mxu0 0.0
    %3167 = vmatprep.mubr.f32.mxu0 0.0
    %3168 = vmatmul.mubr.f32.gmra.mrb[0].mxu0 %v3098
    %v3169 = vpop.f32.mrb[0].mxu0
    %v3170 = vadd.f32 %v3089, %v3169
    %v3171 = vpop.f32.mrb[0].mxu0
    %3172 = vmatprep.mubr.f32.mxu0 0.0
    %3173 = vmatmul.mubr.f32.gmra.mrb[0].mxu0 %v3101
    %v3174 = vpop.f32.mrb[0].mxu0
    %v3175 = vadd.f32 %v3094, %v3174
    %v3176 = vpop.f32.mrb[0].mxu0
    %3177 = vdwg.mxu0
    %v3179 = vlaneseq
    %v3180 = vshrl.u32 %v3179, 7
    %v3181 = vsub.s32 0, %v3180
    %v3182 = vrot.slane %v2418, %v3181
    %v3184 = vadd.f32 %v3170, %v3182
    %v3185 = vadd.f32 %v3175, %v3182
    %v3186 = vadd.f32 %v2402, %v3184
    %v3187 = vadd.f32 %v2403, %v3185
    %v3188 = vsel %vm363, %v3186, 0.0
    %3189 = vadd.xlane.f32.xlu0 %v3188
    %v3190 = vpop.xlane.xlu0 %3189
    %v3191 = vsel %vm363, %v3187, 0.0
    %3192 = vadd.xlane.f32.xlu0 %v3191
    %v3193 = vpop.xlane.xlu0 %3192
    %v3194 = vmul.f32 %v3190, %v371
    %v3195 = vmul.f32 %v3193, %v371
    %v3196 = vsub.f32 %v3186, %v3194
    %v3197 = vsub.f32 %v3187, %v3195
    %v3198 = vmul.f32 %v3196, %v3196
    %v3199 = vmul.f32 %v3197, %v3197
    %v3200 = vsel %vm363, %v3198, 0.0
    %3201 = vadd.xlane.f32.xlu0 %v3200
    %v3202 = vpop.xlane.xlu0 %3201
    %v3203 = vsel %vm363, %v3199, 0.0
    %3204 = vadd.xlane.f32.xlu0 %v3203
    %v3205 = vpop.xlane.xlu0 %3204
    %v3206 = vmul.f32 %v3202, %v371
    %v3207 = vmul.f32 %v3205, %v371
    %v3208 = vadd.f32 %v3206, 1e-05
    %v3209 = vadd.f32 %v3207, 1e-05
    %v3210 = vrsqrt.pop %v3208
    %v3211 = vrsqrt.pop %v3209
    %v3212 = vmul.f32 %v3196, %v3210
    %v3213 = vmul.f32 %v3197, %v3211
    %v3215 = vlaneseq
    %v3216 = vshrl.u32 %v3215, 7
    %v3217 = vsub.s32 0, %v3216
    %v3218 = vrot.slane %v2419, %v3217
    %v3220 = vmul.f32 %v3212, %v3218
    %v3221 = vmul.f32 %v3213, %v3218
    %v3223 = vlaneseq
    %v3224 = vshrl.u32 %v3223, 7
    %v3225 = vsub.s32 0, %v3224
    %v3226 = vrot.slane %v2420, %v3225
    %v3228 = vadd.f32 %v3220, %v3226
    %v3229 = vadd.f32 %v3221, %v3226
    %v3231 = vlaneseq
    %v3232 = vshrl.u32 %v3231, 7
    %v3233 = vsub.s32 0, %v3232
    %v3234 = vrot.slane %v2425, %v3233
    %v3237 = vsel %vm363, %v3228, 0
    %v3240 = vsel %vm363, %v3229, 0
    %3242 = vmatprep.subr.mxu0 0.0
    %3243 = vmatpush1.msra.mxu0 %v2421
    %3244 = vmatprep.subr.mxu0 0.0
    %3245 = vmatpush1.msra.mxu0 %v2422
    %3246 = vmatprep.subr.mxu0 0.0
    %3247 = vmatpush1.msra.mxu0 %v2423
    %3248 = vmatprep.subr.mxu0 0.0
    %3249 = vmatpush1.msra.mxu0 %v2424
    %3250 = vmatprep.subr.mxu0 0.0
    %3251 = vmatpush1.msra.mxu0 0.0
    %3252 = vmatprep.subr.mxu0 0.0
    %3253 = vmatpush1.msra.mxu0 0.0
    %3254 = vmatprep.subr.mxu0 0.0
    %3255 = vmatpush1.msra.mxu0 0.0
    %3256 = vmatprep.subr.mxu0 0.0
    %3257 = vmatpush1.msra.mxu0 0.0
    %3258 = vmatprep.subr.mxu0 0.0
    %3259 = vmatpush1.msra.mxu0 0.0
    %3260 = vmatprep.subr.mxu0 0.0
    %3261 = vmatpush1.msra.mxu0 0.0
    %3262 = vmatprep.subr.mxu0 0.0
    %3263 = vmatpush1.msra.mxu0 0.0
    %3264 = vmatprep.subr.mxu0 0.0
    %3265 = vmatpush1.msra.mxu0 0.0
    %3266 = vmatprep.subr.mxu0 0.0
    %3267 = vmatpush1.msra.mxu0 0.0
    %3268 = vmatprep.subr.mxu0 0.0
    %3269 = vmatpush1.msra.mxu0 0.0
    %3270 = vmatprep.subr.mxu0 0.0
    %3271 = vmatpush1.msra.mxu0 0.0
    %3272 = vmatprep.subr.mxu0 0.0
    %3273 = vmatpush1.msra.mxu0 0.0
    %3274 = vmatprep.subr.mxu0 0.0
    %3275 = vmatpush1.msra.mxu0 0.0
    %3276 = vmatprep.subr.mxu0 0.0
    %3277 = vmatpush1.msra.mxu0 0.0
    %3278 = vmatprep.subr.mxu0 0.0
    %3279 = vmatpush1.msra.mxu0 0.0
    %3280 = vmatprep.subr.mxu0 0.0
    %3281 = vmatpush1.msra.mxu0 0.0
    %3282 = vmatprep.subr.mxu0 0.0
    %3283 = vmatpush1.msra.mxu0 0.0
    %3284 = vmatprep.subr.mxu0 0.0
    %3285 = vmatpush1.msra.mxu0 0.0
    %3286 = vmatprep.subr.mxu0 0.0
    %3287 = vmatpush1.msra.mxu0 0.0
    %3288 = vmatprep.subr.mxu0 0.0
    %3289 = vmatpush1.msra.mxu0 0.0
    %3290 = vmatprep.subr.mxu0 0.0
    %3291 = vmatpush1.msra.mxu0 0.0
    %3292 = vmatprep.subr.mxu0 0.0
    %3293 = vmatpush1.msra.mxu0 0.0
    %3294 = vmatprep.subr.mxu0 0.0
    %3295 = vmatpush1.msra.mxu0 0.0
    %3296 = vmatprep.subr.mxu0 0.0
    %3297 = vmatpush1.msra.mxu0 0.0
    %3298 = vmatprep.subr.mxu0 0.0
    %3299 = vmatpush1.msra.mxu0 0.0
    %3300 = vmatprep.subr.mxu0 0.0
    %3301 = vmatpush1.msra.mxu0 0.0
    %3302 = vmatprep.subr.mxu0 0.0
    %3303 = vmatpush1.msra.mxu0 0.0
    %3304 = vmatprep.subr.mxu0 0.0
    %3305 = vmatpush1.msra.mxu0 0.0
    %3306 = vmatprep.mubr.f32.mxu0 0.0
    %3307 = vmatmul.mubr.f32.gmra.mrb[0].mxu0 %v3237
    %v3308 = vpop.f32.mrb[0].mxu0
    %v3309 = vadd.f32 %v3234, %v3308
    %v3310 = vpop.f32.mrb[0].mxu0
    %3311 = vmatprep.mubr.f32.mxu0 0.0
    %3312 = vmatmul.mubr.f32.gmra.mrb[0].mxu0 %v3240
    %v3313 = vpop.f32.mrb[0].mxu0
    %v3314 = vadd.f32 %v3234, %v3313
    %v3315 = vpop.f32.mrb[0].mxu0
    %3316 = vdwg.mxu0
    %v3317 = vmul.f32 %v3309, 1.702
    %v3318 = vmul.f32 %v3314, 1.702
    %v3319 = vxor.u32 %v3317, 2147483648
    %v3320 = vxor.u32 %v3318, 2147483648
    %v3321 = vmul.f32 %v3319, 1.442695
    %v3322 = vpow.pop %v3321
    %v3323 = vmul.f32 %v3320, 1.442695
    %v3324 = vpow.pop %v3323
    %v3325 = vadd.f32 %v3322, 1.0
    %v3326 = vadd.f32 %v3324, 1.0
    %v3327 = vrcp.pop %v3325
    %v3328 = vmul.f32 1.0, %v3327
    %v3329 = vrcp.pop %v3326
    %v3330 = vmul.f32 1.0, %v3329
    %v3331 = vmul.f32 %v3309, %v3328
    %v3332 = vmul.f32 %v3314, %v3330
    %v3334 = vlaneseq
    %v3335 = vshrl.u32 %v3334, 7
    %v3336 = vsub.s32 0, %v3335
    %v3337 = vrot.slane %v2434, %v3336
    %v3340 = vsel %vm1272, %v3331, 0
    %v3343 = vsel %vm1272, %v3332, 0
    %3345 = vmatprep.subr.mxu0 0.0
    %3346 = vmatpush1.msra.mxu0 %v2426
    %3347 = vmatprep.subr.mxu0 0.0
    %3348 = vmatpush1.msra.mxu0 %v2427
    %3349 = vmatprep.subr.mxu0 0.0
    %3350 = vmatpush1.msra.mxu0 %v2428
    %3351 = vmatprep.subr.mxu0 0.0
    %3352 = vmatpush1.msra.mxu0 %v2429
    %3353 = vmatprep.subr.mxu0 0.0
    %3354 = vmatpush1.msra.mxu0 %v2430
    %3355 = vmatprep.subr.mxu0 0.0
    %3356 = vmatpush1.msra.mxu0 %v2431
    %3357 = vmatprep.subr.mxu0 0.0
    %3358 = vmatpush1.msra.mxu0 %v2432
    %3359 = vmatprep.subr.mxu0 0.0
    %3360 = vmatpush1.msra.mxu0 %v2433
    %3361 = vmatprep.subr.mxu0 0.0
    %3362 = vmatpush1.msra.mxu0 0.0
    %3363 = vmatprep.subr.mxu0 0.0
    %3364 = vmatpush1.msra.mxu0 0.0
    %3365 = vmatprep.subr.mxu0 0.0
    %3366 = vmatpush1.msra.mxu0 0.0
    %3367 = vmatprep.subr.mxu0 0.0
    %3368 = vmatpush1.msra.mxu0 0.0
    %3369 = vmatprep.subr.mxu0 0.0
    %3370 = vmatpush1.msra.mxu0 0.0
    %3371 = vmatprep.subr.mxu0 0.0
    %3372 = vmatpush1.msra.mxu0 0.0
    %3373 = vmatprep.subr.mxu0 0.0
    %3374 = vmatpush1.msra.mxu0 0.0
    %3375 = vmatprep.subr.mxu0 0.0
    %3376 = vmatpush1.msra.mxu0 0.0
    %3377 = vmatprep.subr.mxu0 0.0
    %3378 = vmatpush1.msra.mxu0 0.0
    %3379 = vmatprep.subr.mxu0 0.0
    %3380 = vmatpush1.msra.mxu0 0.0
    %3381 = vmatprep.subr.mxu0 0.0
    %3382 = vmatpush1.msra.mxu0 0.0
    %3383 = vmatprep.subr.mxu0 0.0
    %3384 = vmatpush1.msra.mxu0 0.0
    %3385 = vmatprep.subr.mxu0 0.0
    %3386 = vmatpush1.msra.mxu0 0.0
    %3387 = vmatprep.subr.mxu0 0.0
    %3388 = vmatpush1.msra.mxu0 0.0
    %3389 = vmatprep.subr.mxu0 0.0
    %3390 = vmatpush1.msra.mxu0 0.0
    %3391 = vmatprep.subr.mxu0 0.0
    %3392 = vmatpush1.msra.mxu0 0.0
    %3393 = vmatprep.subr.mxu0 0.0
    %3394 = vmatpush1.msra.mxu0 0.0
    %3395 = vmatprep.subr.mxu0 0.0
    %3396 = vmatpush1.msra.mxu0 0.0
    %3397 = vmatprep.subr.mxu0 0.0
    %3398 = vmatpush1.msra.mxu0 0.0
    %3399 = vmatprep.subr.mxu0 0.0
    %3400 = vmatpush1.msra.mxu0 0.0
    %3401 = vmatprep.subr.mxu0 0.0
    %3402 = vmatpush1.msra.mxu0 0.0
    %3403 = vmatprep.subr.mxu0 0.0
    %3404 = vmatpush1.msra.mxu0 0.0
    %3405 = vmatprep.subr.mxu0 0.0
    %3406 = vmatpush1.msra.mxu0 0.0
    %3407 = vmatprep.subr.mxu0 0.0
    %3408 = vmatpush1.msra.mxu0 0.0
    %3409 = vmatprep.mubr.f32.mxu0 0.0
    %3410 = vmatmul.mubr.f32.gmra.mrb[0].mxu0 %v3340
    %v3411 = vpop.f32.mrb[0].mxu0
    %v3412 = vadd.f32 %v3337, %v3411
    %v3413 = vpop.f32.mrb[0].mxu0
    %3414 = vmatprep.mubr.f32.mxu0 0.0
    %3415 = vmatmul.mubr.f32.gmra.mrb[0].mxu0 %v3343
    %v3416 = vpop.f32.mrb[0].mxu0
    %v3417 = vadd.f32 %v3337, %v3416
    %v3418 = vpop.f32.mrb[0].mxu0
    %3419 = vdwg.mxu0
    %v3420 = vadd.f32 %v3186, %v3412
    %v3421 = vadd.f32 %v3187, %v3417
    %v3422 = vsel %vm363, %v3420, 0.0
    %3423 = vadd.xlane.f32.xlu0 %v3422
    %v3424 = vpop.xlane.xlu0 %3423
    %v3425 = vsel %vm363, %v3421, 0.0
    %3426 = vadd.xlane.f32.xlu0 %v3425
    %v3427 = vpop.xlane.xlu0 %3426
    %v3428 = vmul.f32 %v3424, %v371
    %v3429 = vmul.f32 %v3427, %v371
    %v3430 = vsub.f32 %v3420, %v3428
    %v3431 = vsub.f32 %v3421, %v3429
    %v3432 = vmul.f32 %v3430, %v3430
    %v3433 = vmul.f32 %v3431, %v3431
    %v3434 = vsel %vm363, %v3432, 0.0
    %3435 = vadd.xlane.f32.xlu0 %v3434
    %v3436 = vpop.xlane.xlu0 %3435
    %v3437 = vsel %vm363, %v3433, 0.0
    %3438 = vadd.xlane.f32.xlu0 %v3437
    %v3439 = vpop.xlane.xlu0 %3438
    %v3440 = vmul.f32 %v3436, %v371
    %v3441 = vmul.f32 %v3439, %v371
    %v3442 = vadd.f32 %v3440, 1e-05
    %v3443 = vadd.f32 %v3441, 1e-05
    %v3444 = vrsqrt.pop %v3442
    %v3445 = vrsqrt.pop %v3443
    %v3446 = vmul.f32 %v3430, %v3444
    %v3447 = vmul.f32 %v3431, %v3445
    %v3449 = vlaneseq
    %v3450 = vshrl.u32 %v3449, 7
    %v3451 = vsub.s32 0, %v3450
    %v3452 = vrot.slane %v2436, %v3451
    %v3454 = vmul.f32 %v3446, %v3452
    %v3455 = vmul.f32 %v3447, %v3452
    %v3457 = vlaneseq
    %v3458 = vshrl.u32 %v3457, 7
    %v3459 = vsub.s32 0, %v3458
    %v3460 = vrot.slane %v2438, %v3459
    %v3462 = vadd.f32 %v3454, %v3460
    %v3463 = vadd.f32 %v3455, %v3460
    %v3465 = vlaneseq
    %v3466 = vshrl.u32 %v3465, 7
    %v3467 = vsub.s32 0, %v3466
    %v3468 = vrot.slane %v2445, %v3467
    %v3471 = vsel %vm363, %v3462, 0
    %v3474 = vsel %vm363, %v3463, 0
    %3476 = vmatprep.subr.mxu0 0.0
    %3477 = vmatpush1.msra.mxu0 %v2440
    %3478 = vmatprep.subr.mxu0 0.0
    %3479 = vmatpush1.msra.mxu0 %v2441
    %3480 = vmatprep.subr.mxu0 0.0
    %3481 = vmatpush1.msra.mxu0 %v2442
    %3482 = vmatprep.subr.mxu0 0.0
    %3483 = vmatpush1.msra.mxu0 %v2443
    %3484 = vmatprep.subr.mxu0 0.0
    %3485 = vmatpush1.msra.mxu0 0.0
    %3486 = vmatprep.subr.mxu0 0.0
    %3487 = vmatpush1.msra.mxu0 0.0
    %3488 = vmatprep.subr.mxu0 0.0
    %3489 = vmatpush1.msra.mxu0 0.0
    %3490 = vmatprep.subr.mxu0 0.0
    %3491 = vmatpush1.msra.mxu0 0.0
    %3492 = vmatprep.subr.mxu0 0.0
    %3493 = vmatpush1.msra.mxu0 0.0
    %3494 = vmatprep.subr.mxu0 0.0
    %3495 = vmatpush1.msra.mxu0 0.0
    %3496 = vmatprep.subr.mxu0 0.0
    %3497 = vmatpush1.msra.mxu0 0.0
    %3498 = vmatprep.subr.mxu0 0.0
    %3499 = vmatpush1.msra.mxu0 0.0
    %3500 = vmatprep.subr.mxu0 0.0
    %3501 = vmatpush1.msra.mxu0 0.0
    %3502 = vmatprep.subr.mxu0 0.0
    %3503 = vmatpush1.msra.mxu0 0.0
    %3504 = vmatprep.subr.mxu0 0.0
    %3505 = vmatpush1.msra.mxu0 0.0
    %3506 = vmatprep.subr.mxu0 0.0
    %3507 = vmatpush1.msra.mxu0 0.0
    %3508 = vmatprep.subr.mxu0 0.0
    %3509 = vmatpush1.msra.mxu0 0.0
    %3510 = vmatprep.subr.mxu0 0.0
    %3511 = vmatpush1.msra.mxu0 0.0
    %3512 = vmatprep.subr.mxu0 0.0
    %3513 = vmatpush1.msra.mxu0 0.0
    %3514 = vmatprep.subr.mxu0 0.0
    %3515 = vmatpush1.msra.mxu0 0.0
    %3516 = vmatprep.subr.mxu0 0.0
    %3517 = vmatpush1.msra.mxu0 0.0
    %3518 = vmatprep.subr.mxu0 0.0
    %3519 = vmatpush1.msra.mxu0 0.0
    %3520 = vmatprep.subr.mxu0 0.0
    %3521 = vmatpush1.msra.mxu0 0.0
    %3522 = vmatprep.subr.mxu0 0.0
    %3523 = vmatpush1.msra.mxu0 0.0
    %3524 = vmatprep.subr.mxu0 0.0
    %3525 = vmatpush1.msra.mxu0 0.0
    %3526 = vmatprep.subr.mxu0 0.0
    %3527 = vmatpush1.msra.mxu0 0.0
    %3528 = vmatprep.subr.mxu0 0.0
    %3529 = vmatpush1.msra.mxu0 0.0
    %3530 = vmatprep.subr.mxu0 0.0
    %3531 = vmatpush1.msra.mxu0 0.0
    %3532 = vmatprep.subr.mxu0 0.0
    %3533 = vmatpush1.msra.mxu0 0.0
    %3534 = vmatprep.subr.mxu0 0.0
    %3535 = vmatpush1.msra.mxu0 0.0
    %3536 = vmatprep.subr.mxu0 0.0
    %3537 = vmatpush1.msra.mxu0 0.0
    %3538 = vmatprep.subr.mxu0 0.0
    %3539 = vmatpush1.msra.mxu0 0.0
    %3540 = vmatprep.mubr.f32.mxu0 0.0
    %3541 = vmatmul.mubr.f32.gmra.mrb[0].mxu0 %v3471
    %v3542 = vpop.f32.mrb[0].mxu0
    %v3543 = vadd.f32 %v3468, %v3542
    %v3544 = vpop.f32.mrb[0].mxu0
    %3545 = vmatprep.mubr.f32.mxu0 0.0
    %3546 = vmatmul.mubr.f32.gmra.mrb[0].mxu0 %v3474
    %v3547 = vpop.f32.mrb[0].mxu0
    %v3548 = vadd.f32 %v3468, %v3547
    %v3549 = vpop.f32.mrb[0].mxu0
    %3550 = vdwg.mxu0
    %3553 = vrot.lane.b32.xlu0 %v3543, 96
    %v3554 = vpop.permute.xlu0 %3553
    %3555 = vrot.lane.b32.xlu0 %v3548, 96
    %v3556 = vpop.permute.xlu0 %3555
    %v3557 = vsel %vm543, %v3543, 0
    %v3559 = vsel %vm543, %v3548, 0
    %v3561 = vsel %vm543, %v3554, 0
    %v3563 = vsel %vm543, %v3556, 0
    %3565 = vmatprep.subr.mxu0 0.0
    %3566 = vmatpush1.xpose.msra.mxu0 %v3561
    %3567 = vmatprep.subr.mxu0 0.0
    %3568 = vmatpush1.xpose.msra.mxu0 %v3563
    %3569 = vmatprep.subr.mxu0 0.0
    %3570 = vmatpush1.xpose.msra.mxu0 0.0
    %3571 = vmatprep.subr.mxu0 0.0
    %3572 = vmatpush1.xpose.msra.mxu0 0.0
    %3573 = vmatprep.subr.mxu0 0.0
    %3574 = vmatpush1.xpose.msra.mxu0 0.0
    %3575 = vmatprep.subr.mxu0 0.0
    %3576 = vmatpush1.xpose.msra.mxu0 0.0
    %3577 = vmatprep.subr.mxu0 0.0
    %3578 = vmatpush1.xpose.msra.mxu0 0.0
    %3579 = vmatprep.subr.mxu0 0.0
    %3580 = vmatpush1.xpose.msra.mxu0 0.0
    %3581 = vmatprep.subr.mxu0 0.0
    %3582 = vmatpush1.xpose.msra.mxu0 0.0
    %3583 = vmatprep.subr.mxu0 0.0
    %3584 = vmatpush1.xpose.msra.mxu0 0.0
    %3585 = vmatprep.subr.mxu0 0.0
    %3586 = vmatpush1.xpose.msra.mxu0 0.0
    %3587 = vmatprep.subr.mxu0 0.0
    %3588 = vmatpush1.xpose.msra.mxu0 0.0
    %3589 = vmatprep.subr.mxu0 0.0
    %3590 = vmatpush1.xpose.msra.mxu0 0.0
    %3591 = vmatprep.subr.mxu0 0.0
    %3592 = vmatpush1.xpose.msra.mxu0 0.0
    %3593 = vmatprep.subr.mxu0 0.0
    %3594 = vmatpush1.xpose.msra.mxu0 0.0
    %3595 = vmatprep.subr.mxu0 0.0
    %3596 = vmatpush1.xpose.msra.mxu0 0.0
    %3597 = vmatprep.subr.mxu0 0.0
    %3598 = vmatpush1.xpose.msra.mxu0 0.0
    %3599 = vmatprep.subr.mxu0 0.0
    %3600 = vmatpush1.xpose.msra.mxu0 0.0
    %3601 = vmatprep.subr.mxu0 0.0
    %3602 = vmatpush1.xpose.msra.mxu0 0.0
    %3603 = vmatprep.subr.mxu0 0.0
    %3604 = vmatpush1.xpose.msra.mxu0 0.0
    %3605 = vmatprep.subr.mxu0 0.0
    %3606 = vmatpush1.xpose.msra.mxu0 0.0
    %3607 = vmatprep.subr.mxu0 0.0
    %3608 = vmatpush1.xpose.msra.mxu0 0.0
    %3609 = vmatprep.subr.mxu0 0.0
    %3610 = vmatpush1.xpose.msra.mxu0 0.0
    %3611 = vmatprep.subr.mxu0 0.0
    %3612 = vmatpush1.xpose.msra.mxu0 0.0
    %3613 = vmatprep.subr.mxu0 0.0
    %3614 = vmatpush1.xpose.msra.mxu0 0.0
    %3615 = vmatprep.subr.mxu0 0.0
    %3616 = vmatpush1.xpose.msra.mxu0 0.0
    %3617 = vmatprep.subr.mxu0 0.0
    %3618 = vmatpush1.xpose.msra.mxu0 0.0
    %3619 = vmatprep.subr.mxu0 0.0
    %3620 = vmatpush1.xpose.msra.mxu0 0.0
    %3621 = vmatprep.subr.mxu0 0.0
    %3622 = vmatpush1.xpose.msra.mxu0 0.0
    %3623 = vmatprep.subr.mxu0 0.0
    %3624 = vmatpush1.xpose.msra.mxu0 0.0
    %3625 = vmatprep.subr.mxu0 0.0
    %3626 = vmatpush1.xpose.msra.mxu0 0.0
    %3627 = vmatprep.subr.mxu0 0.0
    %3628 = vmatpush1.xpose.msra.mxu0 0.0
    %3629 = vmatprep.mubr.f32.mxu0 0.0
    %3630 = vmatmul.mubr.f32.gmra.mrb[0].mxu0 %v3557
    %v3631 = vpop.f32.mrb[0].mxu0
    %v3632 = vadd.f32 0.0, %v3631
    %v3633 = vpop.f32.mrb[0].mxu0
    %3634 = vmatprep.mubr.f32.mxu0 0.0
    %3635 = vmatmul.mubr.f32.gmra.mrb[0].mxu0 %v3559
    %v3636 = vpop.f32.mrb[0].mxu0
    %v3637 = vadd.f32 0.0, %v3636
    %v3638 = vpop.f32.mrb[0].mxu0
    %3639 = vdwg.mxu0
    %v3640 = vmul.f32 %v3632, 0.25
    %v3641 = vmul.f32 %v3637, 0.25
    %v3642 = vadd.f32 %v3640, %v2404
    %v3643 = vadd.f32 %v3641, %v2405
    %v3644 = vsel %vm543, %v3642, -inf
    %3645 = vmax.xlane.f32.xlu0 %v3644
    %v3646 = vpop.xlane.xlu0 %3645
    %v3647 = vsel %vm543, %v3643, -inf
    %3648 = vmax.xlane.f32.xlu0 %v3647
    %v3649 = vpop.xlane.xlu0 %3648
    %v3650 = vsub.f32 %v3642, %v3646
    %v3651 = vsub.f32 %v3643, %v3649
    %v3652 = vmul.f32 %v3650, 1.442695
    %v3653 = vpow.pop %v3652
    %v3654 = vmul.f32 %v3651, 1.442695
    %v3655 = vpow.pop %v3654
    %v3656 = vsel %vm543, %v3653, 0.0
    %3657 = vadd.xlane.f32.xlu0 %v3656
    %v3658 = vpop.xlane.xlu0 %3657
    %v3659 = vsel %vm543, %v3655, 0.0
    %3660 = vadd.xlane.f32.xlu0 %v3659
    %v3661 = vpop.xlane.xlu0 %3660
    %v3662 = vrcp.pop %v3658
    %v3663 = vrcp.pop %v3661
    %v3664 = vmul.f32 %v3653, %v3662
    %v3665 = vmul.f32 %v3655, %v3663
    %3666 = vrot.lane.b32.xlu0 %v3543, 64
    %v3667 = vpop.permute.xlu0 %3666
    %3668 = vrot.lane.b32.xlu0 %v3548, 64
    %v3669 = vpop.permute.xlu0 %3668
    %v3673 = vsel %vm543, %v3664, 0
    %v3676 = vsel %vm543, %v3665, 0
    %3678 = vmatprep.subr.mxu0 0.0
    %3679 = vmatpush1.msra.mxu0 %v3667
    %3680 = vmatprep.subr.mxu0 0.0
    %3681 = vmatpush1.msra.mxu0 %v3669
    %3682 = vmatprep.subr.mxu0 0.0
    %3683 = vmatpush1.msra.mxu0 0.0
    %3684 = vmatprep.subr.mxu0 0.0
    %3685 = vmatpush1.msra.mxu0 0.0
    %3686 = vmatprep.subr.mxu0 0.0
    %3687 = vmatpush1.msra.mxu0 0.0
    %3688 = vmatprep.subr.mxu0 0.0
    %3689 = vmatpush1.msra.mxu0 0.0
    %3690 = vmatprep.subr.mxu0 0.0
    %3691 = vmatpush1.msra.mxu0 0.0
    %3692 = vmatprep.subr.mxu0 0.0
    %3693 = vmatpush1.msra.mxu0 0.0
    %3694 = vmatprep.subr.mxu0 0.0
    %3695 = vmatpush1.msra.mxu0 0.0
    %3696 = vmatprep.subr.mxu0 0.0
    %3697 = vmatpush1.msra.mxu0 0.0
    %3698 = vmatprep.subr.mxu0 0.0
    %3699 = vmatpush1.msra.mxu0 0.0
    %3700 = vmatprep.subr.mxu0 0.0
    %3701 = vmatpush1.msra.mxu0 0.0
    %3702 = vmatprep.subr.mxu0 0.0
    %3703 = vmatpush1.msra.mxu0 0.0
    %3704 = vmatprep.subr.mxu0 0.0
    %3705 = vmatpush1.msra.mxu0 0.0
    %3706 = vmatprep.subr.mxu0 0.0
    %3707 = vmatpush1.msra.mxu0 0.0
    %3708 = vmatprep.subr.mxu0 0.0
    %3709 = vmatpush1.msra.mxu0 0.0
    %3710 = vmatprep.subr.mxu0 0.0
    %3711 = vmatpush1.msra.mxu0 0.0
    %3712 = vmatprep.subr.mxu0 0.0
    %3713 = vmatpush1.msra.mxu0 0.0
    %3714 = vmatprep.subr.mxu0 0.0
    %3715 = vmatpush1.msra.mxu0 0.0
    %3716 = vmatprep.subr.mxu0 0.0
    %3717 = vmatpush1.msra.mxu0 0.0
    %3718 = vmatprep.subr.mxu0 0.0
    %3719 = vmatpush1.msra.mxu0 0.0
    %3720 = vmatprep.subr.mxu0 0.0
    %3721 = vmatpush1.msra.mxu0 0.0
    %3722 = vmatprep.subr.mxu0 0.0
    %3723 = vmatpush1.msra.mxu0 0.0
    %3724 = vmatprep.subr.mxu0 0.0
    %3725 = vmatpush1.msra.mxu0 0.0
    %3726 = vmatprep.subr.mxu0 0.0
    %3727 = vmatpush1.msra.mxu0 0.0
    %3728 = vmatprep.subr.mxu0 0.0
    %3729 = vmatpush1.msra.mxu0 0.0
    %3730 = vmatprep.subr.mxu0 0.0
    %3731 = vmatpush1.msra.mxu0 0.0
    %3732 = vmatprep.subr.mxu0 0.0
    %3733 = vmatpush1.msra.mxu0 0.0
    %3734 = vmatprep.subr.mxu0 0.0
    %3735 = vmatpush1.msra.mxu0 0.0
    %3736 = vmatprep.subr.mxu0 0.0
    %3737 = vmatpush1.msra.mxu0 0.0
    %3738 = vmatprep.subr.mxu0 0.0
    %3739 = vmatpush1.msra.mxu0 0.0
    %3740 = vmatprep.subr.mxu0 0.0
    %3741 = vmatpush1.msra.mxu0 0.0
    %3742 = vmatprep.mubr.f32.mxu0 0.0
    %3743 = vmatmul.mubr.f32.gmra.mrb[0].mxu0 %v3673
    %v3744 = vpop.f32.mrb[0].mxu0
    %v3745 = vadd.f32 0.0, %v3744
    %v3746 = vpop.f32.mrb[0].mxu0
    %3747 = vmatprep.mubr.f32.mxu0 0.0
    %3748 = vmatmul.mubr.f32.gmra.mrb[0].mxu0 %v3676
    %v3749 = vpop.f32.mrb[0].mxu0
    %v3750 = vadd.f32 0.0, %v3749
    %v3751 = vpop.f32.mrb[0].mxu0
    %3752 = vdwg.mxu0
    %3753 = vrot.lane.b32.xlu0 %v3543, 112
    %v3754 = vpop.permute.xlu0 %3753
    %3755 = vrot.lane.b32.xlu0 %v3548, 112
    %v3756 = vpop.permute.xlu0 %3755
    %3757 = vrot.lane.b32.xlu0 %v3543, 80
    %v3758 = vpop.permute.xlu0 %3757
    %3759 = vrot.lane.b32.xlu0 %v3548, 80
    %v3760 = vpop.permute.xlu0 %3759
    %v3761 = vsel %vm543, %v3754, 0
    %v3763 = vsel %vm543, %v3756, 0
    %v3765 = vsel %vm543, %v3758, 0
    %v3767 = vsel %vm543, %v3760, 0
    %3769 = vmatprep.subr.mxu0 0.0
    %3770 = vmatpush1.xpose.msra.mxu0 %v3765
    %3771 = vmatprep.subr.mxu0 0.0
    %3772 = vmatpush1.xpose.msra.mxu0 %v3767
    %3773 = vmatprep.subr.mxu0 0.0
    %3774 = vmatpush1.xpose.msra.mxu0 0.0
    %3775 = vmatprep.subr.mxu0 0.0
    %3776 = vmatpush1.xpose.msra.mxu0 0.0
    %3777 = vmatprep.subr.mxu0 0.0
    %3778 = vmatpush1.xpose.msra.mxu0 0.0
    %3779 = vmatprep.subr.mxu0 0.0
    %3780 = vmatpush1.xpose.msra.mxu0 0.0
    %3781 = vmatprep.subr.mxu0 0.0
    %3782 = vmatpush1.xpose.msra.mxu0 0.0
    %3783 = vmatprep.subr.mxu0 0.0
    %3784 = vmatpush1.xpose.msra.mxu0 0.0
    %3785 = vmatprep.subr.mxu0 0.0
    %3786 = vmatpush1.xpose.msra.mxu0 0.0
    %3787 = vmatprep.subr.mxu0 0.0
    %3788 = vmatpush1.xpose.msra.mxu0 0.0
    %3789 = vmatprep.subr.mxu0 0.0
    %3790 = vmatpush1.xpose.msra.mxu0 0.0
    %3791 = vmatprep.subr.mxu0 0.0
    %3792 = vmatpush1.xpose.msra.mxu0 0.0
    %3793 = vmatprep.subr.mxu0 0.0
    %3794 = vmatpush1.xpose.msra.mxu0 0.0
    %3795 = vmatprep.subr.mxu0 0.0
    %3796 = vmatpush1.xpose.msra.mxu0 0.0
    %3797 = vmatprep.subr.mxu0 0.0
    %3798 = vmatpush1.xpose.msra.mxu0 0.0
    %3799 = vmatprep.subr.mxu0 0.0
    %3800 = vmatpush1.xpose.msra.mxu0 0.0
    %3801 = vmatprep.subr.mxu0 0.0
    %3802 = vmatpush1.xpose.msra.mxu0 0.0
    %3803 = vmatprep.subr.mxu0 0.0
    %3804 = vmatpush1.xpose.msra.mxu0 0.0
    %3805 = vmatprep.subr.mxu0 0.0
    %3806 = vmatpush1.xpose.msra.mxu0 0.0
    %3807 = vmatprep.subr.mxu0 0.0
    %3808 = vmatpush1.xpose.msra.mxu0 0.0
    %3809 = vmatprep.subr.mxu0 0.0
    %3810 = vmatpush1.xpose.msra.mxu0 0.0
    %3811 = vmatprep.subr.mxu0 0.0
    %3812 = vmatpush1.xpose.msra.mxu0 0.0
    %3813 = vmatprep.subr.mxu0 0.0
    %3814 = vmatpush1.xpose.msra.mxu0 0.0
    %3815 = vmatprep.subr.mxu0 0.0
    %3816 = vmatpush1.xpose.msra.mxu0 0.0
    %3817 = vmatprep.subr.mxu0 0.0
    %3818 = vmatpush1.xpose.msra.mxu0 0.0
    %3819 = vmatprep.subr.mxu0 0.0
    %3820 = vmatpush1.xpose.msra.mxu0 0.0
    %3821 = vmatprep.subr.mxu0 0.0
    %3822 = vmatpush1.xpose.msra.mxu0 0.0
    %3823 = vmatprep.subr.mxu0 0.0
    %3824 = vmatpush1.xpose.msra.mxu0 0.0
    %3825 = vmatprep.subr.mxu0 0.0
    %3826 = vmatpush1.xpose.msra.mxu0 0.0
    %3827 = vmatprep.subr.mxu0 0.0
    %3828 = vmatpush1.xpose.msra.mxu0 0.0
    %3829 = vmatprep.subr.mxu0 0.0
    %3830 = vmatpush1.xpose.msra.mxu0 0.0
    %3831 = vmatprep.subr.mxu0 0.0
    %3832 = vmatpush1.xpose.msra.mxu0 0.0
    %3833 = vmatprep.mubr.f32.mxu0 0.0
    %3834 = vmatmul.mubr.f32.gmra.mrb[0].mxu0 %v3761
    %v3835 = vpop.f32.mrb[0].mxu0
    %v3836 = vadd.f32 0.0, %v3835
    %v3837 = vpop.f32.mrb[0].mxu0
    %3838 = vmatprep.mubr.f32.mxu0 0.0
    %3839 = vmatmul.mubr.f32.gmra.mrb[0].mxu0 %v3763
    %v3840 = vpop.f32.mrb[0].mxu0
    %v3841 = vadd.f32 0.0, %v3840
    %v3842 = vpop.f32.mrb[0].mxu0
    %3843 = vdwg.mxu0
    %v3844 = vmul.f32 %v3836, 0.25
    %v3845 = vmul.f32 %v3841, 0.25
    %v3846 = vadd.f32 %v3844, %v2404
    %v3847 = vadd.f32 %v3845, %v2405
    %v3848 = vsel %vm543, %v3846, -inf
    %3849 = vmax.xlane.f32.xlu0 %v3848
    %v3850 = vpop.xlane.xlu0 %3849
    %v3851 = vsel %vm543, %v3847, -inf
    %3852 = vmax.xlane.f32.xlu0 %v3851
    %v3853 = vpop.xlane.xlu0 %3852
    %v3854 = vsub.f32 %v3846, %v3850
    %v3855 = vsub.f32 %v3847, %v3853
    %v3856 = vmul.f32 %v3854, 1.442695
    %v3857 = vpow.pop %v3856
    %v3858 = vmul.f32 %v3855, 1.442695
    %v3859 = vpow.pop %v3858
    %v3860 = vsel %vm543, %v3857, 0.0
    %3861 = vadd.xlane.f32.xlu0 %v3860
    %v3862 = vpop.xlane.xlu0 %3861
    %v3863 = vsel %vm543, %v3859, 0.0
    %3864 = vadd.xlane.f32.xlu0 %v3863
    %v3865 = vpop.xlane.xlu0 %3864
    %v3866 = vrcp.pop %v3862
    %v3867 = vrcp.pop %v3865
    %v3868 = vmul.f32 %v3857, %v3866
    %v3869 = vmul.f32 %v3859, %v3867
    %3870 = vrot.lane.b32.xlu0 %v3543, 48
    %v3871 = vpop.permute.xlu0 %3870
    %3872 = vrot.lane.b32.xlu0 %v3548, 48
    %v3873 = vpop.permute.xlu0 %3872
    %v3877 = vsel %vm543, %v3868, 0
    %v3880 = vsel %vm543, %v3869, 0
    %3882 = vmatprep.subr.mxu0 0.0
    %3883 = vmatpush1.msra.mxu0 %v3871
    %3884 = vmatprep.subr.mxu0 0.0
    %3885 = vmatpush1.msra.mxu0 %v3873
    %3886 = vmatprep.subr.mxu0 0.0
    %3887 = vmatpush1.msra.mxu0 0.0
    %3888 = vmatprep.subr.mxu0 0.0
    %3889 = vmatpush1.msra.mxu0 0.0
    %3890 = vmatprep.subr.mxu0 0.0
    %3891 = vmatpush1.msra.mxu0 0.0
    %3892 = vmatprep.subr.mxu0 0.0
    %3893 = vmatpush1.msra.mxu0 0.0
    %3894 = vmatprep.subr.mxu0 0.0
    %3895 = vmatpush1.msra.mxu0 0.0
    %3896 = vmatprep.subr.mxu0 0.0
    %3897 = vmatpush1.msra.mxu0 0.0
    %3898 = vmatprep.subr.mxu0 0.0
    %3899 = vmatpush1.msra.mxu0 0.0
    %3900 = vmatprep.subr.mxu0 0.0
    %3901 = vmatpush1.msra.mxu0 0.0
    %3902 = vmatprep.subr.mxu0 0.0
    %3903 = vmatpush1.msra.mxu0 0.0
    %3904 = vmatprep.subr.mxu0 0.0
    %3905 = vmatpush1.msra.mxu0 0.0
    %3906 = vmatprep.subr.mxu0 0.0
    %3907 = vmatpush1.msra.mxu0 0.0
    %3908 = vmatprep.subr.mxu0 0.0
    %3909 = vmatpush1.msra.mxu0 0.0
    %3910 = vmatprep.subr.mxu0 0.0
    %3911 = vmatpush1.msra.mxu0 0.0
    %3912 = vmatprep.subr.mxu0 0.0
    %3913 = vmatpush1.msra.mxu0 0.0
    %3914 = vmatprep.subr.mxu0 0.0
    %3915 = vmatpush1.msra.mxu0 0.0
    %3916 = vmatprep.subr.mxu0 0.0
    %3917 = vmatpush1.msra.mxu0 0.0
    %3918 = vmatprep.subr.mxu0 0.0
    %3919 = vmatpush1.msra.mxu0 0.0
    %3920 = vmatprep.subr.mxu0 0.0
    %3921 = vmatpush1.msra.mxu0 0.0
    %3922 = vmatprep.subr.mxu0 0.0
    %3923 = vmatpush1.msra.mxu0 0.0
    %3924 = vmatprep.subr.mxu0 0.0
    %3925 = vmatpush1.msra.mxu0 0.0
    %3926 = vmatprep.subr.mxu0 0.0
    %3927 = vmatpush1.msra.mxu0 0.0
    %3928 = vmatprep.subr.mxu0 0.0
    %3929 = vmatpush1.msra.mxu0 0.0
    %3930 = vmatprep.subr.mxu0 0.0
    %3931 = vmatpush1.msra.mxu0 0.0
    %3932 = vmatprep.subr.mxu0 0.0
    %3933 = vmatpush1.msra.mxu0 0.0
    %3934 = vmatprep.subr.mxu0 0.0
    %3935 = vmatpush1.msra.mxu0 0.0
    %3936 = vmatprep.subr.mxu0 0.0
    %3937 = vmatpush1.msra.mxu0 0.0
    %3938 = vmatprep.subr.mxu0 0.0
    %3939 = vmatpush1.msra.mxu0 0.0
    %3940 = vmatprep.subr.mxu0 0.0
    %3941 = vmatpush1.msra.mxu0 0.0
    %3942 = vmatprep.subr.mxu0 0.0
    %3943 = vmatpush1.msra.mxu0 0.0
    %3944 = vmatprep.subr.mxu0 0.0
    %3945 = vmatpush1.msra.mxu0 0.0
    %3946 = vmatprep.mubr.f32.mxu0 0.0
    %3947 = vmatmul.mubr.f32.gmra.mrb[0].mxu0 %v3877
    %v3948 = vpop.f32.mrb[0].mxu0
    %v3949 = vadd.f32 0.0, %v3948
    %v3950 = vpop.f32.mrb[0].mxu0
    %3951 = vmatprep.mubr.f32.mxu0 0.0
    %3952 = vmatmul.mubr.f32.gmra.mrb[0].mxu0 %v3880
    %v3953 = vpop.f32.mrb[0].mxu0
    %v3954 = vadd.f32 0.0, %v3953
    %v3955 = vpop.f32.mrb[0].mxu0
    %3956 = vdwg.mxu0
    %v3958 = vsel %vm543, %v3949, 0
    %v3961 = vsel %vm543, %v3954, 0
    %3963 = vmatprep.subr.mxu0 0.0
    %3964 = vmatpush1.msra.mxu0 %v2449
    %3965 = vmatprep.subr.mxu0 0.0
    %3966 = vmatpush1.msra.mxu0 %v2450
    %3967 = vmatprep.subr.mxu0 0.0
    %3968 = vmatpush1.msra.mxu0 0.0
    %3969 = vmatprep.subr.mxu0 0.0
    %3970 = vmatpush1.msra.mxu0 0.0
    %3971 = vmatprep.subr.mxu0 0.0
    %3972 = vmatpush1.msra.mxu0 0.0
    %3973 = vmatprep.subr.mxu0 0.0
    %3974 = vmatpush1.msra.mxu0 0.0
    %3975 = vmatprep.subr.mxu0 0.0
    %3976 = vmatpush1.msra.mxu0 0.0
    %3977 = vmatprep.subr.mxu0 0.0
    %3978 = vmatpush1.msra.mxu0 0.0
    %3979 = vmatprep.subr.mxu0 0.0
    %3980 = vmatpush1.msra.mxu0 0.0
    %3981 = vmatprep.subr.mxu0 0.0
    %3982 = vmatpush1.msra.mxu0 0.0
    %3983 = vmatprep.subr.mxu0 0.0
    %3984 = vmatpush1.msra.mxu0 0.0
    %3985 = vmatprep.subr.mxu0 0.0
    %3986 = vmatpush1.msra.mxu0 0.0
    %3987 = vmatprep.subr.mxu0 0.0
    %3988 = vmatpush1.msra.mxu0 0.0
    %3989 = vmatprep.subr.mxu0 0.0
    %3990 = vmatpush1.msra.mxu0 0.0
    %3991 = vmatprep.subr.mxu0 0.0
    %3992 = vmatpush1.msra.mxu0 0.0
    %3993 = vmatprep.subr.mxu0 0.0
    %3994 = vmatpush1.msra.mxu0 0.0
    %3995 = vmatprep.subr.mxu0 0.0
    %3996 = vmatpush1.msra.mxu0 0.0
    %3997 = vmatprep.subr.mxu0 0.0
    %3998 = vmatpush1.msra.mxu0 0.0
    %3999 = vmatprep.subr.mxu0 0.0
    %4000 = vmatpush1.msra.mxu0 0.0
    %4001 = vmatprep.subr.mxu0 0.0
    %4002 = vmatpush1.msra.mxu0 0.0
    %4003 = vmatprep.subr.mxu0 0.0
    %4004 = vmatpush1.msra.mxu0 0.0
    %4005 = vmatprep.subr.mxu0 0.0
    %4006 = vmatpush1.msra.mxu0 0.0
    %4007 = vmatprep.subr.mxu0 0.0
    %4008 = vmatpush1.msra.mxu0 0.0
    %4009 = vmatprep.subr.mxu0 0.0
    %4010 = vmatpush1.msra.mxu0 0.0
    %4011 = vmatprep.subr.mxu0 0.0
    %4012 = vmatpush1.msra.mxu0 0.0
    %4013 = vmatprep.subr.mxu0 0.0
    %4014 = vmatpush1.msra.mxu0 0.0
    %4015 = vmatprep.subr.mxu0 0.0
    %4016 = vmatpush1.msra.mxu0 0.0
    %4017 = vmatprep.subr.mxu0 0.0
    %4018 = vmatpush1.msra.mxu0 0.0
    %4019 = vmatprep.subr.mxu0 0.0
    %4020 = vmatpush1.msra.mxu0 0.0
    %4021 = vmatprep.subr.mxu0 0.0
    %4022 = vmatpush1.msra.mxu0 0.0
    %4023 = vmatprep.subr.mxu0 0.0
    %4024 = vmatpush1.msra.mxu0 0.0
    %4025 = vmatprep.subr.mxu0 0.0
    %4026 = vmatpush1.msra.mxu0 0.0
    %4027 = vmatprep.mubr.f32.mxu0 0.0
    %4028 = vmatmul.mubr.f32.gmra.mrb[0].mxu0 %v3958
    %v4029 = vpop.f32.mrb[0].mxu0
    %v4030 = vadd.f32 0.0, %v4029
    %v4031 = vpop.f32.mrb[0].mxu0
    %4032 = vmatprep.mubr.f32.mxu0 0.0
    %4033 = vmatmul.mubr.f32.gmra.mrb[0].mxu0 %v3961
    %v4034 = vpop.f32.mrb[0].mxu0
    %v4035 = vadd.f32 0.0, %v4034
    %v4036 = vpop.f32.mrb[0].mxu0
    %4037 = vdwg.mxu0
    %v4039 = vsel %vm543, %v3745, 0
    %v4042 = vsel %vm543, %v3750, 0
    %4044 = vmatprep.subr.mxu0 0.0
    %4045 = vmatpush1.msra.mxu0 %v2447
    %4046 = vmatprep.subr.mxu0 0.0
    %4047 = vmatpush1.msra.mxu0 %v2448
    %4048 = vmatprep.subr.mxu0 0.0
    %4049 = vmatpush1.msra.mxu0 0.0
    %4050 = vmatprep.subr.mxu0 0.0
    %4051 = vmatpush1.msra.mxu0 0.0
    %4052 = vmatprep.subr.mxu0 0.0
    %4053 = vmatpush1.msra.mxu0 0.0
    %4054 = vmatprep.subr.mxu0 0.0
    %4055 = vmatpush1.msra.mxu0 0.0
    %4056 = vmatprep.subr.mxu0 0.0
    %4057 = vmatpush1.msra.mxu0 0.0
    %4058 = vmatprep.subr.mxu0 0.0
    %4059 = vmatpush1.msra.mxu0 0.0
    %4060 = vmatprep.subr.mxu0 0.0
    %4061 = vmatpush1.msra.mxu0 0.0
    %4062 = vmatprep.subr.mxu0 0.0
    %4063 = vmatpush1.msra.mxu0 0.0
    %4064 = vmatprep.subr.mxu0 0.0
    %4065 = vmatpush1.msra.mxu0 0.0
    %4066 = vmatprep.subr.mxu0 0.0
    %4067 = vmatpush1.msra.mxu0 0.0
    %4068 = vmatprep.subr.mxu0 0.0
    %4069 = vmatpush1.msra.mxu0 0.0
    %4070 = vmatprep.subr.mxu0 0.0
    %4071 = vmatpush1.msra.mxu0 0.0
    %4072 = vmatprep.subr.mxu0 0.0
    %4073 = vmatpush1.msra.mxu0 0.0
    %4074 = vmatprep.subr.mxu0 0.0
    %4075 = vmatpush1.msra.mxu0 0.0
    %4076 = vmatprep.subr.mxu0 0.0
    %4077 = vmatpush1.msra.mxu0 0.0
    %4078 = vmatprep.subr.mxu0 0.0
    %4079 = vmatpush1.msra.mxu0 0.0
    %4080 = vmatprep.subr.mxu0 0.0
    %4081 = vmatpush1.msra.mxu0 0.0
    %4082 = vmatprep.subr.mxu0 0.0
    %4083 = vmatpush1.msra.mxu0 0.0
    %4084 = vmatprep.subr.mxu0 0.0
    %4085 = vmatpush1.msra.mxu0 0.0
    %4086 = vmatprep.subr.mxu0 0.0
    %4087 = vmatpush1.msra.mxu0 0.0
    %4088 = vmatprep.subr.mxu0 0.0
    %4089 = vmatpush1.msra.mxu0 0.0
    %4090 = vmatprep.subr.mxu0 0.0
    %4091 = vmatpush1.msra.mxu0 0.0
    %4092 = vmatprep.subr.mxu0 0.0
    %4093 = vmatpush1.msra.mxu0 0.0
    %4094 = vmatprep.subr.mxu0 0.0
    %4095 = vmatpush1.msra.mxu0 0.0
    %4096 = vmatprep.subr.mxu0 0.0
    %4097 = vmatpush1.msra.mxu0 0.0
    %4098 = vmatprep.subr.mxu0 0.0
    %4099 = vmatpush1.msra.mxu0 0.0
    %4100 = vmatprep.subr.mxu0 0.0
    %4101 = vmatpush1.msra.mxu0 0.0
    %4102 = vmatprep.subr.mxu0 0.0
    %4103 = vmatpush1.msra.mxu0 0.0
    %4104 = vmatprep.subr.mxu0 0.0
    %4105 = vmatpush1.msra.mxu0 0.0
    %4106 = vmatprep.subr.mxu0 0.0
    %4107 = vmatpush1.msra.mxu0 0.0
    %4108 = vmatprep.mubr.f32.mxu0 0.0
    %4109 = vmatmul.mubr.f32.gmra.mrb[0].mxu0 %v4039
    %v4110 = vpop.f32.mrb[0].mxu0
    %v4111 = vadd.f32 %v4030, %v4110
    %v4112 = vpop.f32.mrb[0].mxu0
    %4113 = vmatprep.mubr.f32.mxu0 0.0
    %4114 = vmatmul.mubr.f32.gmra.mrb[0].mxu0 %v4042
    %v4115 = vpop.f32.mrb[0].mxu0
    %v4116 = vadd.f32 %v4035, %v4115
    %v4117 = vpop.f32.mrb[0].mxu0
    %4118 = vdwg.mxu0
    %v4120 = vlaneseq
    %v4121 = vshrl.u32 %v4120, 7
    %v4122 = vsub.s32 0, %v4121
    %v4123 = vrot.slane %v2452, %v4122
    %v4125 = vadd.f32 %v4111, %v4123
    %v4126 = vadd.f32 %v4116, %v4123
    %v4127 = vadd.f32 %v3420, %v4125
    %v4128 = vadd.f32 %v3421, %v4126
    %v4129 = vsel %vm363, %v4127, 0.0
    %4130 = vadd.xlane.f32.xlu0 %v4129
    %v4131 = vpop.xlane.xlu0 %4130
    %v4132 = vsel %vm363, %v4128, 0.0
    %4133 = vadd.xlane.f32.xlu0 %v4132
    %v4134 = vpop.xlane.xlu0 %4133
    %v4135 = vmul.f32 %v4131, %v371
    %v4136 = vmul.f32 %v4134, %v371
    %v4137 = vsub.f32 %v4127, %v4135
    %v4138 = vsub.f32 %v4128, %v4136
    %v4139 = vmul.f32 %v4137, %v4137
    %v4140 = vmul.f32 %v4138, %v4138
    %v4141 = vsel %vm363, %v4139, 0.0
    %4142 = vadd.xlane.f32.xlu0 %v4141
    %v4143 = vpop.xlane.xlu0 %4142
    %v4144 = vsel %vm363, %v4140, 0.0
    %4145 = vadd.xlane.f32.xlu0 %v4144
    %v4146 = vpop.xlane.xlu0 %4145
    %v4147 = vmul.f32 %v4143, %v371
    %v4148 = vmul.f32 %v4146, %v371
    %v4149 = vadd.f32 %v4147, 1e-05
    %v4150 = vadd.f32 %v4148, 1e-05
    %v4151 = vrsqrt.pop %v4149
    %v4152 = vrsqrt.pop %v4150
    %v4153 = vmul.f32 %v4137, %v4151
    %v4154 = vmul.f32 %v4138, %v4152
    %v4156 = vlaneseq
    %v4157 = vshrl.u32 %v4156, 7
    %v4158 = vsub.s32 0, %v4157
    %v4159 = vrot.slane %v2454, %v4158
    %v4161 = vmul.f32 %v4153, %v4159
    %v4162 = vmul.f32 %v4154, %v4159
    %v4164 = vlaneseq
    %v4165 = vshrl.u32 %v4164, 7
    %v4166 = vsub.s32 0, %v4165
    %v4167 = vrot.slane %v2456, %v4166
    %v4169 = vadd.f32 %v4161, %v4167
    %v4170 = vadd.f32 %v4162, %v4167
    %v4172 = vlaneseq
    %v4173 = vshrl.u32 %v4172, 7
    %v4174 = vsub.s32 0, %v4173
    %v4175 = vrot.slane %v2463, %v4174
    %v4178 = vsel %vm363, %v4169, 0
    %v4181 = vsel %vm363, %v4170, 0
    %4183 = vmatprep.subr.mxu0 0.0
    %4184 = vmatpush1.msra.mxu0 %v2458
    %4185 = vmatprep.subr.mxu0 0.0
    %4186 = vmatpush1.msra.mxu0 %v2459
    %4187 = vmatprep.subr.mxu0 0.0
    %4188 = vmatpush1.msra.mxu0 %v2460
    %4189 = vmatprep.subr.mxu0 0.0
    %4190 = vmatpush1.msra.mxu0 %v2461
    %4191 = vmatprep.subr.mxu0 0.0
    %4192 = vmatpush1.msra.mxu0 0.0
    %4193 = vmatprep.subr.mxu0 0.0
    %4194 = vmatpush1.msra.mxu0 0.0
    %4195 = vmatprep.subr.mxu0 0.0
    %4196 = vmatpush1.msra.mxu0 0.0
    %4197 = vmatprep.subr.mxu0 0.0
    %4198 = vmatpush1.msra.mxu0 0.0
    %4199 = vmatprep.subr.mxu0 0.0
    %4200 = vmatpush1.msra.mxu0 0.0
    %4201 = vmatprep.subr.mxu0 0.0
    %4202 = vmatpush1.msra.mxu0 0.0
    %4203 = vmatprep.subr.mxu0 0.0
    %4204 = vmatpush1.msra.mxu0 0.0
    %4205 = vmatprep.subr.mxu0 0.0
    %4206 = vmatpush1.msra.mxu0 0.0
    %4207 = vmatprep.subr.mxu0 0.0
    %4208 = vmatpush1.msra.mxu0 0.0
    %4209 = vmatprep.subr.mxu0 0.0
    %4210 = vmatpush1.msra.mxu0 0.0
    %4211 = vmatprep.subr.mxu0 0.0
    %4212 = vmatpush1.msra.mxu0 0.0
    %4213 = vmatprep.subr.mxu0 0.0
    %4214 = vmatpush1.msra.mxu0 0.0
    %4215 = vmatprep.subr.mxu0 0.0
    %4216 = vmatpush1.msra.mxu0 0.0
    %4217 = vmatprep.subr.mxu0 0.0
    %4218 = vmatpush1.msra.mxu0 0.0
    %4219 = vmatprep.subr.mxu0 0.0
    %4220 = vmatpush1.msra.mxu0 0.0
    %4221 = vmatprep.subr.mxu0 0.0
    %4222 = vmatpush1.msra.mxu0 0.0
    %4223 = vmatprep.subr.mxu0 0.0
    %4224 = vmatpush1.msra.mxu0 0.0
    %4225 = vmatprep.subr.mxu0 0.0
    %4226 = vmatpush1.msra.mxu0 0.0
    %4227 = vmatprep.subr.mxu0 0.0
    %4228 = vmatpush1.msra.mxu0 0.0
    %4229 = vmatprep.subr.mxu0 0.0
    %4230 = vmatpush1.msra.mxu0 0.0
    %4231 = vmatprep.subr.mxu0 0.0
    %4232 = vmatpush1.msra.mxu0 0.0
    %4233 = vmatprep.subr.mxu0 0.0
    %4234 = vmatpush1.msra.mxu0 0.0
    %4235 = vmatprep.subr.mxu0 0.0
    %4236 = vmatpush1.msra.mxu0 0.0
    %4237 = vmatprep.subr.mxu0 0.0
    %4238 = vmatpush1.msra.mxu0 0.0
    %4239 = vmatprep.subr.mxu0 0.0
    %4240 = vmatpush1.msra.mxu0 0.0
    %4241 = vmatprep.subr.mxu0 0.0
    %4242 = vmatpush1.msra.mxu0 0.0
    %4243 = vmatprep.subr.mxu0 0.0
    %4244 = vmatpush1.msra.mxu0 0.0
    %4245 = vmatprep.subr.mxu0 0.0
    %4246 = vmatpush1.msra.mxu0 0.0
    %4247 = vmatprep.mubr.f32.mxu0 0.0
    %4248 = vmatmul.mubr.f32.gmra.mrb[0].mxu0 %v4178
    %v4249 = vpop.f32.mrb[0].mxu0
    %v4250 = vadd.f32 %v4175, %v4249
    %v4251 = vpop.f32.mrb[0].mxu0
    %4252 = vmatprep.mubr.f32.mxu0 0.0
    %4253 = vmatmul.mubr.f32.gmra.mrb[0].mxu0 %v4181
    %v4254 = vpop.f32.mrb[0].mxu0
    %v4255 = vadd.f32 %v4175, %v4254
    %v4256 = vpop.f32.mrb[0].mxu0
    %4257 = vdwg.mxu0
    %v4258 = vmul.f32 %v4250, 1.702
    %v4259 = vmul.f32 %v4255, 1.702
    %v4260 = vxor.u32 %v4258, 2147483648
    %v4261 = vxor.u32 %v4259, 2147483648
    %v4262 = vmul.f32 %v4260, 1.442695
    %v4263 = vpow.pop %v4262
    %v4264 = vmul.f32 %v4261, 1.442695
    %v4265 = vpow.pop %v4264
    %v4266 = vadd.f32 %v4263, 1.0
    %v4267 = vadd.f32 %v4265, 1.0
    %v4268 = vrcp.pop %v4266
    %v4269 = vmul.f32 1.0, %v4268
    %v4270 = vrcp.pop %v4267
    %v4271 = vmul.f32 1.0, %v4270
    %v4272 = vmul.f32 %v4250, %v4269
    %v4273 = vmul.f32 %v4255, %v4271
    %v4275 = vlaneseq
    %v4276 = vshrl.u32 %v4275, 7
    %v4277 = vsub.s32 0, %v4276
    %v4278 = vrot.slane %v2474, %v4277
    %v4281 = vsel %vm1272, %v4272, 0
    %v4284 = vsel %vm1272, %v4273, 0
    %4286 = vmatprep.subr.mxu0 0.0
    %4287 = vmatpush1.msra.mxu0 %v2465
    %4288 = vmatprep.subr.mxu0 0.0
    %4289 = vmatpush1.msra.mxu0 %v2466
    %4290 = vmatprep.subr.mxu0 0.0
    %4291 = vmatpush1.msra.mxu0 %v2467
    %4292 = vmatprep.subr.mxu0 0.0
    %4293 = vmatpush1.msra.mxu0 %v2468
    %4294 = vmatprep.subr.mxu0 0.0
    %4295 = vmatpush1.msra.mxu0 %v2469
    %4296 = vmatprep.subr.mxu0 0.0
    %4297 = vmatpush1.msra.mxu0 %v2470
    %4298 = vmatprep.subr.mxu0 0.0
    %4299 = vmatpush1.msra.mxu0 %v2471
    %4300 = vmatprep.subr.mxu0 0.0
    %4301 = vmatpush1.msra.mxu0 %v2472
    %4302 = vmatprep.subr.mxu0 0.0
    %4303 = vmatpush1.msra.mxu0 0.0
    %4304 = vmatprep.subr.mxu0 0.0
    %4305 = vmatpush1.msra.mxu0 0.0
    %4306 = vmatprep.subr.mxu0 0.0
    %4307 = vmatpush1.msra.mxu0 0.0
    %4308 = vmatprep.subr.mxu0 0.0
    %4309 = vmatpush1.msra.mxu0 0.0
    %4310 = vmatprep.subr.mxu0 0.0
    %4311 = vmatpush1.msra.mxu0 0.0
    %4312 = vmatprep.subr.mxu0 0.0
    %4313 = vmatpush1.msra.mxu0 0.0
    %4314 = vmatprep.subr.mxu0 0.0
    %4315 = vmatpush1.msra.mxu0 0.0
    %4316 = vmatprep.subr.mxu0 0.0
    %4317 = vmatpush1.msra.mxu0 0.0
    %4318 = vmatprep.subr.mxu0 0.0
    %4319 = vmatpush1.msra.mxu0 0.0
    %4320 = vmatprep.subr.mxu0 0.0
    %4321 = vmatpush1.msra.mxu0 0.0
    %4322 = vmatprep.subr.mxu0 0.0
    %4323 = vmatpush1.msra.mxu0 0.0
    %4324 = vmatprep.subr.mxu0 0.0
    %4325 = vmatpush1.msra.mxu0 0.0
    %4326 = vmatprep.subr.mxu0 0.0
    %4327 = vmatpush1.msra.mxu0 0.0
    %4328 = vmatprep.subr.mxu0 0.0
    %4329 = vmatpush1.msra.mxu0 0.0
    %4330 = vmatprep.subr.mxu0 0.0
    %4331 = vmatpush1.msra.mxu0 0.0
    %4332 = vmatprep.subr.mxu0 0.0
    %4333 = vmatpush1.msra.mxu0 0.0
    %4334 = vmatprep.subr.mxu0 0.0
    %4335 = vmatpush1.msra.mxu0 0.0
    %4336 = vmatprep.subr.mxu0 0.0
    %4337 = vmatpush1.msra.mxu0 0.0
    %4338 = vmatprep.subr.mxu0 0.0
    %4339 = vmatpush1.msra.mxu0 0.0
    %4340 = vmatprep.subr.mxu0 0.0
    %4341 = vmatpush1.msra.mxu0 0.0
    %4342 = vmatprep.subr.mxu0 0.0
    %4343 = vmatpush1.msra.mxu0 0.0
    %4344 = vmatprep.subr.mxu0 0.0
    %4345 = vmatpush1.msra.mxu0 0.0
    %4346 = vmatprep.subr.mxu0 0.0
    %4347 = vmatpush1.msra.mxu0 0.0
    %4348 = vmatprep.subr.mxu0 0.0
    %4349 = vmatpush1.msra.mxu0 0.0
    %4350 = vmatprep.mubr.f32.mxu0 0.0
    %4351 = vmatmul.mubr.f32.gmra.mrb[0].mxu0 %v4281
    %v4352 = vpop.f32.mrb[0].mxu0
    %v4353 = vadd.f32 %v4278, %v4352
    %v4354 = vpop.f32.mrb[0].mxu0
    %4355 = vmatprep.mubr.f32.mxu0 0.0
    %4356 = vmatmul.mubr.f32.gmra.mrb[0].mxu0 %v4284
    %v4357 = vpop.f32.mrb[0].mxu0
    %v4358 = vadd.f32 %v4278, %v4357
    %v4359 = vpop.f32.mrb[0].mxu0
    %4360 = vdwg.mxu0
    %v4361 = vadd.f32 %v4127, %v4353
    %v4362 = vadd.f32 %v4128, %v4358
    %v4363 = vsel %vm363, %v4361, 0.0
    %4364 = vadd.xlane.f32.xlu0 %v4363
    %v4365 = vpop.xlane.xlu0 %4364
    %v4366 = vsel %vm363, %v4362, 0.0
    %4367 = vadd.xlane.f32.xlu0 %v4366
    %v4368 = vpop.xlane.xlu0 %4367
    %v4369 = vmul.f32 %v4365, %v371
    %v4370 = vmul.f32 %v4368, %v371
    %v4371 = vsub.f32 %v4361, %v4369
    %v4372 = vsub.f32 %v4362, %v4370
    %v4373 = vmul.f32 %v4371, %v4371
    %v4374 = vmul.f32 %v4372, %v4372
    %v4375 = vsel %vm363, %v4373, 0.0
    %4376 = vadd.xlane.f32.xlu0 %v4375
    %v4377 = vpop.xlane.xlu0 %4376
    %v4378 = vsel %vm363, %v4374, 0.0
    %4379 = vadd.xlane.f32.xlu0 %v4378
    %v4380 = vpop.xlane.xlu0 %4379
    %v4381 = vmul.f32 %v4377, %v371
    %v4382 = vmul.f32 %v4380, %v371
    %v4383 = vadd.f32 %v4381, 1e-05
    %v4384 = vadd.f32 %v4382, 1e-05
    %v4385 = vrsqrt.pop %v4383
    %v4386 = vrsqrt.pop %v4384
    %v4387 = vmul.f32 %v4371, %v4385
    %v4388 = vmul.f32 %v4372, %v4386
    %v4390 = vlaneseq
    %v4391 = vshrl.u32 %v4390, 7
    %v4392 = vsub.s32 0, %v4391
    %v4393 = vrot.slane %v2475, %v4392
    %v4395 = vmul.f32 %v4387, %v4393
    %v4396 = vmul.f32 %v4388, %v4393
    %v4398 = vlaneseq
    %v4399 = vshrl.u32 %v4398, 7
    %v4400 = vsub.s32 0, %v4399
    %v4401 = vrot.slane %v2476, %v4400
    %v4403 = vadd.f32 %v4395, %v4401
    %v4404 = vadd.f32 %v4396, %v4401
    %v4406 = vsel %vm543, %v2406, 0
    %4408 = vmatprep.subr.mxu0 0.0
    %4409 = vmatpush1.msra.mxu0 %v4403
    %4410 = vmatprep.subr.mxu0 0.0
    %4411 = vmatpush1.msra.mxu0 %v4404
    %4412 = vmatprep.subr.mxu0 0.0
    %4413 = vmatpush1.msra.mxu0 0.0
    %4414 = vmatprep.subr.mxu0 0.0
    %4415 = vmatpush1.msra.mxu0 0.0
    %4416 = vmatprep.subr.mxu0 0.0
    %4417 = vmatpush1.msra.mxu0 0.0
    %4418 = vmatprep.subr.mxu0 0.0
    %4419 = vmatpush1.msra.mxu0 0.0
    %4420 = vmatprep.subr.mxu0 0.0
    %4421 = vmatpush1.msra.mxu0 0.0
    %4422 = vmatprep.subr.mxu0 0.0
    %4423 = vmatpush1.msra.mxu0 0.0
    %4424 = vmatprep.subr.mxu0 0.0
    %4425 = vmatpush1.msra.mxu0 0.0
    %4426 = vmatprep.subr.mxu0 0.0
    %4427 = vmatpush1.msra.mxu0 0.0
    %4428 = vmatprep.subr.mxu0 0.0
    %4429 = vmatpush1.msra.mxu0 0.0
    %4430 = vmatprep.subr.mxu0 0.0
    %4431 = vmatpush1.msra.mxu0 0.0
    %4432 = vmatprep.subr.mxu0 0.0
    %4433 = vmatpush1.msra.mxu0 0.0
    %4434 = vmatprep.subr.mxu0 0.0
    %4435 = vmatpush1.msra.mxu0 0.0
    %4436 = vmatprep.subr.mxu0 0.0
    %4437 = vmatpush1.msra.mxu0 0.0
    %4438 = vmatprep.subr.mxu0 0.0
    %4439 = vmatpush1.msra.mxu0 0.0
    %4440 = vmatprep.subr.mxu0 0.0
    %4441 = vmatpush1.msra.mxu0 0.0
    %4442 = vmatprep.subr.mxu0 0.0
    %4443 = vmatpush1.msra.mxu0 0.0
    %4444 = vmatprep.subr.mxu0 0.0
    %4445 = vmatpush1.msra.mxu0 0.0
    %4446 = vmatprep.subr.mxu0 0.0
    %4447 = vmatpush1.msra.mxu0 0.0
    %4448 = vmatprep.subr.mxu0 0.0
    %4449 = vmatpush1.msra.mxu0 0.0
    %4450 = vmatprep.subr.mxu0 0.0
    %4451 = vmatpush1.msra.mxu0 0.0
    %4452 = vmatprep.subr.mxu0 0.0
    %4453 = vmatpush1.msra.mxu0 0.0
    %4454 = vmatprep.subr.mxu0 0.0
    %4455 = vmatpush1.msra.mxu0 0.0
    %4456 = vmatprep.subr.mxu0 0.0
    %4457 = vmatpush1.msra.mxu0 0.0
    %4458 = vmatprep.subr.mxu0 0.0
    %4459 = vmatpush1.msra.mxu0 0.0
    %4460 = vmatprep.subr.mxu0 0.0
    %4461 = vmatpush1.msra.mxu0 0.0
    %4462 = vmatprep.subr.mxu0 0.0
    %4463 = vmatpush1.msra.mxu0 0.0
    %4464 = vmatprep.subr.mxu0 0.0
    %4465 = vmatpush1.msra.mxu0 0.0
    %4466 = vmatprep.subr.mxu0 0.0
    %4467 = vmatpush1.msra.mxu0 0.0
    %4468 = vmatprep.subr.mxu0 0.0
    %4469 = vmatpush1.msra.mxu0 0.0
    %4470 = vmatprep.subr.mxu0 0.0
    %4471 = vmatpush1.msra.mxu0 0.0
    %4472 = vmatprep.mubr.f32.mxu0 0.0
    %4473 = vmatmul.mubr.f32.gmra.mrb[0].mxu0 %v4406
    %v4474 = vpop.f32.mrb[0].mxu0
    %v4475 = vadd.f32 0.0, %v4474
    %v4476 = vpop.f32.mrb[0].mxu0
    %4477 = vdwg.mxu0
    %v4479 = vsel %vm363, %v4475, 0
    %4481 = vmatprep.subr.mxu0 0.0
    %4482 = vmatpush1.msra.mxu0 %v2477
    %4483 = vmatprep.subr.mxu0 0.0
    %4484 = vmatpush1.msra.mxu0 %v2478
    %4485 = vmatprep.subr.mxu0 0.0
    %4486 = vmatpush1.msra.mxu0 %v2479
    %4487 = vmatprep.subr.mxu0 0.0
    %4488 = vmatpush1.msra.mxu0 %v2480
    %4489 = vmatprep.subr.mxu0 0.0
    %4490 = vmatpush1.msra.mxu0 0.0
    %4491 = vmatprep.subr.mxu0 0.0
    %4492 = vmatpush1.msra.mxu0 0.0
    %4493 = vmatprep.subr.mxu0 0.0
    %4494 = vmatpush1.msra.mxu0 0.0
    %4495 = vmatprep.subr.mxu0 0.0
    %4496 = vmatpush1.msra.mxu0 0.0
    %4497 = vmatprep.subr.mxu0 0.0
    %4498 = vmatpush1.msra.mxu0 0.0
    %4499 = vmatprep.subr.mxu0 0.0
    %4500 = vmatpush1.msra.mxu0 0.0
    %4501 = vmatprep.subr.mxu0 0.0
    %4502 = vmatpush1.msra.mxu0 0.0
    %4503 = vmatprep.subr.mxu0 0.0
    %4504 = vmatpush1.msra.mxu0 0.0
    %4505 = vmatprep.subr.mxu0 0.0
    %4506 = vmatpush1.msra.mxu0 0.0
    %4507 = vmatprep.subr.mxu0 0.0
    %4508 = vmatpush1.msra.mxu0 0.0
    %4509 = vmatprep.subr.mxu0 0.0
    %4510 = vmatpush1.msra.mxu0 0.0
    %4511 = vmatprep.subr.mxu0 0.0
    %4512 = vmatpush1.msra.mxu0 0.0
    %4513 = vmatprep.subr.mxu0 0.0
    %4514 = vmatpush1.msra.mxu0 0.0
    %4515 = vmatprep.subr.mxu0 0.0
    %4516 = vmatpush1.msra.mxu0 0.0
    %4517 = vmatprep.subr.mxu0 0.0
    %4518 = vmatpush1.msra.mxu0 0.0
    %4519 = vmatprep.subr.mxu0 0.0
    %4520 = vmatpush1.msra.mxu0 0.0
    %4521 = vmatprep.subr.mxu0 0.0
    %4522 = vmatpush1.msra.mxu0 0.0
    %4523 = vmatprep.subr.mxu0 0.0
    %4524 = vmatpush1.msra.mxu0 0.0
    %4525 = vmatprep.subr.mxu0 0.0
    %4526 = vmatpush1.msra.mxu0 0.0
    %4527 = vmatprep.subr.mxu0 0.0
    %4528 = vmatpush1.msra.mxu0 0.0
    %4529 = vmatprep.subr.mxu0 0.0
    %4530 = vmatpush1.msra.mxu0 0.0
    %4531 = vmatprep.subr.mxu0 0.0
    %4532 = vmatpush1.msra.mxu0 0.0
    %4533 = vmatprep.subr.mxu0 0.0
    %4534 = vmatpush1.msra.mxu0 0.0
    %4535 = vmatprep.subr.mxu0 0.0
    %4536 = vmatpush1.msra.mxu0 0.0
    %4537 = vmatprep.subr.mxu0 0.0
    %4538 = vmatpush1.msra.mxu0 0.0
    %4539 = vmatprep.subr.mxu0 0.0
    %4540 = vmatpush1.msra.mxu0 0.0
    %4541 = vmatprep.subr.mxu0 0.0
    %4542 = vmatpush1.msra.mxu0 0.0
    %4543 = vmatprep.subr.mxu0 0.0
    %4544 = vmatpush1.msra.mxu0 0.0
    %4545 = vmatprep.mubr.f32.mxu0 0.0
    %4546 = vmatmul.mubr.f32.gmra.mrb[0].mxu0 %v4479
    %v4547 = vpop.f32.mrb[0].mxu0
    %v4548 = vadd.f32 0.0, %v4547
    %v4549 = vpop.f32.mrb[0].mxu0
    %4550 = vdwg.mxu0
    %v4552 = vsel %vm363, %v2401, 0
    %4554 = vmatprep.subr.mxu0 0.0
    %4555 = vmatpush1.msra.mxu0 %v272
    %4556 = vmatprep.subr.mxu0 0.0
    %4557 = vmatpush1.msra.mxu0 %v273
    %4558 = vmatprep.subr.mxu0 0.0
    %4559 = vmatpush1.msra.mxu0 %v274
    %4560 = vmatprep.subr.mxu0 0.0
    %4561 = vmatpush1.msra.mxu0 %v275
    %4562 = vmatprep.subr.mxu0 0.0
    %4563 = vmatpush1.msra.mxu0 0.0
    %4564 = vmatprep.subr.mxu0 0.0
    %4565 = vmatpush1.msra.mxu0 0.0
    %4566 = vmatprep.subr.mxu0 0.0
    %4567 = vmatpush1.msra.mxu0 0.0
    %4568 = vmatprep.subr.mxu0 0.0
    %4569 = vmatpush1.msra.mxu0 0.0
    %4570 = vmatprep.subr.mxu0 0.0
    %4571 = vmatpush1.msra.mxu0 0.0
    %4572 = vmatprep.subr.mxu0 0.0
    %4573 = vmatpush1.msra.mxu0 0.0
    %4574 = vmatprep.subr.mxu0 0.0
    %4575 = vmatpush1.msra.mxu0 0.0
    %4576 = vmatprep.subr.mxu0 0.0
    %4577 = vmatpush1.msra.mxu0 0.0
    %4578 = vmatprep.subr.mxu0 0.0
    %4579 = vmatpush1.msra.mxu0 0.0
    %4580 = vmatprep.subr.mxu0 0.0
    %4581 = vmatpush1.msra.mxu0 0.0
    %4582 = vmatprep.subr.mxu0 0.0
    %4583 = vmatpush1.msra.mxu0 0.0
    %4584 = vmatprep.subr.mxu0 0.0
    %4585 = vmatpush1.msra.mxu0 0.0
    %4586 = vmatprep.subr.mxu0 0.0
    %4587 = vmatpush1.msra.mxu0 0.0
    %4588 = vmatprep.subr.mxu0 0.0
    %4589 = vmatpush1.msra.mxu0 0.0
    %4590 = vmatprep.subr.mxu0 0.0
    %4591 = vmatpush1.msra.mxu0 0.0
    %4592 = vmatprep.subr.mxu0 0.0
    %4593 = vmatpush1.msra.mxu0 0.0
    %4594 = vmatprep.subr.mxu0 0.0
    %4595 = vmatpush1.msra.mxu0 0.0
    %4596 = vmatprep.subr.mxu0 0.0
    %4597 = vmatpush1.msra.mxu0 0.0
    %4598 = vmatprep.subr.mxu0 0.0
    %4599 = vmatpush1.msra.mxu0 0.0
    %4600 = vmatprep.subr.mxu0 0.0
    %4601 = vmatpush1.msra.mxu0 0.0
    %4602 = vmatprep.subr.mxu0 0.0
    %4603 = vmatpush1.msra.mxu0 0.0
    %4604 = vmatprep.subr.mxu0 0.0
    %4605 = vmatpush1.msra.mxu0 0.0
    %4606 = vmatprep.subr.mxu0 0.0
    %4607 = vmatpush1.msra.mxu0 0.0
    %4608 = vmatprep.subr.mxu0 0.0
    %4609 = vmatpush1.msra.mxu0 0.0
    %4610 = vmatprep.subr.mxu0 0.0
    %4611 = vmatpush1.msra.mxu0 0.0
    %4612 = vmatprep.subr.mxu0 0.0
    %4613 = vmatpush1.msra.mxu0 0.0
    %4614 = vmatprep.subr.mxu0 0.0
    %4615 = vmatpush1.msra.mxu0 0.0
    %4616 = vmatprep.subr.mxu0 0.0
    %4617 = vmatpush1.msra.mxu0 0.0
    %4618 = vmatprep.mubr.f32.mxu0 0.0
    %4619 = vmatmul.mubr.f32.gmra.mrb[0].mxu0 %v4552
    %v4620 = vpop.f32.mrb[0].mxu0
    %v4621 = vadd.f32 %v4548, %v4620
    %v4622 = vpop.f32.mrb[0].mxu0
    %4623 = vdwg.mxu0
    %v4624 = vmul.f32 %v4621, 0.5
    %vm4625 = vcmask 123904
    %4626 = vst.msk [vmem:[#allocation2] sm:$0x3] %vm4625, %v4624
    // Predicated region
    $region162: #{clip_encoder_forward.1} parent=1 // pred_check
      _
    $region163: #{clip_encoder_forward.1} parent=1 // pred_check_branch
      %4628 = sbr.rel (0) target = $region165
    $region164: #{clip_encoder_forward.1} parent=1 // pred_region
      %s4630 = ssub.s32 32, 32
      %4631 = vsyncadd [#allocation3], %s4630
      %s4633 = sshll.u32 [#allocation2], 4
      %s4634 = int_to_ptr.vmem [resolvable:$true] %s4633
      %4636 = dma.vmem_to_hbm [thread:$0]  %s4634, 32, %s81, [#allocation3]
    $region165: #{clip_encoder_forward.1} parent=1 // pred_fallthru
      _
    // Predicated region
    $region166: #{clip_encoder_forward.1} parent=1 // pred_check
      _
    $region167: #{clip_encoder_forward.1} parent=1 // pred_check_branch
      %4638 = sbr.rel (0) target = $region169
    $region168: #{clip_encoder_forward.1} parent=1 // pred_region
      %4639 = dma.done [#allocation3], 32
    $region169: #{clip_encoder_forward.1} parent=1 // pred_fallthru
      _
    %4640 = vsyncpa [#allocation3], 1

</llo_original>
